<compile_context>
chip_gen: v7x
topology: tpu7x:2x2x1
jax: 0.10.0
libtpu: 0.0.40
codegen_flags: <defaults>
</compile_context>

<pallas_src>
import functools

import jax
import jax.numpy as jnp
from jax.experimental import pallas as pl
from jax.experimental.pallas import tpu as pltpu

# Layer sizes from MLP4.__init__ (input_features=10, output_size=1)
LAYER_SIZES = [10, 200, 500, 500, 500, 100, 50, 1]
LANE = 128


def _round_up(n, m):
    return ((n + m - 1) // m) * m


PADDED_SIZES = [_round_up(s, LANE) for s in LAYER_SIZES]   # [128,256,512,512,512,128,128,128]

# Padded per-layer output widths and their offsets inside the fused bias buffer.
_POUT = PADDED_SIZES[1:]                    # [256,512,512,512,128,128,128]
_B_OFF = [0]
for _p in _POUT[:-1]:
    _B_OFF.append(_B_OFF[-1] + _p)          # [0,256,768,1280,1792,1920,2048]
_B_TOTAL = sum(_POUT)                       # 2176 (multiple of 128 -> lane aligned)


def _mlp4_kernel(x_ref,
                 w1, w2, w3, w4, w5, w6, w7,
                 b_ref, o_ref):
    """Fused forward for one (tile_batch, 128) block of (padded) x.

    All weights live fully in VMEM (layer 1 in f32, layers 2..7 in bf16,
    ~1.6 MiB total, single-buffered), so the whole chain of matmuls runs on the
    MXU without touching HBM between layers.  Accumulation is f32 throughout.
    """

    def bias(layer):
        off = _B_OFF[layer]
        return b_ref[:, off:off + _POUT[layer]]     # static, 128-aligned slice

    # Layer 1: tiny (K padded from 10); keep f32 operands for accuracy.
    h = x_ref[...].astype(jnp.float32)
    h = jnp.maximum(
        jnp.dot(h, w1[...], preferred_element_type=jnp.float32) + bias(0), 0.0)

    # Layers 2..6: bf16 MXU operands, f32 accumulation, f32 bias/ReLU on VPU.
    for layer, w in enumerate((w2, w3, w4, w5, w6), start=1):
        z = jnp.dot(h.astype(jnp.bfloat16), w[...],
                    preferred_element_type=jnp.float32)
        h = jnp.maximum(z + bias(layer), 0.0)

    # Output layer: no activation.  Padded output columns stay exactly 0.
    out = jnp.dot(h.astype(jnp.bfloat16), w7[...],
                  preferred_element_type=jnp.float32) + bias(6)
    o_ref[...] = out.astype(o_ref.dtype)


def mlp4_forward(x, params, *, tile_batch=512):
    """Run the fused MLP4 kernel.

    x:      (B, 10) float32 (any B; padded internally)
    params: list of (W_i, b_i) with W_i shape (in_i, out_i), b_i shape (1, out_i)
    returns (B, 1) float32
    """
    B, fin = x.shape
    assert fin == LAYER_SIZES[0]
    assert tile_batch % 8 == 0, "tile_batch must be a multiple of 8 (128+ preferred)"
    out_dim = LAYER_SIZES[-1]

    fin_p = PADDED_SIZES[0]
    out_p = PADDED_SIZES[-1]

    # Pad batch to a multiple of tile_batch and the input features to 128 lanes.
    Bp = _round_up(B, tile_batch)
    x_p = jnp.zeros((Bp, fin_p), x.dtype).at[:B, :fin].set(x)

    # x tile: double-buffered (default), streamed along the batch grid axis.
    in_specs = [pl.BlockSpec((tile_batch, fin_p), lambda i: (i, 0))]
    flat_w = []

    # Layer 1 weight: f32, K padded to 128, N padded to 256, single-buffered.
    w1, _ = params[0]
    w1_p = jnp.zeros((fin_p, PADDED_SIZES[1]), jnp.float32)
    w1_p = w1_p.at[:w1.shape[0], :w1.shape[1]].set(w1)
    in_specs.append(pl.BlockSpec((fin_p, PADDED_SIZES[1]), lambda i: (0, 0),
                                 pipeline_mode=pl.Buffered(1)))
    flat_w.append(w1_p)

    # Layers 2..7 weights: bf16, both dims padded to multiples of 128.
    for layer, (w, _) in enumerate(params[1:], start=1):
        pin, pout = PADDED_SIZES[layer], PADDED_SIZES[layer + 1]
        w_p = jnp.zeros((pin, pout), jnp.float32)
        w_p = w_p.at[:w.shape[0], :w.shape[1]].set(w).astype(jnp.bfloat16)
        in_specs.append(pl.BlockSpec((pin, pout), lambda i: (0, 0),
                                     pipeline_mode=pl.Buffered(1)))
        flat_w.append(w_p)

    # All biases fused into one lane-aligned f32 row (padded slots stay zero).
    b_all = jnp.zeros((1, _B_TOTAL), jnp.float32)
    for layer, (_, b) in enumerate(params):
        b_all = b_all.at[:, _B_OFF[layer]:_B_OFF[layer] + b.shape[1]].set(b)
    in_specs.append(pl.BlockSpec((1, _B_TOTAL), lambda i: (0, 0),
                                 pipeline_mode=pl.Buffered(1)))

    # Lane-dense output: full 128-wide block; caller slices the real column.
    out_specs = pl.BlockSpec((tile_batch, out_p), lambda i: (i, 0))

    grid = (Bp // tile_batch,)

    out_padded = pl.pallas_call(
        _mlp4_kernel,
        out_shape=jax.ShapeDtypeStruct((Bp, out_p), x.dtype),
        grid_spec=pltpu.PrefetchScalarGridSpec(
            num_scalar_prefetch=0,
            grid=grid,
            in_specs=in_specs,
            out_specs=out_specs,
        ),
        compiler_params=pltpu.CompilerParams(
            dimension_semantics=("parallel",),   # batch axis -> both TCs on v7x
            vmem_limit_bytes=32 * 1024 * 1024,   # ample for tile_batch<=1024,
                                                 # under v7x's 64 MiB/TC
        ),
    )(x_p, *flat_w, b_all)

    return out_padded[:B, :out_dim]


def init_params(key):
    """Deterministic init mimicking nn.Linear default (U(-1/sqrt(in), 1/sqrt(in)))."""
    params = []
    for fin, fout in zip(LAYER_SIZES[:-1], LAYER_SIZES[1:]):
        key, kw, kb = jax.random.split(key, 3)
        bound = 1.0 / jnp.sqrt(jnp.float32(fin))
        w = jax.random.uniform(kw, (fin, fout), jnp.float32, -bound, bound)
        b = jax.random.uniform(kb, (1, fout), jnp.float32, -bound, bound)
        params.append((w, b))
    return params


def mlp4_reference_f32(x, params):
    """Pure-JAX f32 reference (PyTorch semantics)."""
    h = x
    for i, (w, b) in enumerate(params):
        h = h @ w + b
        if i < len(params) - 1:
            h = jnp.maximum(h, 0.0)
    return h


def mlp4_reference_matched(x, params):
    """Pure-JAX reference applying the same bf16 operand casts as the kernel."""
    h = x
    for i, (w, b) in enumerate(params):
        if i == 0:
            z = jnp.dot(h, w, preferred_element_type=jnp.float32) + b
        else:
            z = jnp.dot(h.astype(jnp.bfloat16), w.astype(jnp.bfloat16),
                        preferred_element_type=jnp.float32) + b
        h = jnp.maximum(z, 0.0) if i < len(params) - 1 else z
    return h


if __name__ == "__main__":
    key = jax.random.PRNGKey(0)
    key, kx = jax.random.split(key)

    batch = 300        # deliberately not a multiple of tile_batch -> tests padding
    tile_batch = 256   # padded batch = 512 -> grid (2,), even for v7x megacore

    x = jax.random.normal(kx, (batch, LAYER_SIZES[0]), jnp.float32)
    params = init_params(key)

    fwd = jax.jit(functools.partial(mlp4_forward, tile_batch=tile_batch))
    out = jax.block_until_ready(fwd(x, params))
    assert out.shape == (batch, LAYER_SIZES[-1]), out.shape

    # Tight check against a reference using the identical bf16 operand casts.
    ref_matched = mlp4_reference_matched(x, params)
    assert jnp.allclose(out, ref_matched, atol=5e-3, rtol=5e-3), (
        f"max abs err vs matched ref {jnp.max(jnp.abs(out - ref_matched))}")

    # Loose sanity check against the full-f32 reference (bf16 approximation).
    ref_f32 = mlp4_reference_f32(x, params)
    assert jnp.allclose(out, ref_f32, atol=5e-2, rtol=5e-2), (
        f"max abs err vs f32 ref {jnp.max(jnp.abs(out - ref_f32))}")

    print("KERNEL_OK")
</pallas_src>

<mosaic_0001>
module attributes {stable_mosaic.version = 11 : i64} {
  func.func @_mlp4_kernel(%arg0: i32, %arg1: memref<256x128xf32, #tpu.memory_space<vmem>>, %arg2: memref<128x256xf32, #tpu.memory_space<vmem>>, %arg3: memref<256x512xbf16, #tpu.memory_space<vmem>>, %arg4: memref<512x512xbf16, #tpu.memory_space<vmem>>, %arg5: memref<512x512xbf16, #tpu.memory_space<vmem>>, %arg6: memref<512x128xbf16, #tpu.memory_space<vmem>>, %arg7: memref<128x128xbf16, #tpu.memory_space<vmem>>, %arg8: memref<128x128xbf16, #tpu.memory_space<vmem>>, %arg9: memref<1x2176xf32, #tpu.memory_space<vmem>>, %arg10: memref<256x128xf32, #tpu.memory_space<vmem>>) attributes {dimension_semantics = [#tpu.dimension_semantics<parallel>], iteration_bounds = array<i64: 2>, scalar_prefetch = 0 : i64, scratch_operands = 0 : i64, tpu.core_type = #tpu.core_type<tc>, window_params = [{transform_indices = @transform_0, window_bounds = array<i64: 256, 128>}, {pipeline_mode = #tpu.pipeline_mode<synchronous>, transform_indices = @transform_1, window_bounds = array<i64: 128, 256>}, {pipeline_mode = #tpu.pipeline_mode<synchronous>, transform_indices = @transform_2, window_bounds = array<i64: 256, 512>}, {pipeline_mode = #tpu.pipeline_mode<synchronous>, transform_indices = @transform_3, window_bounds = array<i64: 512, 512>}, {pipeline_mode = #tpu.pipeline_mode<synchronous>, transform_indices = @transform_4, window_bounds = array<i64: 512, 512>}, {pipeline_mode = #tpu.pipeline_mode<synchronous>, transform_indices = @transform_5, window_bounds = array<i64: 512, 128>}, {pipeline_mode = #tpu.pipeline_mode<synchronous>, transform_indices = @transform_6, window_bounds = array<i64: 128, 128>}, {pipeline_mode = #tpu.pipeline_mode<synchronous>, transform_indices = @transform_7, window_bounds = array<i64: 128, 128>}, {pipeline_mode = #tpu.pipeline_mode<synchronous>, transform_indices = @transform_8, window_bounds = array<i64: 1, 2176>}, {transform_indices = @transform_9, window_bounds = array<i64: 256, 128>}]} {
    %c0 = arith.constant 0 : index
    %c0_0 = arith.constant 0 : index
    %0 = vector.load %arg1[%c0, %c0_0] : memref<256x128xf32, #tpu.memory_space<vmem>>, vector<256x128xf32>
    %c0_1 = arith.constant 0 : index
    %c0_2 = arith.constant 0 : index
    %1 = vector.load %arg2[%c0_1, %c0_2] : memref<128x256xf32, #tpu.memory_space<vmem>>, vector<128x256xf32>
    %cst = arith.constant dense<0.000000e+00> : vector<256x256xf32>
    %2 = tpu.matmul %0, %1, %cst {dimension_numbers = #tpu.dot_dimension_numbers<[1], [0], [0], [1], [0, 0, 1, 1], [], []>} : vector<256x128xf32>, vector<128x256xf32>, vector<256x256xf32> -> vector<256x256xf32>
    %c0_3 = arith.constant 0 : index
    %c0_4 = arith.constant 0 : index
    %3 = vector.load %arg9[%c0_3, %c0_4] : memref<1x2176xf32, #tpu.memory_space<vmem>>, vector<1x256xf32>
    %4 = vector.broadcast %3 : vector<1x256xf32> to vector<256x256xf32>
    %5 = arith.addf %2, %4 : vector<256x256xf32>
    %cst_5 = arith.constant 0.000000e+00 : f32
    %6 = vector.broadcast %cst_5 : f32 to vector<256x256xf32>
    %7 = arith.maximumf %5, %6 : vector<256x256xf32>
    %8 = arith.truncf %7 : vector<256x256xf32> to vector<256x256xbf16>
    %c0_6 = arith.constant 0 : index
    %c0_7 = arith.constant 0 : index
    %9 = vector.load %arg3[%c0_6, %c0_7] : memref<256x512xbf16, #tpu.memory_space<vmem>>, vector<256x512xbf16>
    %cst_8 = arith.constant dense<0.000000e+00> : vector<256x512xf32>
    %10 = tpu.matmul %8, %9, %cst_8 {dimension_numbers = #tpu.dot_dimension_numbers<[1], [0], [0], [1], [0, 0, 1, 1], [], []>} : vector<256x256xbf16>, vector<256x512xbf16>, vector<256x512xf32> -> vector<256x512xf32>
    %c0_9 = arith.constant 0 : index
    %c256 = arith.constant 256 : index
    %11 = vector.load %arg9[%c0_9, %c256] : memref<1x2176xf32, #tpu.memory_space<vmem>>, vector<1x512xf32>
    %12 = vector.broadcast %11 : vector<1x512xf32> to vector<256x512xf32>
    %13 = arith.addf %10, %12 : vector<256x512xf32>
    %cst_10 = arith.constant 0.000000e+00 : f32
    %14 = vector.broadcast %cst_10 : f32 to vector<256x512xf32>
    %15 = arith.maximumf %13, %14 : vector<256x512xf32>
    %16 = arith.truncf %15 : vector<256x512xf32> to vector<256x512xbf16>
    %c0_11 = arith.constant 0 : index
    %c0_12 = arith.constant 0 : index
    %17 = vector.load %arg4[%c0_11, %c0_12] : memref<512x512xbf16, #tpu.memory_space<vmem>>, vector<512x512xbf16>
    %cst_13 = arith.constant dense<0.000000e+00> : vector<256x512xf32>
    %18 = tpu.matmul %16, %17, %cst_13 {dimension_numbers = #tpu.dot_dimension_numbers<[1], [0], [0], [1], [0, 0, 1, 1], [], []>} : vector<256x512xbf16>, vector<512x512xbf16>, vector<256x512xf32> -> vector<256x512xf32>
    %c0_14 = arith.constant 0 : index
    %c768 = arith.constant 768 : index
    %19 = vector.load %arg9[%c0_14, %c768] : memref<1x2176xf32, #tpu.memory_space<vmem>>, vector<1x512xf32>
    %20 = vector.broadcast %19 : vector<1x512xf32> to vector<256x512xf32>
    %21 = arith.addf %18, %20 : vector<256x512xf32>
    %cst_15 = arith.constant 0.000000e+00 : f32
    %22 = vector.broadcast %cst_15 : f32 to vector<256x512xf32>
    %23 = arith.maximumf %21, %22 : vector<256x512xf32>
    %24 = arith.truncf %23 : vector<256x512xf32> to vector<256x512xbf16>
    %c0_16 = arith.constant 0 : index
    %c0_17 = arith.constant 0 : index
    %25 = vector.load %arg5[%c0_16, %c0_17] : memref<512x512xbf16, #tpu.memory_space<vmem>>, vector<512x512xbf16>
    %cst_18 = arith.constant dense<0.000000e+00> : vector<256x512xf32>
    %26 = tpu.matmul %24, %25, %cst_18 {dimension_numbers = #tpu.dot_dimension_numbers<[1], [0], [0], [1], [0, 0, 1, 1], [], []>} : vector<256x512xbf16>, vector<512x512xbf16>, vector<256x512xf32> -> vector<256x512xf32>
    %c0_19 = arith.constant 0 : index
    %c1280 = arith.constant 1280 : index
    %27 = vector.load %arg9[%c0_19, %c1280] : memref<1x2176xf32, #tpu.memory_space<vmem>>, vector<1x512xf32>
    %28 = vector.broadcast %27 : vector<1x512xf32> to vector<256x512xf32>
    %29 = arith.addf %26, %28 : vector<256x512xf32>
    %cst_20 = arith.constant 0.000000e+00 : f32
    %30 = vector.broadcast %cst_20 : f32 to vector<256x512xf32>
    %31 = arith.maximumf %29, %30 : vector<256x512xf32>
    %32 = arith.truncf %31 : vector<256x512xf32> to vector<256x512xbf16>
    %c0_21 = arith.constant 0 : index
    %c0_22 = arith.constant 0 : index
    %33 = vector.load %arg6[%c0_21, %c0_22] : memref<512x128xbf16, #tpu.memory_space<vmem>>, vector<512x128xbf16>
    %cst_23 = arith.constant dense<0.000000e+00> : vector<256x128xf32>
    %34 = tpu.matmul %32, %33, %cst_23 {dimension_numbers = #tpu.dot_dimension_numbers<[1], [0], [0], [1], [0, 0, 1, 1], [], []>} : vector<256x512xbf16>, vector<512x128xbf16>, vector<256x128xf32> -> vector<256x128xf32>
    %c0_24 = arith.constant 0 : index
    %c1792 = arith.constant 1792 : index
    %35 = vector.load %arg9[%c0_24, %c1792] : memref<1x2176xf32, #tpu.memory_space<vmem>>, vector<1x128xf32>
    %36 = vector.broadcast %35 : vector<1x128xf32> to vector<256x128xf32>
    %37 = arith.addf %34, %36 : vector<256x128xf32>
    %cst_25 = arith.constant 0.000000e+00 : f32
    %38 = vector.broadcast %cst_25 : f32 to vector<256x128xf32>
    %39 = arith.maximumf %37, %38 : vector<256x128xf32>
    %40 = arith.truncf %39 : vector<256x128xf32> to vector<256x128xbf16>
    %c0_26 = arith.constant 0 : index
    %c0_27 = arith.constant 0 : index
    %41 = vector.load %arg7[%c0_26, %c0_27] : memref<128x128xbf16, #tpu.memory_space<vmem>>, vector<128x128xbf16>
    %cst_28 = arith.constant dense<0.000000e+00> : vector<256x128xf32>
    %42 = tpu.matmul %40, %41, %cst_28 {dimension_numbers = #tpu.dot_dimension_numbers<[1], [0], [0], [1], [0, 0, 1, 1], [], []>} : vector<256x128xbf16>, vector<128x128xbf16>, vector<256x128xf32> -> vector<256x128xf32>
    %c0_29 = arith.constant 0 : index
    %c1920 = arith.constant 1920 : index
    %43 = vector.load %arg9[%c0_29, %c1920] : memref<1x2176xf32, #tpu.memory_space<vmem>>, vector<1x128xf32>
    %44 = vector.broadcast %43 : vector<1x128xf32> to vector<256x128xf32>
    %45 = arith.addf %42, %44 : vector<256x128xf32>
    %cst_30 = arith.constant 0.000000e+00 : f32
    %46 = vector.broadcast %cst_30 : f32 to vector<256x128xf32>
    %47 = arith.maximumf %45, %46 : vector<256x128xf32>
    %48 = arith.truncf %47 : vector<256x128xf32> to vector<256x128xbf16>
    %c0_31 = arith.constant 0 : index
    %c0_32 = arith.constant 0 : index
    %49 = vector.load %arg8[%c0_31, %c0_32] : memref<128x128xbf16, #tpu.memory_space<vmem>>, vector<128x128xbf16>
    %cst_33 = arith.constant dense<0.000000e+00> : vector<256x128xf32>
    %50 = tpu.matmul %48, %49, %cst_33 {dimension_numbers = #tpu.dot_dimension_numbers<[1], [0], [0], [1], [0, 0, 1, 1], [], []>} : vector<256x128xbf16>, vector<128x128xbf16>, vector<256x128xf32> -> vector<256x128xf32>
    %c0_34 = arith.constant 0 : index
    %c2048 = arith.constant 2048 : index
    %51 = vector.load %arg9[%c0_34, %c2048] : memref<1x2176xf32, #tpu.memory_space<vmem>>, vector<1x128xf32>
    %52 = vector.broadcast %51 : vector<1x128xf32> to vector<256x128xf32>
    %53 = arith.addf %50, %52 : vector<256x128xf32>
    %c0_35 = arith.constant 0 : index
    %c0_36 = arith.constant 0 : index
    %54 = vector.load %arg10[%c0_35, %c0_36] : memref<256x128xf32, #tpu.memory_space<vmem>>, vector<256x128xf32>
    tpu.vector_store %arg10[%c0_35, %c0_36], %53 {strides = array<i32>} : memref<256x128xf32, #tpu.memory_space<vmem>>, vector<256x128xf32>,
    return
  }
  func.func @transform_0(%arg0: i32) -> (i32, i32) {
    %c0_i32 = arith.constant 0 : i32
    %c0_i32_0 = arith.constant 0 : i32
    return %arg0, %c0_i32 : i32, i32
  }
  func.func @transform_1(%arg0: i32) -> (i32, i32) {
    %c0_i32 = arith.constant 0 : i32
    %c0_i32_0 = arith.constant 0 : i32
    %c0_i32_1 = arith.constant 0 : i32
    return %c0_i32, %c0_i32_0 : i32, i32
  }
  func.func @transform_2(%arg0: i32) -> (i32, i32) {
    %c0_i32 = arith.constant 0 : i32
    %c0_i32_0 = arith.constant 0 : i32
    %c0_i32_1 = arith.constant 0 : i32
    return %c0_i32, %c0_i32_0 : i32, i32
  }
  func.func @transform_3(%arg0: i32) -> (i32, i32) {
    %c0_i32 = arith.constant 0 : i32
    %c0_i32_0 = arith.constant 0 : i32
    %c0_i32_1 = arith.constant 0 : i32
    return %c0_i32, %c0_i32_0 : i32, i32
  }
  func.func @transform_4(%arg0: i32) -> (i32, i32) {
    %c0_i32 = arith.constant 0 : i32
    %c0_i32_0 = arith.constant 0 : i32
    %c0_i32_1 = arith.constant 0 : i32
    return %c0_i32, %c0_i32_0 : i32, i32
  }
  func.func @transform_5(%arg0: i32) -> (i32, i32) {
    %c0_i32 = arith.constant 0 : i32
    %c0_i32_0 = arith.constant 0 : i32
    %c0_i32_1 = arith.constant 0 : i32
    return %c0_i32, %c0_i32_0 : i32, i32
  }
  func.func @transform_6(%arg0: i32) -> (i32, i32) {
    %c0_i32 = arith.constant 0 : i32
    %c0_i32_0 = arith.constant 0 : i32
    %c0_i32_1 = arith.constant 0 : i32
    return %c0_i32, %c0_i32_0 : i32, i32
  }
  func.func @transform_7(%arg0: i32) -> (i32, i32) {
    %c0_i32 = arith.constant 0 : i32
    %c0_i32_0 = arith.constant 0 : i32
    %c0_i32_1 = arith.constant 0 : i32
    return %c0_i32, %c0_i32_0 : i32, i32
  }
  func.func @transform_8(%arg0: i32) -> (i32, i32) {
    %c0_i32 = arith.constant 0 : i32
    %c0_i32_0 = arith.constant 0 : i32
    %c0_i32_1 = arith.constant 0 : i32
    return %c0_i32, %c0_i32_0 : i32, i32
  }
  func.func @transform_9(%arg0: i32) -> (i32, i32) {
    %c0_i32 = arith.constant 0 : i32
    %c0_i32_0 = arith.constant 0 : i32
    return %arg0, %c0_i32 : i32, i32
  }
}

</mosaic_0001>

<llo_original>
// kernel: mlp4_forward.1
$region0: #{mlp4_forward.1}
  #allocation0 [shape = 'u32[]', space=smem, size = 0x4, offset = 0x4, fixed_abs, tag = 'smem constant byte address 0x4 - core index']
  #allocation1 [shape = 'u32[144,128]{1,0:T(1,128)}', space=vmem, size = 0x12000, scoped, tag = 'internal scratch']
  %s0 = inlined_call_operand.vmem [shape: f32[512,128], index: 0, kind: input, shape index: {}]
  %s1 = inlined_call_operand.vmem [shape: f32[128,256], index: 1, kind: input, shape index: {}]
  %s2 = inlined_call_operand.vmem [shape: bf16[256,512], index: 2, kind: input, shape index: {}]
  %s3 = inlined_call_operand.vmem [shape: bf16[512,512], index: 3, kind: input, shape index: {}]
  %s4 = inlined_call_operand.vmem [shape: bf16[512,512], index: 4, kind: input, shape index: {}]
  %s5 = inlined_call_operand.vmem [shape: bf16[512,128], index: 5, kind: input, shape index: {}]
  %s6 = inlined_call_operand.vmem [shape: bf16[128,128], index: 6, kind: input, shape index: {}]
  %s7 = inlined_call_operand.vmem [shape: bf16[128,128], index: 7, kind: input, shape index: {}]
  %s8 = inlined_call_operand.vmem [shape: f32[1,2176], index: 8, kind: input, shape index: {}]
  %s9 = inlined_call_operand.vmem [shape: f32[512,128], index: 9, kind: output, shape index: {}]
  %s10 = sld [smem:[#allocation0]]
  $region69: #{mlp4_forward.1} parent=0
    _
  %s12 = ssub.s32 1, %s10
  %s13 = scalar_select 0, %s12, %s10
  loop: start=0, step=1, limit=4
  $region2: #{mlp4_forward.1} parent=0 // loop_pre_header
    _
  $region3: #{mlp4_forward.1} parent=0 // loop_header
    %s15 = sphi 0, %s19
    %p16 = scmp.ge.s32.totalorder %s15, 4
    %s25 = sphi 0, %s27
    %s28 = sphi 0, %s25
    %s29 = sphi 0, %s28
    %s45 = sphi 0, %s29
    %s49 = sphi 0, %s49
    %s51 = sphi 0, %s49
    %s52 = sphi 0, %s51
    %s66 = sphi 0, %s52
    %s70 = sphi 0, %s70
    %s72 = sphi 0, %s70
    %s73 = sphi 0, %s72
    %s87 = sphi 0, %s73
    %s91 = sphi 0, %s91
    %s93 = sphi 0, %s91
    %s94 = sphi 0, %s93
    %s108 = sphi 0, %s94
    %s112 = sphi 0, %s112
    %s114 = sphi 0, %s112
    %s115 = sphi 0, %s114
    %s129 = sphi 0, %s115
    %s133 = sphi 0, %s133
    %s135 = sphi 0, %s133
    %s136 = sphi 0, %s135
    %s150 = sphi 0, %s136
    %s154 = sphi 0, %s154
    %s156 = sphi 0, %s154
    %s157 = sphi 0, %s156
    %s171 = sphi 0, %s157
    %s175 = sphi 0, %s175
    %s177 = sphi 0, %s175
    %s178 = sphi 0, %s177
    %s192 = sphi 0, %s178
    %s196 = sphi 0, %s196
    %s198 = sphi 0, %s196
    %s199 = sphi 0, %s198
    %s213 = sphi 0, %s199
    %s219 = sphi 0, %s221
    %s222 = sphi 0, %s219
    %s223 = sphi 0, %s222
    %s239 = sphi 0, %s223
  $region4: #{mlp4_forward.1} parent=0 // loop_header_branch
    %18 = sbr.rel (%p16) target = $region8
  $region5: #{mlp4_forward.1} parent=0 // loop_body
    %s20 = ssub.s32 %s15, 1
    %s21 = ssub.s32 %s15, 2
    %s22 = sadd.s32 %s15, 1
    %s23 = ssub.s32 %s15, %s22
    %p24 = scmp.eq.s32.totalorder %s23, 0
    %s26 = sadd.s32 %s25, 1
    %s27 = scalar_select %p24, %s25, %s26
    %p30 = pneg %p24
    %p31 = scmp.eq.s32.totalorder %s15, 1
    %p32 = por %p30, %p31
    %p33 = scmp.ne.s32.totalorder %s25, %s28
    %p34 = scmp.eq.s32.totalorder %s15, 0
    %p35 = por %p33, %p34
    %p36 = scmp.ne.s32.totalorder %s25, %s28
    %p37 = scmp.eq.s32.totalorder %s20, 1
    %p38 = por %p36, %p37
    %p39 = scmp.ne.s32.totalorder %s28, %s29
    %p40 = scmp.eq.s32.totalorder %s20, 0
    %p41 = por %p39, %p40
    %p42 = scmp.ne.s32.totalorder %s28, %s29
    %p43 = scmp.eq.s32.totalorder %s21, 1
    %p44 = por %p42, %p43
    %p46 = scmp.ne.s32.totalorder %s29, %s45
    %p47 = scmp.eq.s32.totalorder %s21, 0
    %p48 = por %p46, %p47
    %s50 = sadd.s32 %s49, 1
    %p53 = scmp.eq.s32.totalorder %s15, 1
    %p54 = scmp.ne.s32.totalorder %s49, %s51
    %p55 = scmp.eq.s32.totalorder %s15, 0
    %p56 = por %p54, %p55
    %p57 = scmp.ne.s32.totalorder %s49, %s51
    %p58 = scmp.eq.s32.totalorder %s20, 1
    %p59 = por %p57, %p58
    %p60 = scmp.ne.s32.totalorder %s51, %s52
    %p61 = scmp.eq.s32.totalorder %s20, 0
    %p62 = por %p60, %p61
    %p63 = scmp.ne.s32.totalorder %s51, %s52
    %p64 = scmp.eq.s32.totalorder %s21, 1
    %p65 = por %p63, %p64
    %p67 = scmp.ne.s32.totalorder %s52, %s66
    %p68 = scmp.eq.s32.totalorder %s21, 0
    %p69 = por %p67, %p68
    %s71 = sadd.s32 %s70, 1
    %p74 = scmp.eq.s32.totalorder %s15, 1
    %p75 = scmp.ne.s32.totalorder %s70, %s72
    %p76 = scmp.eq.s32.totalorder %s15, 0
    %p77 = por %p75, %p76
    %p78 = scmp.ne.s32.totalorder %s70, %s72
    %p79 = scmp.eq.s32.totalorder %s20, 1
    %p80 = por %p78, %p79
    %p81 = scmp.ne.s32.totalorder %s72, %s73
    %p82 = scmp.eq.s32.totalorder %s20, 0
    %p83 = por %p81, %p82
    %p84 = scmp.ne.s32.totalorder %s72, %s73
    %p85 = scmp.eq.s32.totalorder %s21, 1
    %p86 = por %p84, %p85
    %p88 = scmp.ne.s32.totalorder %s73, %s87
    %p89 = scmp.eq.s32.totalorder %s21, 0
    %p90 = por %p88, %p89
    %s92 = sadd.s32 %s91, 1
    %p95 = scmp.eq.s32.totalorder %s15, 1
    %p96 = scmp.ne.s32.totalorder %s91, %s93
    %p97 = scmp.eq.s32.totalorder %s15, 0
    %p98 = por %p96, %p97
    %p99 = scmp.ne.s32.totalorder %s91, %s93
    %p100 = scmp.eq.s32.totalorder %s20, 1
    %p101 = por %p99, %p100
    %p102 = scmp.ne.s32.totalorder %s93, %s94
    %p103 = scmp.eq.s32.totalorder %s20, 0
    %p104 = por %p102, %p103
    %p105 = scmp.ne.s32.totalorder %s93, %s94
    %p106 = scmp.eq.s32.totalorder %s21, 1
    %p107 = por %p105, %p106
    %p109 = scmp.ne.s32.totalorder %s94, %s108
    %p110 = scmp.eq.s32.totalorder %s21, 0
    %p111 = por %p109, %p110
    %s113 = sadd.s32 %s112, 1
    %p116 = scmp.eq.s32.totalorder %s15, 1
    %p117 = scmp.ne.s32.totalorder %s112, %s114
    %p118 = scmp.eq.s32.totalorder %s15, 0
    %p119 = por %p117, %p118
    %p120 = scmp.ne.s32.totalorder %s112, %s114
    %p121 = scmp.eq.s32.totalorder %s20, 1
    %p122 = por %p120, %p121
    %p123 = scmp.ne.s32.totalorder %s114, %s115
    %p124 = scmp.eq.s32.totalorder %s20, 0
    %p125 = por %p123, %p124
    %p126 = scmp.ne.s32.totalorder %s114, %s115
    %p127 = scmp.eq.s32.totalorder %s21, 1
    %p128 = por %p126, %p127
    %p130 = scmp.ne.s32.totalorder %s115, %s129
    %p131 = scmp.eq.s32.totalorder %s21, 0
    %p132 = por %p130, %p131
    %s134 = sadd.s32 %s133, 1
    %p137 = scmp.eq.s32.totalorder %s15, 1
    %p138 = scmp.ne.s32.totalorder %s133, %s135
    %p139 = scmp.eq.s32.totalorder %s15, 0
    %p140 = por %p138, %p139
    %p141 = scmp.ne.s32.totalorder %s133, %s135
    %p142 = scmp.eq.s32.totalorder %s20, 1
    %p143 = por %p141, %p142
    %p144 = scmp.ne.s32.totalorder %s135, %s136
    %p145 = scmp.eq.s32.totalorder %s20, 0
    %p146 = por %p144, %p145
    %p147 = scmp.ne.s32.totalorder %s135, %s136
    %p148 = scmp.eq.s32.totalorder %s21, 1
    %p149 = por %p147, %p148
    %p151 = scmp.ne.s32.totalorder %s136, %s150
    %p152 = scmp.eq.s32.totalorder %s21, 0
    %p153 = por %p151, %p152
    %s155 = sadd.s32 %s154, 1
    %p158 = scmp.eq.s32.totalorder %s15, 1
    %p159 = scmp.ne.s32.totalorder %s154, %s156
    %p160 = scmp.eq.s32.totalorder %s15, 0
    %p161 = por %p159, %p160
    %p162 = scmp.ne.s32.totalorder %s154, %s156
    %p163 = scmp.eq.s32.totalorder %s20, 1
    %p164 = por %p162, %p163
    %p165 = scmp.ne.s32.totalorder %s156, %s157
    %p166 = scmp.eq.s32.totalorder %s20, 0
    %p167 = por %p165, %p166
    %p168 = scmp.ne.s32.totalorder %s156, %s157
    %p169 = scmp.eq.s32.totalorder %s21, 1
    %p170 = por %p168, %p169
    %p172 = scmp.ne.s32.totalorder %s157, %s171
    %p173 = scmp.eq.s32.totalorder %s21, 0
    %p174 = por %p172, %p173
    %s176 = sadd.s32 %s175, 1
    %p179 = scmp.eq.s32.totalorder %s15, 1
    %p180 = scmp.ne.s32.totalorder %s175, %s177
    %p181 = scmp.eq.s32.totalorder %s15, 0
    %p182 = por %p180, %p181
    %p183 = scmp.ne.s32.totalorder %s175, %s177
    %p184 = scmp.eq.s32.totalorder %s20, 1
    %p185 = por %p183, %p184
    %p186 = scmp.ne.s32.totalorder %s177, %s178
    %p187 = scmp.eq.s32.totalorder %s20, 0
    %p188 = por %p186, %p187
    %p189 = scmp.ne.s32.totalorder %s177, %s178
    %p190 = scmp.eq.s32.totalorder %s21, 1
    %p191 = por %p189, %p190
    %p193 = scmp.ne.s32.totalorder %s178, %s192
    %p194 = scmp.eq.s32.totalorder %s21, 0
    %p195 = por %p193, %p194
    %s197 = sadd.s32 %s196, 1
    %p200 = scmp.eq.s32.totalorder %s15, 1
    %p201 = scmp.ne.s32.totalorder %s196, %s198
    %p202 = scmp.eq.s32.totalorder %s15, 0
    %p203 = por %p201, %p202
    %p204 = scmp.ne.s32.totalorder %s196, %s198
    %p205 = scmp.eq.s32.totalorder %s20, 1
    %p206 = por %p204, %p205
    %p207 = scmp.ne.s32.totalorder %s198, %s199
    %p208 = scmp.eq.s32.totalorder %s20, 0
    %p209 = por %p207, %p208
    %p210 = scmp.ne.s32.totalorder %s198, %s199
    %p211 = scmp.eq.s32.totalorder %s21, 1
    %p212 = por %p210, %p211
    %p214 = scmp.ne.s32.totalorder %s199, %s213
    %p215 = scmp.eq.s32.totalorder %s21, 0
    %p216 = por %p214, %p215
    %s217 = ssub.s32 %s15, %s22
    %p218 = scmp.eq.s32.totalorder %s217, 0
    %s220 = sadd.s32 %s219, 1
    %s221 = scalar_select %p218, %s219, %s220
    %p224 = pneg %p218
    %p225 = scmp.eq.s32.totalorder %s15, 1
    %p226 = por %p224, %p225
    %p227 = scmp.ne.s32.totalorder %s219, %s222
    %p228 = scmp.eq.s32.totalorder %s15, 0
    %p229 = por %p227, %p228
    %p230 = scmp.ne.s32.totalorder %s219, %s222
    %p231 = scmp.eq.s32.totalorder %s20, 1
    %p232 = por %p230, %p231
    %p233 = scmp.ne.s32.totalorder %s222, %s223
    %p234 = scmp.eq.s32.totalorder %s20, 0
    %p235 = por %p233, %p234
    %p236 = scmp.ne.s32.totalorder %s222, %s223
    %p237 = scmp.eq.s32.totalorder %s21, 1
    %p238 = por %p236, %p237
    %p240 = scmp.ne.s32.totalorder %s223, %s239
    %p241 = scmp.eq.s32.totalorder %s21, 0
    %p242 = por %p240, %p241
    %p243 = scmp.le.s32.totalorder 1, %s15
    %p244 = scmp.lt.s32.totalorder %s15, 3
    %p245 = pnand %p243, %p244
    %p246 = pneg %p245
    // Predicated region
    $region9: #{mlp4_forward.1} parent=5 // pred_check
      _
    $region10: #{mlp4_forward.1} parent=5 // pred_check_branch
      %248 = sbr.rel (%p245) target = $region12
    $region11: #{mlp4_forward.1} parent=5 // pred_region
      %s249 = ssub.s32 %s15, 1
      // Predicated region
      $region13: #{mlp4_forward.1} parent=11 // pred_check
        %p250 = pneg %p62
      $region14: #{mlp4_forward.1} parent=11 // pred_check_branch
        %252 = sbr.rel (%p250) target = $region16
      $region15: #{mlp4_forward.1} parent=11 // pred_region
        _
      $region16: #{mlp4_forward.1} parent=11 // pred_fallthru
        _
      // Predicated region
      $region17: #{mlp4_forward.1} parent=11 // pred_check
        %p253 = pneg %p83
      $region18: #{mlp4_forward.1} parent=11 // pred_check_branch
        %255 = sbr.rel (%p253) target = $region20
      $region19: #{mlp4_forward.1} parent=11 // pred_region
        _
      $region20: #{mlp4_forward.1} parent=11 // pred_fallthru
        _
      // Predicated region
      $region21: #{mlp4_forward.1} parent=11 // pred_check
        %p256 = pneg %p104
      $region22: #{mlp4_forward.1} parent=11 // pred_check_branch
        %258 = sbr.rel (%p256) target = $region24
      $region23: #{mlp4_forward.1} parent=11 // pred_region
        _
      $region24: #{mlp4_forward.1} parent=11 // pred_fallthru
        _
      // Predicated region
      $region25: #{mlp4_forward.1} parent=11 // pred_check
        %p259 = pneg %p125
      $region26: #{mlp4_forward.1} parent=11 // pred_check_branch
        %261 = sbr.rel (%p259) target = $region28
      $region27: #{mlp4_forward.1} parent=11 // pred_region
        _
      $region28: #{mlp4_forward.1} parent=11 // pred_fallthru
        _
      // Predicated region
      $region29: #{mlp4_forward.1} parent=11 // pred_check
        %p262 = pneg %p146
      $region30: #{mlp4_forward.1} parent=11 // pred_check_branch
        %264 = sbr.rel (%p262) target = $region32
      $region31: #{mlp4_forward.1} parent=11 // pred_region
        _
      $region32: #{mlp4_forward.1} parent=11 // pred_fallthru
        _
      // Predicated region
      $region33: #{mlp4_forward.1} parent=11 // pred_check
        %p265 = pneg %p167
      $region34: #{mlp4_forward.1} parent=11 // pred_check_branch
        %267 = sbr.rel (%p265) target = $region36
      $region35: #{mlp4_forward.1} parent=11 // pred_region
        _
      $region36: #{mlp4_forward.1} parent=11 // pred_fallthru
        _
      // Predicated region
      $region37: #{mlp4_forward.1} parent=11 // pred_check
        %p268 = pneg %p188
      $region38: #{mlp4_forward.1} parent=11 // pred_check_branch
        %270 = sbr.rel (%p268) target = $region40
      $region39: #{mlp4_forward.1} parent=11 // pred_region
        _
      $region40: #{mlp4_forward.1} parent=11 // pred_fallthru
        _
      // Predicated region
      $region41: #{mlp4_forward.1} parent=11 // pred_check
        %p271 = pneg %p209
      $region42: #{mlp4_forward.1} parent=11 // pred_check_branch
        %273 = sbr.rel (%p271) target = $region44
      $region43: #{mlp4_forward.1} parent=11 // pred_region
        _
      $region44: #{mlp4_forward.1} parent=11 // pred_fallthru
        _
    $region12: #{mlp4_forward.1} parent=5 // pred_fallthru
      _
    %p274 = scmp.lt.s32.totalorder %s15, 2
    // Predicated region
    $region45: #{mlp4_forward.1} parent=5 // pred_check
      %p275 = pneg %p274
    $region46: #{mlp4_forward.1} parent=5 // pred_check_branch
      %277 = sbr.rel (%p275) target = $region48
    $region47: #{mlp4_forward.1} parent=5 // pred_region
      // Predicated region
      $region49: #{mlp4_forward.1} parent=47 // pred_check
        %p278 = pneg %p35
      $region50: #{mlp4_forward.1} parent=47 // pred_check_branch
        %280 = sbr.rel (%p278) target = $region52
      $region51: #{mlp4_forward.1} parent=47 // pred_region
        %s281 = smul.u32 32, %s15
        %p282 = scmp.lt.s32.totalorder %s281, 63
        %s283 = scalar_select %p282, %s281, 63
        %s284 = smul.addr %s283, 8
        %s285 = scalar_lea.vmem %s0, %s284
        %s286 = smul.u32 32, %s15
      $region52: #{mlp4_forward.1} parent=47 // pred_fallthru
        _
    $region48: #{mlp4_forward.1} parent=5 // pred_fallthru
      _
    %p287 = scmp.le.s32.totalorder 1, %s15
    %p288 = scmp.lt.s32.totalorder %s15, 3
    %p289 = pnand %p287, %p288
    %p290 = pneg %p289
    // Predicated region
    $region53: #{mlp4_forward.1} parent=5 // pred_check
      _
    $region54: #{mlp4_forward.1} parent=5 // pred_check_branch
      %292 = sbr.rel (%p289) target = $region56
    $region55: #{mlp4_forward.1} parent=5 // pred_region
      %s293 = ssub.s32 %s15, 1
      %s294 = smul.u32 32, %s20
      %p295 = scmp.lt.s32.totalorder %s294, 63
      %s296 = scalar_select %p295, %s294, 63
      %s297 = smul.addr %s296, 8
      %s298 = scalar_lea.vmem %s0, %s297
      %p299 = pneg %p41
      %p300 = pneg %p38
      %p301 = pneg %p62
      %p302 = pneg %p59
      %p303 = pneg %p83
      %p304 = pneg %p80
      %p305 = pneg %p104
      %p306 = pneg %p101
      %p307 = pneg %p125
      %p308 = pneg %p122
      %p309 = pneg %p146
      %p310 = pneg %p143
      %p311 = pneg %p167
      %p312 = pneg %p164
      %p313 = pneg %p188
      %p314 = pneg %p185
      %p315 = pneg %p209
      %p316 = pneg %p206
      %p317 = pneg %p235
      %p318 = pneg %p232
      %s319 = smul.u32 32, %s20
      %p320 = scmp.lt.s32.totalorder %s319, 63
      %s321 = scalar_select %p320, %s319, 63
      %s322 = smul.addr %s321, 8
      %s323 = scalar_lea.vmem %s9, %s322
      %s324 = smul.u32 32, %s20
      %p325 = scmp.lt.s32.totalorder %s324, 63
      %s326 = scalar_select %p325, %s324, 63
      %s327 = smul.addr %s326, 8
      %s328 = scalar_lea.vmem %s0, %s327
      %s329 = smul.u32 32, %s20
      %s330 = smul.u32 32, %s20
      %p331 = scmp.lt.s32.totalorder %s330, 63
      %s332 = scalar_select %p331, %s330, 63
      %s333 = smul.addr %s332, 8
      %s334 = scalar_lea.vmem %s9, %s333
      %s335 = smul.u32 32, %s20
      %v337 = vld [vmem:[%s328] sm:$0xff]
      %v338 = vld [vmem:[%s328 + $0x8] sm:$0xff]
      %v339 = vld [vmem:[%s328 + $0x10] sm:$0xff]
      %v340 = vld [vmem:[%s328 + $0x18] sm:$0xff]
      %v341 = vld [vmem:[%s328 + $0x20] sm:$0xff]
      %v342 = vld [vmem:[%s328 + $0x28] sm:$0xff]
      %v343 = vld [vmem:[%s328 + $0x30] sm:$0xff]
      %v344 = vld [vmem:[%s328 + $0x38] sm:$0xff]
      %v345 = vld [vmem:[%s328 + $0x40] sm:$0xff]
      %v346 = vld [vmem:[%s328 + $0x48] sm:$0xff]
      %v347 = vld [vmem:[%s328 + $0x50] sm:$0xff]
      %v348 = vld [vmem:[%s328 + $0x58] sm:$0xff]
      %v349 = vld [vmem:[%s328 + $0x60] sm:$0xff]
      %v350 = vld [vmem:[%s328 + $0x68] sm:$0xff]
      %v351 = vld [vmem:[%s328 + $0x70] sm:$0xff]
      %v352 = vld [vmem:[%s328 + $0x78] sm:$0xff]
      %v353 = vld [vmem:[%s328 + $0x80] sm:$0xff]
      %v354 = vld [vmem:[%s328 + $0x88] sm:$0xff]
      %v355 = vld [vmem:[%s328 + $0x90] sm:$0xff]
      %v356 = vld [vmem:[%s328 + $0x98] sm:$0xff]
      %v357 = vld [vmem:[%s328 + $0xa0] sm:$0xff]
      %v358 = vld [vmem:[%s328 + $0xa8] sm:$0xff]
      %v359 = vld [vmem:[%s328 + $0xb0] sm:$0xff]
      %v360 = vld [vmem:[%s328 + $0xb8] sm:$0xff]
      %v361 = vld [vmem:[%s328 + $0xc0] sm:$0xff]
      %v362 = vld [vmem:[%s328 + $0xc8] sm:$0xff]
      %v363 = vld [vmem:[%s328 + $0xd0] sm:$0xff]
      %v364 = vld [vmem:[%s328 + $0xd8] sm:$0xff]
      %v365 = vld [vmem:[%s328 + $0xe0] sm:$0xff]
      %v366 = vld [vmem:[%s328 + $0xe8] sm:$0xff]
      %v367 = vld [vmem:[%s328 + $0xf0] sm:$0xff]
      %v368 = vld [vmem:[%s328 + $0xf8] sm:$0xff]
      %v369 = vld [vmem:[%s1] sm:$0xff]
      %v370 = vld [vmem:[%s1 + $0x8] sm:$0xff]
      %v371 = vld [vmem:[%s1 + $0x10] sm:$0xff]
      %v372 = vld [vmem:[%s1 + $0x18] sm:$0xff]
      %v373 = vld [vmem:[%s1 + $0x20] sm:$0xff]
      %v374 = vld [vmem:[%s1 + $0x28] sm:$0xff]
      %v375 = vld [vmem:[%s1 + $0x30] sm:$0xff]
      %v376 = vld [vmem:[%s1 + $0x38] sm:$0xff]
      %v377 = vld [vmem:[%s1 + $0x40] sm:$0xff]
      %v378 = vld [vmem:[%s1 + $0x48] sm:$0xff]
      %v379 = vld [vmem:[%s1 + $0x50] sm:$0xff]
      %v380 = vld [vmem:[%s1 + $0x58] sm:$0xff]
      %v381 = vld [vmem:[%s1 + $0x60] sm:$0xff]
      %v382 = vld [vmem:[%s1 + $0x68] sm:$0xff]
      %v383 = vld [vmem:[%s1 + $0x70] sm:$0xff]
      %v384 = vld [vmem:[%s1 + $0x78] sm:$0xff]
      %v385 = vld [vmem:[%s1 + $0x80] sm:$0xff]
      %v386 = vld [vmem:[%s1 + $0x88] sm:$0xff]
      %v387 = vld [vmem:[%s1 + $0x90] sm:$0xff]
      %v388 = vld [vmem:[%s1 + $0x98] sm:$0xff]
      %v389 = vld [vmem:[%s1 + $0xa0] sm:$0xff]
      %v390 = vld [vmem:[%s1 + $0xa8] sm:$0xff]
      %v391 = vld [vmem:[%s1 + $0xb0] sm:$0xff]
      %v392 = vld [vmem:[%s1 + $0xb8] sm:$0xff]
      %v393 = vld [vmem:[%s1 + $0xc0] sm:$0xff]
      %v394 = vld [vmem:[%s1 + $0xc8] sm:$0xff]
      %v395 = vld [vmem:[%s1 + $0xd0] sm:$0xff]
      %v396 = vld [vmem:[%s1 + $0xd8] sm:$0xff]
      %v397 = vld [vmem:[%s1 + $0xe0] sm:$0xff]
      %v398 = vld [vmem:[%s1 + $0xe8] sm:$0xff]
      %v399 = vld [vmem:[%s1 + $0xf0] sm:$0xff]
      %v400 = vld [vmem:[%s1 + $0xf8] sm:$0xff]
      %v401 = vld [vmem:[%s8] sm:$0x3]
      %v403 = vlaneseq
      %v404 = vshrl.u32 %v403, 7
      %v405 = vsub.s32 0, %v404
      %v406 = vrot.slane %v401, %v405
      %v407 = vlaneseq
      %v408 = vshrl.u32 %v407, 7
      %v409 = vsub.s32 1, %v408
      %v410 = vrot.slane %v401, %v409
      %413 = vmatprep.subr.mxu0 %v370
      %414 = vmatpush1.msra.mxu0 %v369
      %415 = vmatprep.subr.mxu0 %v372
      %416 = vmatpush1.msra.mxu0 %v371
      %417 = vmatprep.subr.mxu0 %v374
      %418 = vmatpush1.msra.mxu0 %v373
      %419 = vmatprep.subr.mxu0 %v376
      %420 = vmatpush1.msra.mxu0 %v375
      %421 = vmatprep.subr.mxu0 %v378
      %422 = vmatpush1.msra.mxu0 %v377
      %423 = vmatprep.subr.mxu0 %v380
      %424 = vmatpush1.msra.mxu0 %v379
      %425 = vmatprep.subr.mxu0 %v382
      %426 = vmatpush1.msra.mxu0 %v381
      %427 = vmatprep.subr.mxu0 %v384
      %428 = vmatpush1.msra.mxu0 %v383
      %429 = vmatprep.subr.mxu0 %v386
      %430 = vmatpush1.msra.mxu0 %v385
      %431 = vmatprep.subr.mxu0 %v388
      %432 = vmatpush1.msra.mxu0 %v387
      %433 = vmatprep.subr.mxu0 %v390
      %434 = vmatpush1.msra.mxu0 %v389
      %435 = vmatprep.subr.mxu0 %v392
      %436 = vmatpush1.msra.mxu0 %v391
      %437 = vmatprep.subr.mxu0 %v394
      %438 = vmatpush1.msra.mxu0 %v393
      %439 = vmatprep.subr.mxu0 %v396
      %440 = vmatpush1.msra.mxu0 %v395
      %441 = vmatprep.subr.mxu0 %v398
      %442 = vmatpush1.msra.mxu0 %v397
      %443 = vmatprep.subr.mxu0 %v400
      %444 = vmatpush1.msra.mxu0 %v399
      %445 = vmatprep.subr.mxu0 0.0
      %446 = vmatpush1.msra.mxu0 0.0
      %447 = vmatprep.subr.mxu0 0.0
      %448 = vmatpush1.msra.mxu0 0.0
      %449 = vmatprep.subr.mxu0 0.0
      %450 = vmatpush1.msra.mxu0 0.0
      %451 = vmatprep.subr.mxu0 0.0
      %452 = vmatpush1.msra.mxu0 0.0
      %453 = vmatprep.subr.mxu0 0.0
      %454 = vmatpush1.msra.mxu0 0.0
      %455 = vmatprep.subr.mxu0 0.0
      %456 = vmatpush1.msra.mxu0 0.0
      %457 = vmatprep.subr.mxu0 0.0
      %458 = vmatpush1.msra.mxu0 0.0
      %459 = vmatprep.subr.mxu0 0.0
      %460 = vmatpush1.msra.mxu0 0.0
      %461 = vmatprep.subr.mxu0 0.0
      %462 = vmatpush1.msra.mxu0 0.0
      %463 = vmatprep.subr.mxu0 0.0
      %464 = vmatpush1.msra.mxu0 0.0
      %465 = vmatprep.subr.mxu0 0.0
      %466 = vmatpush1.msra.mxu0 0.0
      %467 = vmatprep.subr.mxu0 0.0
      %468 = vmatpush1.msra.mxu0 0.0
      %469 = vmatprep.subr.mxu0 0.0
      %470 = vmatpush1.msra.mxu0 0.0
      %471 = vmatprep.subr.mxu0 0.0
      %472 = vmatpush1.msra.mxu0 0.0
      %473 = vmatprep.subr.mxu0 0.0
      %474 = vmatpush1.msra.mxu0 0.0
      %475 = vmatprep.subr.mxu0 0.0
      %476 = vmatpush1.msra.mxu0 0.0
      %477 = vmatprep.mubr.f32.mxu0 0.0
      %478 = vmatmul.mubr.f32.gmra.mrb[0].mxu0 %v337
      %v479 = vpop.f32.mrb[0].mxu0
      %v480 = vadd.f32 %v406, %v479
      %v481 = vpop.f32.mrb[0].mxu0
      %v482 = vadd.f32 %v410, %v481
      %483 = vmatprep.mubr.f32.mxu0 0.0
      %484 = vmatmul.mubr.f32.gmra.mrb[0].mxu0 %v338
      %v485 = vpop.f32.mrb[0].mxu0
      %v486 = vadd.f32 %v406, %v485
      %v487 = vpop.f32.mrb[0].mxu0
      %v488 = vadd.f32 %v410, %v487
      %489 = vmatprep.mubr.f32.mxu0 0.0
      %490 = vmatmul.mubr.f32.gmra.mrb[0].mxu0 %v339
      %v491 = vpop.f32.mrb[0].mxu0
      %v492 = vadd.f32 %v406, %v491
      %v493 = vpop.f32.mrb[0].mxu0
      %v494 = vadd.f32 %v410, %v493
      %495 = vmatprep.mubr.f32.mxu0 0.0
      %496 = vmatmul.mubr.f32.gmra.mrb[0].mxu0 %v340
      %v497 = vpop.f32.mrb[0].mxu0
      %v498 = vadd.f32 %v406, %v497
      %v499 = vpop.f32.mrb[0].mxu0
      %v500 = vadd.f32 %v410, %v499
      %501 = vmatprep.mubr.f32.mxu0 0.0
      %502 = vmatmul.mubr.f32.gmra.mrb[0].mxu0 %v341
      %v503 = vpop.f32.mrb[0].mxu0
      %v504 = vadd.f32 %v406, %v503
      %v505 = vpop.f32.mrb[0].mxu0
      %v506 = vadd.f32 %v410, %v505
      %507 = vmatprep.mubr.f32.mxu0 0.0
      %508 = vmatmul.mubr.f32.gmra.mrb[0].mxu0 %v342
      %v509 = vpop.f32.mrb[0].mxu0
      %v510 = vadd.f32 %v406, %v509
      %v511 = vpop.f32.mrb[0].mxu0
      %v512 = vadd.f32 %v410, %v511
      %513 = vmatprep.mubr.f32.mxu0 0.0
      %514 = vmatmul.mubr.f32.gmra.mrb[0].mxu0 %v343
      %v515 = vpop.f32.mrb[0].mxu0
      %v516 = vadd.f32 %v406, %v515
      %v517 = vpop.f32.mrb[0].mxu0
      %v518 = vadd.f32 %v410, %v517
      %519 = vmatprep.mubr.f32.mxu0 0.0
      %520 = vmatmul.mubr.f32.gmra.mrb[0].mxu0 %v344
      %v521 = vpop.f32.mrb[0].mxu0
      %v522 = vadd.f32 %v406, %v521
      %v523 = vpop.f32.mrb[0].mxu0
      %v524 = vadd.f32 %v410, %v523
      %525 = vmatprep.mubr.f32.mxu0 0.0
      %526 = vmatmul.mubr.f32.gmra.mrb[0].mxu0 %v345
      %v527 = vpop.f32.mrb[0].mxu0
      %v528 = vadd.f32 %v406, %v527
      %v529 = vpop.f32.mrb[0].mxu0
      %v530 = vadd.f32 %v410, %v529
      %531 = vmatprep.mubr.f32.mxu0 0.0
      %532 = vmatmul.mubr.f32.gmra.mrb[0].mxu0 %v346
      %v533 = vpop.f32.mrb[0].mxu0
      %v534 = vadd.f32 %v406, %v533
      %v535 = vpop.f32.mrb[0].mxu0
      %v536 = vadd.f32 %v410, %v535
      %537 = vmatprep.mubr.f32.mxu0 0.0
      %538 = vmatmul.mubr.f32.gmra.mrb[0].mxu0 %v347
      %v539 = vpop.f32.mrb[0].mxu0
      %v540 = vadd.f32 %v406, %v539
      %v541 = vpop.f32.mrb[0].mxu0
      %v542 = vadd.f32 %v410, %v541
      %543 = vmatprep.mubr.f32.mxu0 0.0
      %544 = vmatmul.mubr.f32.gmra.mrb[0].mxu0 %v348
      %v545 = vpop.f32.mrb[0].mxu0
      %v546 = vadd.f32 %v406, %v545
      %v547 = vpop.f32.mrb[0].mxu0
      %v548 = vadd.f32 %v410, %v547
      %549 = vmatprep.mubr.f32.mxu0 0.0
      %550 = vmatmul.mubr.f32.gmra.mrb[0].mxu0 %v349
      %v551 = vpop.f32.mrb[0].mxu0
      %v552 = vadd.f32 %v406, %v551
      %v553 = vpop.f32.mrb[0].mxu0
      %v554 = vadd.f32 %v410, %v553
      %555 = vmatprep.mubr.f32.mxu0 0.0
      %556 = vmatmul.mubr.f32.gmra.mrb[0].mxu0 %v350
      %v557 = vpop.f32.mrb[0].mxu0
      %v558 = vadd.f32 %v406, %v557
      %v559 = vpop.f32.mrb[0].mxu0
      %v560 = vadd.f32 %v410, %v559
      %561 = vmatprep.mubr.f32.mxu0 0.0
      %562 = vmatmul.mubr.f32.gmra.mrb[0].mxu0 %v351
      %v563 = vpop.f32.mrb[0].mxu0
      %v564 = vadd.f32 %v406, %v563
      %v565 = vpop.f32.mrb[0].mxu0
      %v566 = vadd.f32 %v410, %v565
      %567 = vmatprep.mubr.f32.mxu0 0.0
      %568 = vmatmul.mubr.f32.gmra.mrb[0].mxu0 %v352
      %v569 = vpop.f32.mrb[0].mxu0
      %v570 = vadd.f32 %v406, %v569
      %v571 = vpop.f32.mrb[0].mxu0
      %v572 = vadd.f32 %v410, %v571
      %573 = vmatprep.mubr.f32.mxu0 0.0
      %574 = vmatmul.mubr.f32.gmra.mrb[0].mxu0 %v353
      %v575 = vpop.f32.mrb[0].mxu0
      %v576 = vadd.f32 %v406, %v575
      %v577 = vpop.f32.mrb[0].mxu0
      %v578 = vadd.f32 %v410, %v577
      %579 = vmatprep.mubr.f32.mxu0 0.0
      %580 = vmatmul.mubr.f32.gmra.mrb[0].mxu0 %v354
      %v581 = vpop.f32.mrb[0].mxu0
      %v582 = vadd.f32 %v406, %v581
      %v583 = vpop.f32.mrb[0].mxu0
      %v584 = vadd.f32 %v410, %v583
      %585 = vmatprep.mubr.f32.mxu0 0.0
      %586 = vmatmul.mubr.f32.gmra.mrb[0].mxu0 %v355
      %v587 = vpop.f32.mrb[0].mxu0
      %v588 = vadd.f32 %v406, %v587
      %v589 = vpop.f32.mrb[0].mxu0
      %v590 = vadd.f32 %v410, %v589
      %591 = vmatprep.mubr.f32.mxu0 0.0
      %592 = vmatmul.mubr.f32.gmra.mrb[0].mxu0 %v356
      %v593 = vpop.f32.mrb[0].mxu0
      %v594 = vadd.f32 %v406, %v593
      %v595 = vpop.f32.mrb[0].mxu0
      %v596 = vadd.f32 %v410, %v595
      %597 = vmatprep.mubr.f32.mxu0 0.0
      %598 = vmatmul.mubr.f32.gmra.mrb[0].mxu0 %v357
      %v599 = vpop.f32.mrb[0].mxu0
      %v600 = vadd.f32 %v406, %v599
      %v601 = vpop.f32.mrb[0].mxu0
      %v602 = vadd.f32 %v410, %v601
      %603 = vmatprep.mubr.f32.mxu0 0.0
      %604 = vmatmul.mubr.f32.gmra.mrb[0].mxu0 %v358
      %v605 = vpop.f32.mrb[0].mxu0
      %v606 = vadd.f32 %v406, %v605
      %v607 = vpop.f32.mrb[0].mxu0
      %v608 = vadd.f32 %v410, %v607
      %609 = vmatprep.mubr.f32.mxu0 0.0
      %610 = vmatmul.mubr.f32.gmra.mrb[0].mxu0 %v359
      %v611 = vpop.f32.mrb[0].mxu0
      %v612 = vadd.f32 %v406, %v611
      %v613 = vpop.f32.mrb[0].mxu0
      %v614 = vadd.f32 %v410, %v613
      %615 = vmatprep.mubr.f32.mxu0 0.0
      %616 = vmatmul.mubr.f32.gmra.mrb[0].mxu0 %v360
      %v617 = vpop.f32.mrb[0].mxu0
      %v618 = vadd.f32 %v406, %v617
      %v619 = vpop.f32.mrb[0].mxu0
      %v620 = vadd.f32 %v410, %v619
      %621 = vmatprep.mubr.f32.mxu0 0.0
      %622 = vmatmul.mubr.f32.gmra.mrb[0].mxu0 %v361
      %v623 = vpop.f32.mrb[0].mxu0
      %v624 = vadd.f32 %v406, %v623
      %v625 = vpop.f32.mrb[0].mxu0
      %v626 = vadd.f32 %v410, %v625
      %627 = vmatprep.mubr.f32.mxu0 0.0
      %628 = vmatmul.mubr.f32.gmra.mrb[0].mxu0 %v362
      %v629 = vpop.f32.mrb[0].mxu0
      %v630 = vadd.f32 %v406, %v629
      %v631 = vpop.f32.mrb[0].mxu0
      %v632 = vadd.f32 %v410, %v631
      %633 = vmatprep.mubr.f32.mxu0 0.0
      %634 = vmatmul.mubr.f32.gmra.mrb[0].mxu0 %v363
      %v635 = vpop.f32.mrb[0].mxu0
      %v636 = vadd.f32 %v406, %v635
      %v637 = vpop.f32.mrb[0].mxu0
      %v638 = vadd.f32 %v410, %v637
      %639 = vmatprep.mubr.f32.mxu0 0.0
      %640 = vmatmul.mubr.f32.gmra.mrb[0].mxu0 %v364
      %v641 = vpop.f32.mrb[0].mxu0
      %v642 = vadd.f32 %v406, %v641
      %v643 = vpop.f32.mrb[0].mxu0
      %v644 = vadd.f32 %v410, %v643
      %645 = vmatprep.mubr.f32.mxu0 0.0
      %646 = vmatmul.mubr.f32.gmra.mrb[0].mxu0 %v365
      %v647 = vpop.f32.mrb[0].mxu0
      %v648 = vadd.f32 %v406, %v647
      %v649 = vpop.f32.mrb[0].mxu0
      %v650 = vadd.f32 %v410, %v649
      %651 = vmatprep.mubr.f32.mxu0 0.0
      %652 = vmatmul.mubr.f32.gmra.mrb[0].mxu0 %v366
      %v653 = vpop.f32.mrb[0].mxu0
      %v654 = vadd.f32 %v406, %v653
      %v655 = vpop.f32.mrb[0].mxu0
      %v656 = vadd.f32 %v410, %v655
      %657 = vmatprep.mubr.f32.mxu0 0.0
      %658 = vmatmul.mubr.f32.gmra.mrb[0].mxu0 %v367
      %v659 = vpop.f32.mrb[0].mxu0
      %v660 = vadd.f32 %v406, %v659
      %v661 = vpop.f32.mrb[0].mxu0
      %v662 = vadd.f32 %v410, %v661
      %663 = vmatprep.mubr.f32.mxu0 0.0
      %664 = vmatmul.mubr.f32.gmra.mrb[0].mxu0 %v368
      %v665 = vpop.f32.mrb[0].mxu0
      %v666 = vadd.f32 %v406, %v665
      %v667 = vpop.f32.mrb[0].mxu0
      %v668 = vadd.f32 %v410, %v667
      %669 = vdwg.mxu0
      %v670 = vmax.f32 %v480, 0.0
      %v671 = vmax.f32 %v482, 0.0
      %v672 = vmax.f32 %v486, 0.0
      %v673 = vmax.f32 %v488, 0.0
      %v674 = vmax.f32 %v492, 0.0
      %v675 = vmax.f32 %v494, 0.0
      %v676 = vmax.f32 %v498, 0.0
      %v677 = vmax.f32 %v500, 0.0
      %v678 = vmax.f32 %v504, 0.0
      %v679 = vmax.f32 %v506, 0.0
      %v680 = vmax.f32 %v510, 0.0
      %v681 = vmax.f32 %v512, 0.0
      %v682 = vmax.f32 %v516, 0.0
      %v683 = vmax.f32 %v518, 0.0
      %v684 = vmax.f32 %v522, 0.0
      %v685 = vmax.f32 %v524, 0.0
      %v686 = vmax.f32 %v528, 0.0
      %v687 = vmax.f32 %v530, 0.0
      %v688 = vmax.f32 %v534, 0.0
      %v689 = vmax.f32 %v536, 0.0
      %v690 = vmax.f32 %v540, 0.0
      %v691 = vmax.f32 %v542, 0.0
      %v692 = vmax.f32 %v546, 0.0
      %v693 = vmax.f32 %v548, 0.0
      %v694 = vmax.f32 %v552, 0.0
      %v695 = vmax.f32 %v554, 0.0
      %v696 = vmax.f32 %v558, 0.0
      %v697 = vmax.f32 %v560, 0.0
      %v698 = vmax.f32 %v564, 0.0
      %v699 = vmax.f32 %v566, 0.0
      %v700 = vmax.f32 %v570, 0.0
      %v701 = vmax.f32 %v572, 0.0
      %v702 = vmax.f32 %v576, 0.0
      %v703 = vmax.f32 %v578, 0.0
      %v704 = vmax.f32 %v582, 0.0
      %v705 = vmax.f32 %v584, 0.0
      %v706 = vmax.f32 %v588, 0.0
      %v707 = vmax.f32 %v590, 0.0
      %v708 = vmax.f32 %v594, 0.0
      %v709 = vmax.f32 %v596, 0.0
      %v710 = vmax.f32 %v600, 0.0
      %v711 = vmax.f32 %v602, 0.0
      %v712 = vmax.f32 %v606, 0.0
      %v713 = vmax.f32 %v608, 0.0
      %v714 = vmax.f32 %v612, 0.0
      %v715 = vmax.f32 %v614, 0.0
      %v716 = vmax.f32 %v618, 0.0
      %v717 = vmax.f32 %v620, 0.0
      %v718 = vmax.f32 %v624, 0.0
      %v719 = vmax.f32 %v626, 0.0
      %v720 = vmax.f32 %v630, 0.0
      %v721 = vmax.f32 %v632, 0.0
      %v722 = vmax.f32 %v636, 0.0
      %v723 = vmax.f32 %v638, 0.0
      %v724 = vmax.f32 %v642, 0.0
      %v725 = vmax.f32 %v644, 0.0
      %v726 = vmax.f32 %v648, 0.0
      %v727 = vmax.f32 %v650, 0.0
      %v728 = vmax.f32 %v654, 0.0
      %v729 = vmax.f32 %v656, 0.0
      %v730 = vmax.f32 %v660, 0.0
      %v731 = vmax.f32 %v662, 0.0
      %v732 = vmax.f32 %v666, 0.0
      %v733 = vmax.f32 %v668, 0.0
      %v734 = vpack.c.bf16 %v672, %v670
      %v735 = vpack.c.bf16 %v673, %v671
      %v736 = vpack.c.bf16 %v676, %v674
      %v737 = vpack.c.bf16 %v677, %v675
      %v738 = vpack.c.bf16 %v680, %v678
      %v739 = vpack.c.bf16 %v681, %v679
      %v740 = vpack.c.bf16 %v684, %v682
      %v741 = vpack.c.bf16 %v685, %v683
      %v742 = vpack.c.bf16 %v688, %v686
      %v743 = vpack.c.bf16 %v689, %v687
      %v744 = vpack.c.bf16 %v692, %v690
      %v745 = vpack.c.bf16 %v693, %v691
      %v746 = vpack.c.bf16 %v696, %v694
      %v747 = vpack.c.bf16 %v697, %v695
      %v748 = vpack.c.bf16 %v700, %v698
      %v749 = vpack.c.bf16 %v701, %v699
      %v750 = vpack.c.bf16 %v704, %v702
      %v751 = vpack.c.bf16 %v705, %v703
      %v752 = vpack.c.bf16 %v708, %v706
      %v753 = vpack.c.bf16 %v709, %v707
      %v754 = vpack.c.bf16 %v712, %v710
      %v755 = vpack.c.bf16 %v713, %v711
      %v756 = vpack.c.bf16 %v716, %v714
      %v757 = vpack.c.bf16 %v717, %v715
      %v758 = vpack.c.bf16 %v720, %v718
      %v759 = vpack.c.bf16 %v721, %v719
      %v760 = vpack.c.bf16 %v724, %v722
      %v761 = vpack.c.bf16 %v725, %v723
      %v762 = vpack.c.bf16 %v728, %v726
      %v763 = vpack.c.bf16 %v729, %v727
      %v764 = vpack.c.bf16 %v732, %v730
      %v765 = vpack.c.bf16 %v733, %v731
      %v766 = vld [vmem:[%s2] sm:$0xff]
      %v767 = vld [vmem:[%s2 + $0x8] sm:$0xff]
      %v768 = vld [vmem:[%s2 + $0x10] sm:$0xff]
      %v769 = vld [vmem:[%s2 + $0x18] sm:$0xff]
      %v770 = vld [vmem:[%s2 + $0x20] sm:$0xff]
      %v771 = vld [vmem:[%s2 + $0x28] sm:$0xff]
      %v772 = vld [vmem:[%s2 + $0x30] sm:$0xff]
      %v773 = vld [vmem:[%s2 + $0x38] sm:$0xff]
      %v774 = vld [vmem:[%s2 + $0x40] sm:$0xff]
      %v775 = vld [vmem:[%s2 + $0x48] sm:$0xff]
      %v776 = vld [vmem:[%s2 + $0x50] sm:$0xff]
      %v777 = vld [vmem:[%s2 + $0x58] sm:$0xff]
      %v778 = vld [vmem:[%s2 + $0x60] sm:$0xff]
      %v779 = vld [vmem:[%s2 + $0x68] sm:$0xff]
      %v780 = vld [vmem:[%s2 + $0x70] sm:$0xff]
      %v781 = vld [vmem:[%s2 + $0x78] sm:$0xff]
      %v782 = vld [vmem:[%s2 + $0x80] sm:$0xff]
      %v783 = vld [vmem:[%s2 + $0x88] sm:$0xff]
      %v784 = vld [vmem:[%s2 + $0x90] sm:$0xff]
      %v785 = vld [vmem:[%s2 + $0x98] sm:$0xff]
      %v786 = vld [vmem:[%s2 + $0xa0] sm:$0xff]
      %v787 = vld [vmem:[%s2 + $0xa8] sm:$0xff]
      %v788 = vld [vmem:[%s2 + $0xb0] sm:$0xff]
      %v789 = vld [vmem:[%s2 + $0xb8] sm:$0xff]
      %v790 = vld [vmem:[%s2 + $0xc0] sm:$0xff]
      %v791 = vld [vmem:[%s2 + $0xc8] sm:$0xff]
      %v792 = vld [vmem:[%s2 + $0xd0] sm:$0xff]
      %v793 = vld [vmem:[%s2 + $0xd8] sm:$0xff]
      %v794 = vld [vmem:[%s2 + $0xe0] sm:$0xff]
      %v795 = vld [vmem:[%s2 + $0xe8] sm:$0xff]
      %v796 = vld [vmem:[%s2 + $0xf0] sm:$0xff]
      %v797 = vld [vmem:[%s2 + $0xf8] sm:$0xff]
      %v798 = vld [vmem:[%s2 + $0x100] sm:$0xff]
      %v799 = vld [vmem:[%s2 + $0x108] sm:$0xff]
      %v800 = vld [vmem:[%s2 + $0x110] sm:$0xff]
      %v801 = vld [vmem:[%s2 + $0x118] sm:$0xff]
      %v802 = vld [vmem:[%s2 + $0x120] sm:$0xff]
      %v803 = vld [vmem:[%s2 + $0x128] sm:$0xff]
      %v804 = vld [vmem:[%s2 + $0x130] sm:$0xff]
      %v805 = vld [vmem:[%s2 + $0x138] sm:$0xff]
      %v806 = vld [vmem:[%s2 + $0x140] sm:$0xff]
      %v807 = vld [vmem:[%s2 + $0x148] sm:$0xff]
      %v808 = vld [vmem:[%s2 + $0x150] sm:$0xff]
      %v809 = vld [vmem:[%s2 + $0x158] sm:$0xff]
      %v810 = vld [vmem:[%s2 + $0x160] sm:$0xff]
      %v811 = vld [vmem:[%s2 + $0x168] sm:$0xff]
      %v812 = vld [vmem:[%s2 + $0x170] sm:$0xff]
      %v813 = vld [vmem:[%s2 + $0x178] sm:$0xff]
      %v814 = vld [vmem:[%s2 + $0x180] sm:$0xff]
      %v815 = vld [vmem:[%s2 + $0x188] sm:$0xff]
      %v816 = vld [vmem:[%s2 + $0x190] sm:$0xff]
      %v817 = vld [vmem:[%s2 + $0x198] sm:$0xff]
      %v818 = vld [vmem:[%s2 + $0x1a0] sm:$0xff]
      %v819 = vld [vmem:[%s2 + $0x1a8] sm:$0xff]
      %v820 = vld [vmem:[%s2 + $0x1b0] sm:$0xff]
      %v821 = vld [vmem:[%s2 + $0x1b8] sm:$0xff]
      %v822 = vld [vmem:[%s2 + $0x1c0] sm:$0xff]
      %v823 = vld [vmem:[%s2 + $0x1c8] sm:$0xff]
      %v824 = vld [vmem:[%s2 + $0x1d0] sm:$0xff]
      %v825 = vld [vmem:[%s2 + $0x1d8] sm:$0xff]
      %v826 = vld [vmem:[%s2 + $0x1e0] sm:$0xff]
      %v827 = vld [vmem:[%s2 + $0x1e8] sm:$0xff]
      %v828 = vld [vmem:[%s2 + $0x1f0] sm:$0xff]
      %v829 = vld [vmem:[%s2 + $0x1f8] sm:$0xff]
      %v830 = vld [vmem:[%s8 + $0x2] sm:$0xf]
      %v832 = vlaneseq
      %v833 = vshrl.u32 %v832, 7
      %v834 = vsub.s32 0, %v833
      %v835 = vrot.slane %v830, %v834
      %v836 = vlaneseq
      %v837 = vshrl.u32 %v836, 7
      %v838 = vsub.s32 1, %v837
      %v839 = vrot.slane %v830, %v838
      %v840 = vlaneseq
      %v841 = vshrl.u32 %v840, 7
      %v842 = vsub.s32 2, %v841
      %v843 = vrot.slane %v830, %v842
      %v844 = vlaneseq
      %v845 = vshrl.u32 %v844, 7
      %v846 = vsub.s32 3, %v845
      %v847 = vrot.slane %v830, %v846
      %v916 = vunpack.c.l.b16 %v766
      %v917 = vunpack.c.h.b16 %v766
      %v918 = vunpack.c.l.b16 %v767
      %v919 = vunpack.c.h.b16 %v767
      %v920 = vunpack.c.l.b16 %v768
      %v921 = vunpack.c.h.b16 %v768
      %v922 = vunpack.c.l.b16 %v769
      %v923 = vunpack.c.h.b16 %v769
      %v924 = vunpack.c.l.b16 %v770
      %v925 = vunpack.c.h.b16 %v770
      %v926 = vunpack.c.l.b16 %v771
      %v927 = vunpack.c.h.b16 %v771
      %v928 = vunpack.c.l.b16 %v772
      %v929 = vunpack.c.h.b16 %v772
      %v930 = vunpack.c.l.b16 %v773
      %v931 = vunpack.c.h.b16 %v773
      %v932 = vunpack.c.l.b16 %v774
      %v933 = vunpack.c.h.b16 %v774
      %v934 = vunpack.c.l.b16 %v775
      %v935 = vunpack.c.h.b16 %v775
      %v936 = vunpack.c.l.b16 %v776
      %v937 = vunpack.c.h.b16 %v776
      %v938 = vunpack.c.l.b16 %v777
      %v939 = vunpack.c.h.b16 %v777
      %v940 = vunpack.c.l.b16 %v778
      %v941 = vunpack.c.h.b16 %v778
      %v942 = vunpack.c.l.b16 %v779
      %v943 = vunpack.c.h.b16 %v779
      %v944 = vunpack.c.l.b16 %v780
      %v945 = vunpack.c.h.b16 %v780
      %v946 = vunpack.c.l.b16 %v781
      %v947 = vunpack.c.h.b16 %v781
      %v948 = vunpack.c.l.b16 %v782
      %v949 = vunpack.c.h.b16 %v782
      %v950 = vunpack.c.l.b16 %v783
      %v951 = vunpack.c.h.b16 %v783
      %v952 = vunpack.c.l.b16 %v784
      %v953 = vunpack.c.h.b16 %v784
      %v954 = vunpack.c.l.b16 %v785
      %v955 = vunpack.c.h.b16 %v785
      %v956 = vunpack.c.l.b16 %v786
      %v957 = vunpack.c.h.b16 %v786
      %v958 = vunpack.c.l.b16 %v787
      %v959 = vunpack.c.h.b16 %v787
      %v960 = vunpack.c.l.b16 %v788
      %v961 = vunpack.c.h.b16 %v788
      %v962 = vunpack.c.l.b16 %v789
      %v963 = vunpack.c.h.b16 %v789
      %v964 = vunpack.c.l.b16 %v790
      %v965 = vunpack.c.h.b16 %v790
      %v966 = vunpack.c.l.b16 %v791
      %v967 = vunpack.c.h.b16 %v791
      %v968 = vunpack.c.l.b16 %v792
      %v969 = vunpack.c.h.b16 %v792
      %v970 = vunpack.c.l.b16 %v793
      %v971 = vunpack.c.h.b16 %v793
      %v972 = vunpack.c.l.b16 %v794
      %v973 = vunpack.c.h.b16 %v794
      %v974 = vunpack.c.l.b16 %v795
      %v975 = vunpack.c.h.b16 %v795
      %v976 = vunpack.c.l.b16 %v796
      %v977 = vunpack.c.h.b16 %v796
      %v978 = vunpack.c.l.b16 %v797
      %v979 = vunpack.c.h.b16 %v797
      %v980 = vunpack.c.l.b16 %v798
      %v981 = vunpack.c.h.b16 %v798
      %v982 = vunpack.c.l.b16 %v799
      %v983 = vunpack.c.h.b16 %v799
      %v984 = vunpack.c.l.b16 %v800
      %v985 = vunpack.c.h.b16 %v800
      %v986 = vunpack.c.l.b16 %v801
      %v987 = vunpack.c.h.b16 %v801
      %v988 = vunpack.c.l.b16 %v802
      %v989 = vunpack.c.h.b16 %v802
      %v990 = vunpack.c.l.b16 %v803
      %v991 = vunpack.c.h.b16 %v803
      %v992 = vunpack.c.l.b16 %v804
      %v993 = vunpack.c.h.b16 %v804
      %v994 = vunpack.c.l.b16 %v805
      %v995 = vunpack.c.h.b16 %v805
      %v996 = vunpack.c.l.b16 %v806
      %v997 = vunpack.c.h.b16 %v806
      %v998 = vunpack.c.l.b16 %v807
      %v999 = vunpack.c.h.b16 %v807
      %v1000 = vunpack.c.l.b16 %v808
      %v1001 = vunpack.c.h.b16 %v808
      %v1002 = vunpack.c.l.b16 %v809
      %v1003 = vunpack.c.h.b16 %v809
      %v1004 = vunpack.c.l.b16 %v810
      %v1005 = vunpack.c.h.b16 %v810
      %v1006 = vunpack.c.l.b16 %v811
      %v1007 = vunpack.c.h.b16 %v811
      %v1008 = vunpack.c.l.b16 %v812
      %v1009 = vunpack.c.h.b16 %v812
      %v1010 = vunpack.c.l.b16 %v813
      %v1011 = vunpack.c.h.b16 %v813
      %v1012 = vunpack.c.l.b16 %v814
      %v1013 = vunpack.c.h.b16 %v814
      %v1014 = vunpack.c.l.b16 %v815
      %v1015 = vunpack.c.h.b16 %v815
      %v1016 = vunpack.c.l.b16 %v816
      %v1017 = vunpack.c.h.b16 %v816
      %v1018 = vunpack.c.l.b16 %v817
      %v1019 = vunpack.c.h.b16 %v817
      %v1020 = vunpack.c.l.b16 %v818
      %v1021 = vunpack.c.h.b16 %v818
      %v1022 = vunpack.c.l.b16 %v819
      %v1023 = vunpack.c.h.b16 %v819
      %v1024 = vunpack.c.l.b16 %v820
      %v1025 = vunpack.c.h.b16 %v820
      %v1026 = vunpack.c.l.b16 %v821
      %v1027 = vunpack.c.h.b16 %v821
      %v1028 = vunpack.c.l.b16 %v822
      %v1029 = vunpack.c.h.b16 %v822
      %v1030 = vunpack.c.l.b16 %v823
      %v1031 = vunpack.c.h.b16 %v823
      %v1032 = vunpack.c.l.b16 %v824
      %v1033 = vunpack.c.h.b16 %v824
      %v1034 = vunpack.c.l.b16 %v825
      %v1035 = vunpack.c.h.b16 %v825
      %v1036 = vunpack.c.l.b16 %v826
      %v1037 = vunpack.c.h.b16 %v826
      %v1038 = vunpack.c.l.b16 %v827
      %v1039 = vunpack.c.h.b16 %v827
      %v1040 = vunpack.c.l.b16 %v828
      %v1041 = vunpack.c.h.b16 %v828
      %v1042 = vunpack.c.l.b16 %v829
      %v1043 = vunpack.c.h.b16 %v829
      %v1044 = vpack.c.b16 %v920, %v916
      %v1045 = vpack.c.b16 %v921, %v917
      %v1046 = vpack.c.b16 %v922, %v918
      %v1047 = vpack.c.b16 %v923, %v919
      %v1048 = vpack.c.b16 %v928, %v924
      %v1049 = vpack.c.b16 %v929, %v925
      %v1050 = vpack.c.b16 %v930, %v926
      %v1051 = vpack.c.b16 %v931, %v927
      %v1052 = vpack.c.b16 %v936, %v932
      %v1053 = vpack.c.b16 %v937, %v933
      %v1054 = vpack.c.b16 %v938, %v934
      %v1055 = vpack.c.b16 %v939, %v935
      %v1056 = vpack.c.b16 %v944, %v940
      %v1057 = vpack.c.b16 %v945, %v941
      %v1058 = vpack.c.b16 %v946, %v942
      %v1059 = vpack.c.b16 %v947, %v943
      %v1060 = vpack.c.b16 %v952, %v948
      %v1061 = vpack.c.b16 %v953, %v949
      %v1062 = vpack.c.b16 %v954, %v950
      %v1063 = vpack.c.b16 %v955, %v951
      %v1064 = vpack.c.b16 %v960, %v956
      %v1065 = vpack.c.b16 %v961, %v957
      %v1066 = vpack.c.b16 %v962, %v958
      %v1067 = vpack.c.b16 %v963, %v959
      %v1068 = vpack.c.b16 %v968, %v964
      %v1069 = vpack.c.b16 %v969, %v965
      %v1070 = vpack.c.b16 %v970, %v966
      %v1071 = vpack.c.b16 %v971, %v967
      %v1072 = vpack.c.b16 %v976, %v972
      %v1073 = vpack.c.b16 %v977, %v973
      %v1074 = vpack.c.b16 %v978, %v974
      %v1075 = vpack.c.b16 %v979, %v975
      %v1076 = vpack.c.b16 %v984, %v980
      %v1077 = vpack.c.b16 %v985, %v981
      %v1078 = vpack.c.b16 %v986, %v982
      %v1079 = vpack.c.b16 %v987, %v983
      %v1080 = vpack.c.b16 %v992, %v988
      %v1081 = vpack.c.b16 %v993, %v989
      %v1082 = vpack.c.b16 %v994, %v990
      %v1083 = vpack.c.b16 %v995, %v991
      %v1084 = vpack.c.b16 %v1000, %v996
      %v1085 = vpack.c.b16 %v1001, %v997
      %v1086 = vpack.c.b16 %v1002, %v998
      %v1087 = vpack.c.b16 %v1003, %v999
      %v1088 = vpack.c.b16 %v1008, %v1004
      %v1089 = vpack.c.b16 %v1009, %v1005
      %v1090 = vpack.c.b16 %v1010, %v1006
      %v1091 = vpack.c.b16 %v1011, %v1007
      %v1092 = vpack.c.b16 %v1016, %v1012
      %v1093 = vpack.c.b16 %v1017, %v1013
      %v1094 = vpack.c.b16 %v1018, %v1014
      %v1095 = vpack.c.b16 %v1019, %v1015
      %v1096 = vpack.c.b16 %v1024, %v1020
      %v1097 = vpack.c.b16 %v1025, %v1021
      %v1098 = vpack.c.b16 %v1026, %v1022
      %v1099 = vpack.c.b16 %v1027, %v1023
      %v1100 = vpack.c.b16 %v1032, %v1028
      %v1101 = vpack.c.b16 %v1033, %v1029
      %v1102 = vpack.c.b16 %v1034, %v1030
      %v1103 = vpack.c.b16 %v1035, %v1031
      %v1104 = vpack.c.b16 %v1040, %v1036
      %v1105 = vpack.c.b16 %v1041, %v1037
      %v1106 = vpack.c.b16 %v1042, %v1038
      %v1107 = vpack.c.b16 %v1043, %v1039
      %1172 = vmatprep.subr.bf16.mxu0 %v1045
      %1173 = vmatpush1.bf16.msra.mxu0 %v1044
      %1174 = vmatprep.subr.bf16.mxu0 %v1049
      %1175 = vmatpush1.bf16.msra.mxu0 %v1048
      %1176 = vmatprep.subr.bf16.mxu0 %v1053
      %1177 = vmatpush1.bf16.msra.mxu0 %v1052
      %1178 = vmatprep.subr.bf16.mxu0 %v1057
      %1179 = vmatpush1.bf16.msra.mxu0 %v1056
      %1180 = vmatprep.subr.bf16.mxu0 %v1061
      %1181 = vmatpush1.bf16.msra.mxu0 %v1060
      %1182 = vmatprep.subr.bf16.mxu0 %v1065
      %1183 = vmatpush1.bf16.msra.mxu0 %v1064
      %1184 = vmatprep.subr.bf16.mxu0 %v1069
      %1185 = vmatpush1.bf16.msra.mxu0 %v1068
      %1186 = vmatprep.subr.bf16.mxu0 %v1073
      %1187 = vmatpush1.bf16.msra.mxu0 %v1072
      %1188 = vmatprep.subr.bf16.mxu0 %v1077
      %1189 = vmatpush1.bf16.msra.mxu0 %v1076
      %1190 = vmatprep.subr.bf16.mxu0 %v1081
      %1191 = vmatpush1.bf16.msra.mxu0 %v1080
      %1192 = vmatprep.subr.bf16.mxu0 %v1085
      %1193 = vmatpush1.bf16.msra.mxu0 %v1084
      %1194 = vmatprep.subr.bf16.mxu0 %v1089
      %1195 = vmatpush1.bf16.msra.mxu0 %v1088
      %1196 = vmatprep.subr.bf16.mxu0 %v1093
      %1197 = vmatpush1.bf16.msra.mxu0 %v1092
      %1198 = vmatprep.subr.bf16.mxu0 %v1097
      %1199 = vmatpush1.bf16.msra.mxu0 %v1096
      %1200 = vmatprep.subr.bf16.mxu0 %v1101
      %1201 = vmatpush1.bf16.msra.mxu0 %v1100
      %1202 = vmatprep.subr.bf16.mxu0 %v1105
      %1203 = vmatpush1.bf16.msra.mxu0 %v1104
      %1204 = vmatprep.mubr.bf16.mxu0 %v735
      %1205 = vmatmul.mubr.bf16.gmra.mrb[0].mxu0 %v734
      %v1206 = vpop.f32.mrb[0].mxu0
      %v1207 = vadd.f32 %v835, %v1206
      %v1208 = vpop.f32.mrb[0].mxu0
      %v1209 = vadd.f32 %v839, %v1208
      %v1210 = vpop.f32.mrb[0].mxu0
      %v1211 = vadd.f32 %v835, %v1210
      %v1212 = vpop.f32.mrb[0].mxu0
      %v1213 = vadd.f32 %v839, %v1212
      %1214 = vmatprep.mubr.bf16.mxu0 %v737
      %1215 = vmatmul.mubr.bf16.gmra.mrb[0].mxu0 %v736
      %v1216 = vpop.f32.mrb[0].mxu0
      %v1217 = vadd.f32 %v835, %v1216
      %v1218 = vpop.f32.mrb[0].mxu0
      %v1219 = vadd.f32 %v839, %v1218
      %v1220 = vpop.f32.mrb[0].mxu0
      %v1221 = vadd.f32 %v835, %v1220
      %v1222 = vpop.f32.mrb[0].mxu0
      %v1223 = vadd.f32 %v839, %v1222
      %1224 = vmatprep.mubr.bf16.mxu0 %v739
      %1225 = vmatmul.mubr.bf16.gmra.mrb[0].mxu0 %v738
      %v1226 = vpop.f32.mrb[0].mxu0
      %v1227 = vadd.f32 %v835, %v1226
      %v1228 = vpop.f32.mrb[0].mxu0
      %v1229 = vadd.f32 %v839, %v1228
      %v1230 = vpop.f32.mrb[0].mxu0
      %v1231 = vadd.f32 %v835, %v1230
      %v1232 = vpop.f32.mrb[0].mxu0
      %v1233 = vadd.f32 %v839, %v1232
      %1234 = vmatprep.mubr.bf16.mxu0 %v741
      %1235 = vmatmul.mubr.bf16.gmra.mrb[0].mxu0 %v740
      %v1236 = vpop.f32.mrb[0].mxu0
      %v1237 = vadd.f32 %v835, %v1236
      %v1238 = vpop.f32.mrb[0].mxu0
      %v1239 = vadd.f32 %v839, %v1238
      %v1240 = vpop.f32.mrb[0].mxu0
      %v1241 = vadd.f32 %v835, %v1240
      %v1242 = vpop.f32.mrb[0].mxu0
      %v1243 = vadd.f32 %v839, %v1242
      %1244 = vmatprep.mubr.bf16.mxu0 %v743
      %1245 = vmatmul.mubr.bf16.gmra.mrb[0].mxu0 %v742
      %v1246 = vpop.f32.mrb[0].mxu0
      %v1247 = vadd.f32 %v835, %v1246
      %v1248 = vpop.f32.mrb[0].mxu0
      %v1249 = vadd.f32 %v839, %v1248
      %v1250 = vpop.f32.mrb[0].mxu0
      %v1251 = vadd.f32 %v835, %v1250
      %v1252 = vpop.f32.mrb[0].mxu0
      %v1253 = vadd.f32 %v839, %v1252
      %1254 = vmatprep.mubr.bf16.mxu0 %v745
      %1255 = vmatmul.mubr.bf16.gmra.mrb[0].mxu0 %v744
      %v1256 = vpop.f32.mrb[0].mxu0
      %v1257 = vadd.f32 %v835, %v1256
      %v1258 = vpop.f32.mrb[0].mxu0
      %v1259 = vadd.f32 %v839, %v1258
      %v1260 = vpop.f32.mrb[0].mxu0
      %v1261 = vadd.f32 %v835, %v1260
      %v1262 = vpop.f32.mrb[0].mxu0
      %v1263 = vadd.f32 %v839, %v1262
      %1264 = vmatprep.mubr.bf16.mxu0 %v747
      %1265 = vmatmul.mubr.bf16.gmra.mrb[0].mxu0 %v746
      %v1266 = vpop.f32.mrb[0].mxu0
      %v1267 = vadd.f32 %v835, %v1266
      %v1268 = vpop.f32.mrb[0].mxu0
      %v1269 = vadd.f32 %v839, %v1268
      %v1270 = vpop.f32.mrb[0].mxu0
      %v1271 = vadd.f32 %v835, %v1270
      %v1272 = vpop.f32.mrb[0].mxu0
      %v1273 = vadd.f32 %v839, %v1272
      %1274 = vmatprep.mubr.bf16.mxu0 %v749
      %1275 = vmatmul.mubr.bf16.gmra.mrb[0].mxu0 %v748
      %v1276 = vpop.f32.mrb[0].mxu0
      %v1277 = vadd.f32 %v835, %v1276
      %v1278 = vpop.f32.mrb[0].mxu0
      %v1279 = vadd.f32 %v839, %v1278
      %v1280 = vpop.f32.mrb[0].mxu0
      %v1281 = vadd.f32 %v835, %v1280
      %v1282 = vpop.f32.mrb[0].mxu0
      %v1283 = vadd.f32 %v839, %v1282
      %1284 = vmatprep.mubr.bf16.mxu0 %v751
      %1285 = vmatmul.mubr.bf16.gmra.mrb[0].mxu0 %v750
      %v1286 = vpop.f32.mrb[0].mxu0
      %v1287 = vadd.f32 %v835, %v1286
      %v1288 = vpop.f32.mrb[0].mxu0
      %v1289 = vadd.f32 %v839, %v1288
      %v1290 = vpop.f32.mrb[0].mxu0
      %v1291 = vadd.f32 %v835, %v1290
      %v1292 = vpop.f32.mrb[0].mxu0
      %v1293 = vadd.f32 %v839, %v1292
      %1294 = vmatprep.mubr.bf16.mxu0 %v753
      %1295 = vmatmul.mubr.bf16.gmra.mrb[0].mxu0 %v752
      %v1296 = vpop.f32.mrb[0].mxu0
      %v1297 = vadd.f32 %v835, %v1296
      %v1298 = vpop.f32.mrb[0].mxu0
      %v1299 = vadd.f32 %v839, %v1298
      %v1300 = vpop.f32.mrb[0].mxu0
      %v1301 = vadd.f32 %v835, %v1300
      %v1302 = vpop.f32.mrb[0].mxu0
      %v1303 = vadd.f32 %v839, %v1302
      %1304 = vmatprep.mubr.bf16.mxu0 %v755
      %1305 = vmatmul.mubr.bf16.gmra.mrb[0].mxu0 %v754
      %v1306 = vpop.f32.mrb[0].mxu0
      %v1307 = vadd.f32 %v835, %v1306
      %v1308 = vpop.f32.mrb[0].mxu0
      %v1309 = vadd.f32 %v839, %v1308
      %v1310 = vpop.f32.mrb[0].mxu0
      %v1311 = vadd.f32 %v835, %v1310
      %v1312 = vpop.f32.mrb[0].mxu0
      %v1313 = vadd.f32 %v839, %v1312
      %1314 = vmatprep.mubr.bf16.mxu0 %v757
      %1315 = vmatmul.mubr.bf16.gmra.mrb[0].mxu0 %v756
      %v1316 = vpop.f32.mrb[0].mxu0
      %v1317 = vadd.f32 %v835, %v1316
      %v1318 = vpop.f32.mrb[0].mxu0
      %v1319 = vadd.f32 %v839, %v1318
      %v1320 = vpop.f32.mrb[0].mxu0
      %v1321 = vadd.f32 %v835, %v1320
      %v1322 = vpop.f32.mrb[0].mxu0
      %v1323 = vadd.f32 %v839, %v1322
      %1324 = vmatprep.mubr.bf16.mxu0 %v759
      %1325 = vmatmul.mubr.bf16.gmra.mrb[0].mxu0 %v758
      %v1326 = vpop.f32.mrb[0].mxu0
      %v1327 = vadd.f32 %v835, %v1326
      %v1328 = vpop.f32.mrb[0].mxu0
      %v1329 = vadd.f32 %v839, %v1328
      %v1330 = vpop.f32.mrb[0].mxu0
      %v1331 = vadd.f32 %v835, %v1330
      %v1332 = vpop.f32.mrb[0].mxu0
      %v1333 = vadd.f32 %v839, %v1332
      %1334 = vmatprep.mubr.bf16.mxu0 %v761
      %1335 = vmatmul.mubr.bf16.gmra.mrb[0].mxu0 %v760
      %v1336 = vpop.f32.mrb[0].mxu0
      %v1337 = vadd.f32 %v835, %v1336
      %v1338 = vpop.f32.mrb[0].mxu0
      %v1339 = vadd.f32 %v839, %v1338
      %v1340 = vpop.f32.mrb[0].mxu0
      %v1341 = vadd.f32 %v835, %v1340
      %v1342 = vpop.f32.mrb[0].mxu0
      %v1343 = vadd.f32 %v839, %v1342
      %1344 = vmatprep.mubr.bf16.mxu0 %v763
      %1345 = vmatmul.mubr.bf16.gmra.mrb[0].mxu0 %v762
      %v1346 = vpop.f32.mrb[0].mxu0
      %v1347 = vadd.f32 %v835, %v1346
      %v1348 = vpop.f32.mrb[0].mxu0
      %v1349 = vadd.f32 %v839, %v1348
      %v1350 = vpop.f32.mrb[0].mxu0
      %v1351 = vadd.f32 %v835, %v1350
      %v1352 = vpop.f32.mrb[0].mxu0
      %v1353 = vadd.f32 %v839, %v1352
      %1354 = vmatprep.mubr.bf16.mxu0 %v765
      %1355 = vmatmul.mubr.bf16.gmra.mrb[0].mxu0 %v764
      %v1356 = vpop.f32.mrb[0].mxu0
      %v1357 = vadd.f32 %v835, %v1356
      %v1358 = vpop.f32.mrb[0].mxu0
      %v1359 = vadd.f32 %v839, %v1358
      %v1360 = vpop.f32.mrb[0].mxu0
      %v1361 = vadd.f32 %v835, %v1360
      %v1362 = vpop.f32.mrb[0].mxu0
      %v1363 = vadd.f32 %v839, %v1362
      %1364 = vdwg.mxu0
      %1365 = vmatprep.subr.bf16.mxu0 %v1047
      %1366 = vmatpush1.bf16.msra.mxu0 %v1046
      %1367 = vmatprep.subr.bf16.mxu0 %v1051
      %1368 = vmatpush1.bf16.msra.mxu0 %v1050
      %1369 = vmatprep.subr.bf16.mxu0 %v1055
      %1370 = vmatpush1.bf16.msra.mxu0 %v1054
      %1371 = vmatprep.subr.bf16.mxu0 %v1059
      %1372 = vmatpush1.bf16.msra.mxu0 %v1058
      %1373 = vmatprep.subr.bf16.mxu0 %v1063
      %1374 = vmatpush1.bf16.msra.mxu0 %v1062
      %1375 = vmatprep.subr.bf16.mxu0 %v1067
      %1376 = vmatpush1.bf16.msra.mxu0 %v1066
      %1377 = vmatprep.subr.bf16.mxu0 %v1071
      %1378 = vmatpush1.bf16.msra.mxu0 %v1070
      %1379 = vmatprep.subr.bf16.mxu0 %v1075
      %1380 = vmatpush1.bf16.msra.mxu0 %v1074
      %1381 = vmatprep.subr.bf16.mxu0 %v1079
      %1382 = vmatpush1.bf16.msra.mxu0 %v1078
      %1383 = vmatprep.subr.bf16.mxu0 %v1083
      %1384 = vmatpush1.bf16.msra.mxu0 %v1082
      %1385 = vmatprep.subr.bf16.mxu0 %v1087
      %1386 = vmatpush1.bf16.msra.mxu0 %v1086
      %1387 = vmatprep.subr.bf16.mxu0 %v1091
      %1388 = vmatpush1.bf16.msra.mxu0 %v1090
      %1389 = vmatprep.subr.bf16.mxu0 %v1095
      %1390 = vmatpush1.bf16.msra.mxu0 %v1094
      %1391 = vmatprep.subr.bf16.mxu0 %v1099
      %1392 = vmatpush1.bf16.msra.mxu0 %v1098
      %1393 = vmatprep.subr.bf16.mxu0 %v1103
      %1394 = vmatpush1.bf16.msra.mxu0 %v1102
      %1395 = vmatprep.subr.bf16.mxu0 %v1107
      %1396 = vmatpush1.bf16.msra.mxu0 %v1106
      %1397 = vmatprep.mubr.bf16.mxu0 %v735
      %1398 = vmatmul.mubr.bf16.gmra.mrb[0].mxu0 %v734
      %v1399 = vpop.f32.mrb[0].mxu0
      %v1400 = vadd.f32 %v843, %v1399
      %v1401 = vpop.f32.mrb[0].mxu0
      %v1402 = vadd.f32 %v847, %v1401
      %v1403 = vpop.f32.mrb[0].mxu0
      %v1404 = vadd.f32 %v843, %v1403
      %v1405 = vpop.f32.mrb[0].mxu0
      %v1406 = vadd.f32 %v847, %v1405
      %1407 = vmatprep.mubr.bf16.mxu0 %v737
      %1408 = vmatmul.mubr.bf16.gmra.mrb[0].mxu0 %v736
      %v1409 = vpop.f32.mrb[0].mxu0
      %v1410 = vadd.f32 %v843, %v1409
      %v1411 = vpop.f32.mrb[0].mxu0
      %v1412 = vadd.f32 %v847, %v1411
      %v1413 = vpop.f32.mrb[0].mxu0
      %v1414 = vadd.f32 %v843, %v1413
      %v1415 = vpop.f32.mrb[0].mxu0
      %v1416 = vadd.f32 %v847, %v1415
      %1417 = vmatprep.mubr.bf16.mxu0 %v739
      %1418 = vmatmul.mubr.bf16.gmra.mrb[0].mxu0 %v738
      %v1419 = vpop.f32.mrb[0].mxu0
      %v1420 = vadd.f32 %v843, %v1419
      %v1421 = vpop.f32.mrb[0].mxu0
      %v1422 = vadd.f32 %v847, %v1421
      %v1423 = vpop.f32.mrb[0].mxu0
      %v1424 = vadd.f32 %v843, %v1423
      %v1425 = vpop.f32.mrb[0].mxu0
      %v1426 = vadd.f32 %v847, %v1425
      %1427 = vmatprep.mubr.bf16.mxu0 %v741
      %1428 = vmatmul.mubr.bf16.gmra.mrb[0].mxu0 %v740
      %v1429 = vpop.f32.mrb[0].mxu0
      %v1430 = vadd.f32 %v843, %v1429
      %v1431 = vpop.f32.mrb[0].mxu0
      %v1432 = vadd.f32 %v847, %v1431
      %v1433 = vpop.f32.mrb[0].mxu0
      %v1434 = vadd.f32 %v843, %v1433
      %v1435 = vpop.f32.mrb[0].mxu0
      %v1436 = vadd.f32 %v847, %v1435
      %1437 = vmatprep.mubr.bf16.mxu0 %v743
      %1438 = vmatmul.mubr.bf16.gmra.mrb[0].mxu0 %v742
      %v1439 = vpop.f32.mrb[0].mxu0
      %v1440 = vadd.f32 %v843, %v1439
      %v1441 = vpop.f32.mrb[0].mxu0
      %v1442 = vadd.f32 %v847, %v1441
      %v1443 = vpop.f32.mrb[0].mxu0
      %v1444 = vadd.f32 %v843, %v1443
      %v1445 = vpop.f32.mrb[0].mxu0
      %v1446 = vadd.f32 %v847, %v1445
      %1447 = vmatprep.mubr.bf16.mxu0 %v745
      %1448 = vmatmul.mubr.bf16.gmra.mrb[0].mxu0 %v744
      %v1449 = vpop.f32.mrb[0].mxu0
      %v1450 = vadd.f32 %v843, %v1449
      %v1451 = vpop.f32.mrb[0].mxu0
      %v1452 = vadd.f32 %v847, %v1451
      %v1453 = vpop.f32.mrb[0].mxu0
      %v1454 = vadd.f32 %v843, %v1453
      %v1455 = vpop.f32.mrb[0].mxu0
      %v1456 = vadd.f32 %v847, %v1455
      %1457 = vmatprep.mubr.bf16.mxu0 %v747
      %1458 = vmatmul.mubr.bf16.gmra.mrb[0].mxu0 %v746
      %v1459 = vpop.f32.mrb[0].mxu0
      %v1460 = vadd.f32 %v843, %v1459
      %v1461 = vpop.f32.mrb[0].mxu0
      %v1462 = vadd.f32 %v847, %v1461
      %v1463 = vpop.f32.mrb[0].mxu0
      %v1464 = vadd.f32 %v843, %v1463
      %v1465 = vpop.f32.mrb[0].mxu0
      %v1466 = vadd.f32 %v847, %v1465
      %1467 = vmatprep.mubr.bf16.mxu0 %v749
      %1468 = vmatmul.mubr.bf16.gmra.mrb[0].mxu0 %v748
      %v1469 = vpop.f32.mrb[0].mxu0
      %v1470 = vadd.f32 %v843, %v1469
      %v1471 = vpop.f32.mrb[0].mxu0
      %v1472 = vadd.f32 %v847, %v1471
      %v1473 = vpop.f32.mrb[0].mxu0
      %v1474 = vadd.f32 %v843, %v1473
      %v1475 = vpop.f32.mrb[0].mxu0
      %v1476 = vadd.f32 %v847, %v1475
      %1477 = vmatprep.mubr.bf16.mxu0 %v751
      %1478 = vmatmul.mubr.bf16.gmra.mrb[0].mxu0 %v750
      %v1479 = vpop.f32.mrb[0].mxu0
      %v1480 = vadd.f32 %v843, %v1479
      %v1481 = vpop.f32.mrb[0].mxu0
      %v1482 = vadd.f32 %v847, %v1481
      %v1483 = vpop.f32.mrb[0].mxu0
      %v1484 = vadd.f32 %v843, %v1483
      %v1485 = vpop.f32.mrb[0].mxu0
      %v1486 = vadd.f32 %v847, %v1485
      %1487 = vmatprep.mubr.bf16.mxu0 %v753
      %1488 = vmatmul.mubr.bf16.gmra.mrb[0].mxu0 %v752
      %v1489 = vpop.f32.mrb[0].mxu0
      %v1490 = vadd.f32 %v843, %v1489
      %v1491 = vpop.f32.mrb[0].mxu0
      %v1492 = vadd.f32 %v847, %v1491
      %v1493 = vpop.f32.mrb[0].mxu0
      %v1494 = vadd.f32 %v843, %v1493
      %v1495 = vpop.f32.mrb[0].mxu0
      %v1496 = vadd.f32 %v847, %v1495
      %1497 = vmatprep.mubr.bf16.mxu0 %v755
      %1498 = vmatmul.mubr.bf16.gmra.mrb[0].mxu0 %v754
      %v1499 = vpop.f32.mrb[0].mxu0
      %v1500 = vadd.f32 %v843, %v1499
      %v1501 = vpop.f32.mrb[0].mxu0
      %v1502 = vadd.f32 %v847, %v1501
      %v1503 = vpop.f32.mrb[0].mxu0
      %v1504 = vadd.f32 %v843, %v1503
      %v1505 = vpop.f32.mrb[0].mxu0
      %v1506 = vadd.f32 %v847, %v1505
      %1507 = vmatprep.mubr.bf16.mxu0 %v757
      %1508 = vmatmul.mubr.bf16.gmra.mrb[0].mxu0 %v756
      %v1509 = vpop.f32.mrb[0].mxu0
      %v1510 = vadd.f32 %v843, %v1509
      %v1511 = vpop.f32.mrb[0].mxu0
      %v1512 = vadd.f32 %v847, %v1511
      %v1513 = vpop.f32.mrb[0].mxu0
      %v1514 = vadd.f32 %v843, %v1513
      %v1515 = vpop.f32.mrb[0].mxu0
      %v1516 = vadd.f32 %v847, %v1515
      %1517 = vmatprep.mubr.bf16.mxu0 %v759
      %1518 = vmatmul.mubr.bf16.gmra.mrb[0].mxu0 %v758
      %v1519 = vpop.f32.mrb[0].mxu0
      %v1520 = vadd.f32 %v843, %v1519
      %v1521 = vpop.f32.mrb[0].mxu0
      %v1522 = vadd.f32 %v847, %v1521
      %v1523 = vpop.f32.mrb[0].mxu0
      %v1524 = vadd.f32 %v843, %v1523
      %v1525 = vpop.f32.mrb[0].mxu0
      %v1526 = vadd.f32 %v847, %v1525
      %1527 = vmatprep.mubr.bf16.mxu0 %v761
      %1528 = vmatmul.mubr.bf16.gmra.mrb[0].mxu0 %v760
      %v1529 = vpop.f32.mrb[0].mxu0
      %v1530 = vadd.f32 %v843, %v1529
      %v1531 = vpop.f32.mrb[0].mxu0
      %v1532 = vadd.f32 %v847, %v1531
      %v1533 = vpop.f32.mrb[0].mxu0
      %v1534 = vadd.f32 %v843, %v1533
      %v1535 = vpop.f32.mrb[0].mxu0
      %v1536 = vadd.f32 %v847, %v1535
      %1537 = vmatprep.mubr.bf16.mxu0 %v763
      %1538 = vmatmul.mubr.bf16.gmra.mrb[0].mxu0 %v762
      %v1539 = vpop.f32.mrb[0].mxu0
      %v1540 = vadd.f32 %v843, %v1539
      %v1541 = vpop.f32.mrb[0].mxu0
      %v1542 = vadd.f32 %v847, %v1541
      %v1543 = vpop.f32.mrb[0].mxu0
      %v1544 = vadd.f32 %v843, %v1543
      %v1545 = vpop.f32.mrb[0].mxu0
      %v1546 = vadd.f32 %v847, %v1545
      %1547 = vmatprep.mubr.bf16.mxu0 %v765
      %1548 = vmatmul.mubr.bf16.gmra.mrb[0].mxu0 %v764
      %v1549 = vpop.f32.mrb[0].mxu0
      %v1550 = vadd.f32 %v843, %v1549
      %v1551 = vpop.f32.mrb[0].mxu0
      %v1552 = vadd.f32 %v847, %v1551
      %v1553 = vpop.f32.mrb[0].mxu0
      %v1554 = vadd.f32 %v843, %v1553
      %v1555 = vpop.f32.mrb[0].mxu0
      %v1556 = vadd.f32 %v847, %v1555
      %1557 = vdwg.mxu0
      %v1558 = vmax.f32 %v1207, 0.0
      %v1559 = vmax.f32 %v1209, 0.0
      %v1560 = vmax.f32 %v1400, 0.0
      %v1561 = vmax.f32 %v1402, 0.0
      %v1562 = vmax.f32 %v1211, 0.0
      %v1563 = vmax.f32 %v1213, 0.0
      %v1564 = vmax.f32 %v1404, 0.0
      %v1565 = vmax.f32 %v1406, 0.0
      %v1566 = vmax.f32 %v1217, 0.0
      %v1567 = vmax.f32 %v1219, 0.0
      %v1568 = vmax.f32 %v1410, 0.0
      %v1569 = vmax.f32 %v1412, 0.0
      %v1570 = vmax.f32 %v1221, 0.0
      %v1571 = vmax.f32 %v1223, 0.0
      %v1572 = vmax.f32 %v1414, 0.0
      %v1573 = vmax.f32 %v1416, 0.0
      %v1574 = vmax.f32 %v1227, 0.0
      %v1575 = vmax.f32 %v1229, 0.0
      %v1576 = vmax.f32 %v1420, 0.0
      %v1577 = vmax.f32 %v1422, 0.0
      %v1578 = vmax.f32 %v1231, 0.0
      %v1579 = vmax.f32 %v1233, 0.0
      %v1580 = vmax.f32 %v1424, 0.0
      %v1581 = vmax.f32 %v1426, 0.0
      %v1582 = vmax.f32 %v1237, 0.0
      %v1583 = vmax.f32 %v1239, 0.0
      %v1584 = vmax.f32 %v1430, 0.0
      %v1585 = vmax.f32 %v1432, 0.0
      %v1586 = vmax.f32 %v1241, 0.0
      %v1587 = vmax.f32 %v1243, 0.0
      %v1588 = vmax.f32 %v1434, 0.0
      %v1589 = vmax.f32 %v1436, 0.0
      %v1590 = vmax.f32 %v1247, 0.0
      %v1591 = vmax.f32 %v1249, 0.0
      %v1592 = vmax.f32 %v1440, 0.0
      %v1593 = vmax.f32 %v1442, 0.0
      %v1594 = vmax.f32 %v1251, 0.0
      %v1595 = vmax.f32 %v1253, 0.0
      %v1596 = vmax.f32 %v1444, 0.0
      %v1597 = vmax.f32 %v1446, 0.0
      %v1598 = vmax.f32 %v1257, 0.0
      %v1599 = vmax.f32 %v1259, 0.0
      %v1600 = vmax.f32 %v1450, 0.0
      %v1601 = vmax.f32 %v1452, 0.0
      %v1602 = vmax.f32 %v1261, 0.0
      %v1603 = vmax.f32 %v1263, 0.0
      %v1604 = vmax.f32 %v1454, 0.0
      %v1605 = vmax.f32 %v1456, 0.0
      %v1606 = vmax.f32 %v1267, 0.0
      %v1607 = vmax.f32 %v1269, 0.0
      %v1608 = vmax.f32 %v1460, 0.0
      %v1609 = vmax.f32 %v1462, 0.0
      %v1610 = vmax.f32 %v1271, 0.0
      %v1611 = vmax.f32 %v1273, 0.0
      %v1612 = vmax.f32 %v1464, 0.0
      %v1613 = vmax.f32 %v1466, 0.0
      %v1614 = vmax.f32 %v1277, 0.0
      %v1615 = vmax.f32 %v1279, 0.0
      %v1616 = vmax.f32 %v1470, 0.0
      %v1617 = vmax.f32 %v1472, 0.0
      %v1618 = vmax.f32 %v1281, 0.0
      %v1619 = vmax.f32 %v1283, 0.0
      %v1620 = vmax.f32 %v1474, 0.0
      %v1621 = vmax.f32 %v1476, 0.0
      %v1622 = vmax.f32 %v1287, 0.0
      %v1623 = vmax.f32 %v1289, 0.0
      %v1624 = vmax.f32 %v1480, 0.0
      %v1625 = vmax.f32 %v1482, 0.0
      %v1626 = vmax.f32 %v1291, 0.0
      %v1627 = vmax.f32 %v1293, 0.0
      %v1628 = vmax.f32 %v1484, 0.0
      %v1629 = vmax.f32 %v1486, 0.0
      %v1630 = vmax.f32 %v1297, 0.0
      %v1631 = vmax.f32 %v1299, 0.0
      %v1632 = vmax.f32 %v1490, 0.0
      %v1633 = vmax.f32 %v1492, 0.0
      %v1634 = vmax.f32 %v1301, 0.0
      %v1635 = vmax.f32 %v1303, 0.0
      %v1636 = vmax.f32 %v1494, 0.0
      %v1637 = vmax.f32 %v1496, 0.0
      %v1638 = vmax.f32 %v1307, 0.0
      %v1639 = vmax.f32 %v1309, 0.0
      %v1640 = vmax.f32 %v1500, 0.0
      %v1641 = vmax.f32 %v1502, 0.0
      %v1642 = vmax.f32 %v1311, 0.0
      %v1643 = vmax.f32 %v1313, 0.0
      %v1644 = vmax.f32 %v1504, 0.0
      %v1645 = vmax.f32 %v1506, 0.0
      %v1646 = vmax.f32 %v1317, 0.0
      %v1647 = vmax.f32 %v1319, 0.0
      %v1648 = vmax.f32 %v1510, 0.0
      %v1649 = vmax.f32 %v1512, 0.0
      %v1650 = vmax.f32 %v1321, 0.0
      %v1651 = vmax.f32 %v1323, 0.0
      %v1652 = vmax.f32 %v1514, 0.0
      %v1653 = vmax.f32 %v1516, 0.0
      %v1654 = vmax.f32 %v1327, 0.0
      %v1655 = vmax.f32 %v1329, 0.0
      %v1656 = vmax.f32 %v1520, 0.0
      %v1657 = vmax.f32 %v1522, 0.0
      %v1658 = vmax.f32 %v1331, 0.0
      %v1659 = vmax.f32 %v1333, 0.0
      %v1660 = vmax.f32 %v1524, 0.0
      %v1661 = vmax.f32 %v1526, 0.0
      %v1662 = vmax.f32 %v1337, 0.0
      %v1663 = vmax.f32 %v1339, 0.0
      %v1664 = vmax.f32 %v1530, 0.0
      %v1665 = vmax.f32 %v1532, 0.0
      %v1666 = vmax.f32 %v1341, 0.0
      %v1667 = vmax.f32 %v1343, 0.0
      %v1668 = vmax.f32 %v1534, 0.0
      %v1669 = vmax.f32 %v1536, 0.0
      %v1670 = vmax.f32 %v1347, 0.0
      %v1671 = vmax.f32 %v1349, 0.0
      %v1672 = vmax.f32 %v1540, 0.0
      %v1673 = vmax.f32 %v1542, 0.0
      %v1674 = vmax.f32 %v1351, 0.0
      %v1675 = vmax.f32 %v1353, 0.0
      %v1676 = vmax.f32 %v1544, 0.0
      %v1677 = vmax.f32 %v1546, 0.0
      %v1678 = vmax.f32 %v1357, 0.0
      %v1679 = vmax.f32 %v1359, 0.0
      %v1680 = vmax.f32 %v1550, 0.0
      %v1681 = vmax.f32 %v1552, 0.0
      %v1682 = vmax.f32 %v1361, 0.0
      %v1683 = vmax.f32 %v1363, 0.0
      %v1684 = vmax.f32 %v1554, 0.0
      %v1685 = vmax.f32 %v1556, 0.0
      %v1686 = vpack.c.bf16 %v1562, %v1558
      %v1687 = vpack.c.bf16 %v1563, %v1559
      %v1688 = vpack.c.bf16 %v1564, %v1560
      %v1689 = vpack.c.bf16 %v1565, %v1561
      %v1690 = vpack.c.bf16 %v1570, %v1566
      %v1691 = vpack.c.bf16 %v1571, %v1567
      %v1692 = vpack.c.bf16 %v1572, %v1568
      %v1693 = vpack.c.bf16 %v1573, %v1569
      %v1694 = vpack.c.bf16 %v1578, %v1574
      %v1695 = vpack.c.bf16 %v1579, %v1575
      %v1696 = vpack.c.bf16 %v1580, %v1576
      %v1697 = vpack.c.bf16 %v1581, %v1577
      %v1698 = vpack.c.bf16 %v1586, %v1582
      %v1699 = vpack.c.bf16 %v1587, %v1583
      %v1700 = vpack.c.bf16 %v1588, %v1584
      %v1701 = vpack.c.bf16 %v1589, %v1585
      %v1702 = vpack.c.bf16 %v1594, %v1590
      %v1703 = vpack.c.bf16 %v1595, %v1591
      %v1704 = vpack.c.bf16 %v1596, %v1592
      %v1705 = vpack.c.bf16 %v1597, %v1593
      %v1706 = vpack.c.bf16 %v1602, %v1598
      %v1707 = vpack.c.bf16 %v1603, %v1599
      %v1708 = vpack.c.bf16 %v1604, %v1600
      %v1709 = vpack.c.bf16 %v1605, %v1601
      %v1710 = vpack.c.bf16 %v1610, %v1606
      %v1711 = vpack.c.bf16 %v1611, %v1607
      %v1712 = vpack.c.bf16 %v1612, %v1608
      %v1713 = vpack.c.bf16 %v1613, %v1609
      %v1714 = vpack.c.bf16 %v1618, %v1614
      %v1715 = vpack.c.bf16 %v1619, %v1615
      %v1716 = vpack.c.bf16 %v1620, %v1616
      %v1717 = vpack.c.bf16 %v1621, %v1617
      %v1718 = vpack.c.bf16 %v1626, %v1622
      %v1719 = vpack.c.bf16 %v1627, %v1623
      %v1720 = vpack.c.bf16 %v1628, %v1624
      %v1721 = vpack.c.bf16 %v1629, %v1625
      %v1722 = vpack.c.bf16 %v1634, %v1630
      %v1723 = vpack.c.bf16 %v1635, %v1631
      %v1724 = vpack.c.bf16 %v1636, %v1632
      %v1725 = vpack.c.bf16 %v1637, %v1633
      %v1726 = vpack.c.bf16 %v1642, %v1638
      %v1727 = vpack.c.bf16 %v1643, %v1639
      %v1728 = vpack.c.bf16 %v1644, %v1640
      %v1729 = vpack.c.bf16 %v1645, %v1641
      %v1730 = vpack.c.bf16 %v1650, %v1646
      %v1731 = vpack.c.bf16 %v1651, %v1647
      %v1732 = vpack.c.bf16 %v1652, %v1648
      %v1733 = vpack.c.bf16 %v1653, %v1649
      %v1734 = vpack.c.bf16 %v1658, %v1654
      %v1735 = vpack.c.bf16 %v1659, %v1655
      %v1736 = vpack.c.bf16 %v1660, %v1656
      %v1737 = vpack.c.bf16 %v1661, %v1657
      %v1738 = vpack.c.bf16 %v1666, %v1662
      %v1739 = vpack.c.bf16 %v1667, %v1663
      %v1740 = vpack.c.bf16 %v1668, %v1664
      %v1741 = vpack.c.bf16 %v1669, %v1665
      %v1742 = vpack.c.bf16 %v1674, %v1670
      %v1743 = vpack.c.bf16 %v1675, %v1671
      %v1744 = vpack.c.bf16 %v1676, %v1672
      %v1745 = vpack.c.bf16 %v1677, %v1673
      %v1746 = vpack.c.bf16 %v1682, %v1678
      %v1747 = vpack.c.bf16 %v1683, %v1679
      %v1748 = vpack.c.bf16 %v1684, %v1680
      %v1749 = vpack.c.bf16 %v1685, %v1681
      %v1750 = vld [vmem:[%s3] sm:$0xff]
      %v1751 = vld [vmem:[%s3 + $0x8] sm:$0xff]
      %v1752 = vld [vmem:[%s3 + $0x10] sm:$0xff]
      %v1753 = vld [vmem:[%s3 + $0x18] sm:$0xff]
      %v1754 = vld [vmem:[%s3 + $0x20] sm:$0xff]
      %v1755 = vld [vmem:[%s3 + $0x28] sm:$0xff]
      %v1756 = vld [vmem:[%s3 + $0x30] sm:$0xff]
      %v1757 = vld [vmem:[%s3 + $0x38] sm:$0xff]
      %v1758 = vld [vmem:[%s3 + $0x40] sm:$0xff]
      %v1759 = vld [vmem:[%s3 + $0x48] sm:$0xff]
      %v1760 = vld [vmem:[%s3 + $0x50] sm:$0xff]
      %v1761 = vld [vmem:[%s3 + $0x58] sm:$0xff]
      %v1762 = vld [vmem:[%s3 + $0x60] sm:$0xff]
      %v1763 = vld [vmem:[%s3 + $0x68] sm:$0xff]
      %v1764 = vld [vmem:[%s3 + $0x70] sm:$0xff]
      %v1765 = vld [vmem:[%s3 + $0x78] sm:$0xff]
      %v1766 = vld [vmem:[%s3 + $0x80] sm:$0xff]
      %v1767 = vld [vmem:[%s3 + $0x88] sm:$0xff]
      %v1768 = vld [vmem:[%s3 + $0x90] sm:$0xff]
      %v1769 = vld [vmem:[%s3 + $0x98] sm:$0xff]
      %v1770 = vld [vmem:[%s3 + $0xa0] sm:$0xff]
      %v1771 = vld [vmem:[%s3 + $0xa8] sm:$0xff]
      %v1772 = vld [vmem:[%s3 + $0xb0] sm:$0xff]
      %v1773 = vld [vmem:[%s3 + $0xb8] sm:$0xff]
      %v1774 = vld [vmem:[%s3 + $0xc0] sm:$0xff]
      %v1775 = vld [vmem:[%s3 + $0xc8] sm:$0xff]
      %v1776 = vld [vmem:[%s3 + $0xd0] sm:$0xff]
      %v1777 = vld [vmem:[%s3 + $0xd8] sm:$0xff]
      %v1778 = vld [vmem:[%s3 + $0xe0] sm:$0xff]
      %v1779 = vld [vmem:[%s3 + $0xe8] sm:$0xff]
      %v1780 = vld [vmem:[%s3 + $0xf0] sm:$0xff]
      %v1781 = vld [vmem:[%s3 + $0xf8] sm:$0xff]
      %v1782 = vld [vmem:[%s3 + $0x100] sm:$0xff]
      %v1783 = vld [vmem:[%s3 + $0x108] sm:$0xff]
      %v1784 = vld [vmem:[%s3 + $0x110] sm:$0xff]
      %v1785 = vld [vmem:[%s3 + $0x118] sm:$0xff]
      %v1786 = vld [vmem:[%s3 + $0x120] sm:$0xff]
      %v1787 = vld [vmem:[%s3 + $0x128] sm:$0xff]
      %v1788 = vld [vmem:[%s3 + $0x130] sm:$0xff]
      %v1789 = vld [vmem:[%s3 + $0x138] sm:$0xff]
      %v1790 = vld [vmem:[%s3 + $0x140] sm:$0xff]
      %v1791 = vld [vmem:[%s3 + $0x148] sm:$0xff]
      %v1792 = vld [vmem:[%s3 + $0x150] sm:$0xff]
      %v1793 = vld [vmem:[%s3 + $0x158] sm:$0xff]
      %v1794 = vld [vmem:[%s3 + $0x160] sm:$0xff]
      %v1795 = vld [vmem:[%s3 + $0x168] sm:$0xff]
      %v1796 = vld [vmem:[%s3 + $0x170] sm:$0xff]
      %v1797 = vld [vmem:[%s3 + $0x178] sm:$0xff]
      %v1798 = vld [vmem:[%s3 + $0x180] sm:$0xff]
      %v1799 = vld [vmem:[%s3 + $0x188] sm:$0xff]
      %v1800 = vld [vmem:[%s3 + $0x190] sm:$0xff]
      %v1801 = vld [vmem:[%s3 + $0x198] sm:$0xff]
      %v1802 = vld [vmem:[%s3 + $0x1a0] sm:$0xff]
      %v1803 = vld [vmem:[%s3 + $0x1a8] sm:$0xff]
      %v1804 = vld [vmem:[%s3 + $0x1b0] sm:$0xff]
      %v1805 = vld [vmem:[%s3 + $0x1b8] sm:$0xff]
      %v1806 = vld [vmem:[%s3 + $0x1c0] sm:$0xff]
      %v1807 = vld [vmem:[%s3 + $0x1c8] sm:$0xff]
      %v1808 = vld [vmem:[%s3 + $0x1d0] sm:$0xff]
      %v1809 = vld [vmem:[%s3 + $0x1d8] sm:$0xff]
      %v1810 = vld [vmem:[%s3 + $0x1e0] sm:$0xff]
      %v1811 = vld [vmem:[%s3 + $0x1e8] sm:$0xff]
      %v1812 = vld [vmem:[%s3 + $0x1f0] sm:$0xff]
      %v1813 = vld [vmem:[%s3 + $0x1f8] sm:$0xff]
      %v1814 = vld [vmem:[%s3 + $0x200] sm:$0xff]
      %v1815 = vld [vmem:[%s3 + $0x208] sm:$0xff]
      %v1816 = vld [vmem:[%s3 + $0x210] sm:$0xff]
      %v1817 = vld [vmem:[%s3 + $0x218] sm:$0xff]
      %v1818 = vld [vmem:[%s3 + $0x220] sm:$0xff]
      %v1819 = vld [vmem:[%s3 + $0x228] sm:$0xff]
      %v1820 = vld [vmem:[%s3 + $0x230] sm:$0xff]
      %v1821 = vld [vmem:[%s3 + $0x238] sm:$0xff]
      %v1822 = vld [vmem:[%s3 + $0x240] sm:$0xff]
      %v1823 = vld [vmem:[%s3 + $0x248] sm:$0xff]
      %v1824 = vld [vmem:[%s3 + $0x250] sm:$0xff]
      %v1825 = vld [vmem:[%s3 + $0x258] sm:$0xff]
      %v1826 = vld [vmem:[%s3 + $0x260] sm:$0xff]
      %v1827 = vld [vmem:[%s3 + $0x268] sm:$0xff]
      %v1828 = vld [vmem:[%s3 + $0x270] sm:$0xff]
      %v1829 = vld [vmem:[%s3 + $0x278] sm:$0xff]
      %v1830 = vld [vmem:[%s3 + $0x280] sm:$0xff]
      %v1831 = vld [vmem:[%s3 + $0x288] sm:$0xff]
      %v1832 = vld [vmem:[%s3 + $0x290] sm:$0xff]
      %v1833 = vld [vmem:[%s3 + $0x298] sm:$0xff]
      %v1834 = vld [vmem:[%s3 + $0x2a0] sm:$0xff]
      %v1835 = vld [vmem:[%s3 + $0x2a8] sm:$0xff]
      %v1836 = vld [vmem:[%s3 + $0x2b0] sm:$0xff]
      %v1837 = vld [vmem:[%s3 + $0x2b8] sm:$0xff]
      %v1838 = vld [vmem:[%s3 + $0x2c0] sm:$0xff]
      %v1839 = vld [vmem:[%s3 + $0x2c8] sm:$0xff]
      %v1840 = vld [vmem:[%s3 + $0x2d0] sm:$0xff]
      %v1841 = vld [vmem:[%s3 + $0x2d8] sm:$0xff]
      %v1842 = vld [vmem:[%s3 + $0x2e0] sm:$0xff]
      %v1843 = vld [vmem:[%s3 + $0x2e8] sm:$0xff]
      %v1844 = vld [vmem:[%s3 + $0x2f0] sm:$0xff]
      %v1845 = vld [vmem:[%s3 + $0x2f8] sm:$0xff]
      %v1846 = vld [vmem:[%s3 + $0x300] sm:$0xff]
      %v1847 = vld [vmem:[%s3 + $0x308] sm:$0xff]
      %v1848 = vld [vmem:[%s3 + $0x310] sm:$0xff]
      %v1849 = vld [vmem:[%s3 + $0x318] sm:$0xff]
      %v1850 = vld [vmem:[%s3 + $0x320] sm:$0xff]
      %v1851 = vld [vmem:[%s3 + $0x328] sm:$0xff]
      %v1852 = vld [vmem:[%s3 + $0x330] sm:$0xff]
      %v1853 = vld [vmem:[%s3 + $0x338] sm:$0xff]
      %v1854 = vld [vmem:[%s3 + $0x340] sm:$0xff]
      %v1855 = vld [vmem:[%s3 + $0x348] sm:$0xff]
      %v1856 = vld [vmem:[%s3 + $0x350] sm:$0xff]
      %v1857 = vld [vmem:[%s3 + $0x358] sm:$0xff]
      %v1858 = vld [vmem:[%s3 + $0x360] sm:$0xff]
      %v1859 = vld [vmem:[%s3 + $0x368] sm:$0xff]
      %v1860 = vld [vmem:[%s3 + $0x370] sm:$0xff]
      %v1861 = vld [vmem:[%s3 + $0x378] sm:$0xff]
      %v1862 = vld [vmem:[%s3 + $0x380] sm:$0xff]
      %v1863 = vld [vmem:[%s3 + $0x388] sm:$0xff]
      %v1864 = vld [vmem:[%s3 + $0x390] sm:$0xff]
      %v1865 = vld [vmem:[%s3 + $0x398] sm:$0xff]
      %v1866 = vld [vmem:[%s3 + $0x3a0] sm:$0xff]
      %v1867 = vld [vmem:[%s3 + $0x3a8] sm:$0xff]
      %v1868 = vld [vmem:[%s3 + $0x3b0] sm:$0xff]
      %v1869 = vld [vmem:[%s3 + $0x3b8] sm:$0xff]
      %v1870 = vld [vmem:[%s3 + $0x3c0] sm:$0xff]
      %v1871 = vld [vmem:[%s3 + $0x3c8] sm:$0xff]
      %v1872 = vld [vmem:[%s3 + $0x3d0] sm:$0xff]
      %v1873 = vld [vmem:[%s3 + $0x3d8] sm:$0xff]
      %v1874 = vld [vmem:[%s3 + $0x3e0] sm:$0xff]
      %v1875 = vld [vmem:[%s3 + $0x3e8] sm:$0xff]
      %v1876 = vld [vmem:[%s3 + $0x3f0] sm:$0xff]
      %v1877 = vld [vmem:[%s3 + $0x3f8] sm:$0xff]
      %v1878 = vld [vmem:[%s8 + $0x6] sm:$0xf]
      %v1880 = vlaneseq
      %v1881 = vshrl.u32 %v1880, 7
      %v1882 = vsub.s32 0, %v1881
      %v1883 = vrot.slane %v1878, %v1882
      %v1884 = vlaneseq
      %v1885 = vshrl.u32 %v1884, 7
      %v1886 = vsub.s32 1, %v1885
      %v1887 = vrot.slane %v1878, %v1886
      %v1888 = vlaneseq
      %v1889 = vshrl.u32 %v1888, 7
      %v1890 = vsub.s32 2, %v1889
      %v1891 = vrot.slane %v1878, %v1890
      %v1892 = vlaneseq
      %v1893 = vshrl.u32 %v1892, 7
      %v1894 = vsub.s32 3, %v1893
      %v1895 = vrot.slane %v1878, %v1894
      %v2028 = vunpack.c.l.b16 %v1750
      %v2029 = vunpack.c.h.b16 %v1750
      %v2030 = vunpack.c.l.b16 %v1751
      %v2031 = vunpack.c.h.b16 %v1751
      %v2032 = vunpack.c.l.b16 %v1752
      %v2033 = vunpack.c.h.b16 %v1752
      %v2034 = vunpack.c.l.b16 %v1753
      %v2035 = vunpack.c.h.b16 %v1753
      %v2036 = vunpack.c.l.b16 %v1754
      %v2037 = vunpack.c.h.b16 %v1754
      %v2038 = vunpack.c.l.b16 %v1755
      %v2039 = vunpack.c.h.b16 %v1755
      %v2040 = vunpack.c.l.b16 %v1756
      %v2041 = vunpack.c.h.b16 %v1756
      %v2042 = vunpack.c.l.b16 %v1757
      %v2043 = vunpack.c.h.b16 %v1757
      %v2044 = vunpack.c.l.b16 %v1758
      %v2045 = vunpack.c.h.b16 %v1758
      %v2046 = vunpack.c.l.b16 %v1759
      %v2047 = vunpack.c.h.b16 %v1759
      %v2048 = vunpack.c.l.b16 %v1760
      %v2049 = vunpack.c.h.b16 %v1760
      %v2050 = vunpack.c.l.b16 %v1761
      %v2051 = vunpack.c.h.b16 %v1761
      %v2052 = vunpack.c.l.b16 %v1762
      %v2053 = vunpack.c.h.b16 %v1762
      %v2054 = vunpack.c.l.b16 %v1763
      %v2055 = vunpack.c.h.b16 %v1763
      %v2056 = vunpack.c.l.b16 %v1764
      %v2057 = vunpack.c.h.b16 %v1764
      %v2058 = vunpack.c.l.b16 %v1765
      %v2059 = vunpack.c.h.b16 %v1765
      %v2060 = vunpack.c.l.b16 %v1766
      %v2061 = vunpack.c.h.b16 %v1766
      %v2062 = vunpack.c.l.b16 %v1767
      %v2063 = vunpack.c.h.b16 %v1767
      %v2064 = vunpack.c.l.b16 %v1768
      %v2065 = vunpack.c.h.b16 %v1768
      %v2066 = vunpack.c.l.b16 %v1769
      %v2067 = vunpack.c.h.b16 %v1769
      %v2068 = vunpack.c.l.b16 %v1770
      %v2069 = vunpack.c.h.b16 %v1770
      %v2070 = vunpack.c.l.b16 %v1771
      %v2071 = vunpack.c.h.b16 %v1771
      %v2072 = vunpack.c.l.b16 %v1772
      %v2073 = vunpack.c.h.b16 %v1772
      %v2074 = vunpack.c.l.b16 %v1773
      %v2075 = vunpack.c.h.b16 %v1773
      %v2076 = vunpack.c.l.b16 %v1774
      %v2077 = vunpack.c.h.b16 %v1774
      %v2078 = vunpack.c.l.b16 %v1775
      %v2079 = vunpack.c.h.b16 %v1775
      %v2080 = vunpack.c.l.b16 %v1776
      %v2081 = vunpack.c.h.b16 %v1776
      %v2082 = vunpack.c.l.b16 %v1777
      %v2083 = vunpack.c.h.b16 %v1777
      %v2084 = vunpack.c.l.b16 %v1778
      %v2085 = vunpack.c.h.b16 %v1778
      %v2086 = vunpack.c.l.b16 %v1779
      %v2087 = vunpack.c.h.b16 %v1779
      %v2088 = vunpack.c.l.b16 %v1780
      %v2089 = vunpack.c.h.b16 %v1780
      %v2090 = vunpack.c.l.b16 %v1781
      %v2091 = vunpack.c.h.b16 %v1781
      %v2092 = vunpack.c.l.b16 %v1782
      %v2093 = vunpack.c.h.b16 %v1782
      %v2094 = vunpack.c.l.b16 %v1783
      %v2095 = vunpack.c.h.b16 %v1783
      %v2096 = vunpack.c.l.b16 %v1784
      %v2097 = vunpack.c.h.b16 %v1784
      %v2098 = vunpack.c.l.b16 %v1785
      %v2099 = vunpack.c.h.b16 %v1785
      %v2100 = vunpack.c.l.b16 %v1786
      %v2101 = vunpack.c.h.b16 %v1786
      %v2102 = vunpack.c.l.b16 %v1787
      %v2103 = vunpack.c.h.b16 %v1787
      %v2104 = vunpack.c.l.b16 %v1788
      %v2105 = vunpack.c.h.b16 %v1788
      %v2106 = vunpack.c.l.b16 %v1789
      %v2107 = vunpack.c.h.b16 %v1789
      %v2108 = vunpack.c.l.b16 %v1790
      %v2109 = vunpack.c.h.b16 %v1790
      %v2110 = vunpack.c.l.b16 %v1791
      %v2111 = vunpack.c.h.b16 %v1791
      %v2112 = vunpack.c.l.b16 %v1792
      %v2113 = vunpack.c.h.b16 %v1792
      %v2114 = vunpack.c.l.b16 %v1793
      %v2115 = vunpack.c.h.b16 %v1793
      %v2116 = vunpack.c.l.b16 %v1794
      %v2117 = vunpack.c.h.b16 %v1794
      %v2118 = vunpack.c.l.b16 %v1795
      %v2119 = vunpack.c.h.b16 %v1795
      %v2120 = vunpack.c.l.b16 %v1796
      %v2121 = vunpack.c.h.b16 %v1796
      %v2122 = vunpack.c.l.b16 %v1797
      %v2123 = vunpack.c.h.b16 %v1797
      %v2124 = vunpack.c.l.b16 %v1798
      %v2125 = vunpack.c.h.b16 %v1798
      %v2126 = vunpack.c.l.b16 %v1799
      %v2127 = vunpack.c.h.b16 %v1799
      %v2128 = vunpack.c.l.b16 %v1800
      %v2129 = vunpack.c.h.b16 %v1800
      %v2130 = vunpack.c.l.b16 %v1801
      %v2131 = vunpack.c.h.b16 %v1801
      %v2132 = vunpack.c.l.b16 %v1802
      %v2133 = vunpack.c.h.b16 %v1802
      %v2134 = vunpack.c.l.b16 %v1803
      %v2135 = vunpack.c.h.b16 %v1803
      %v2136 = vunpack.c.l.b16 %v1804
      %v2137 = vunpack.c.h.b16 %v1804
      %v2138 = vunpack.c.l.b16 %v1805
      %v2139 = vunpack.c.h.b16 %v1805
      %v2140 = vunpack.c.l.b16 %v1806
      %v2141 = vunpack.c.h.b16 %v1806
      %v2142 = vunpack.c.l.b16 %v1807
      %v2143 = vunpack.c.h.b16 %v1807
      %v2144 = vunpack.c.l.b16 %v1808
      %v2145 = vunpack.c.h.b16 %v1808
      %v2146 = vunpack.c.l.b16 %v1809
      %v2147 = vunpack.c.h.b16 %v1809
      %v2148 = vunpack.c.l.b16 %v1810
      %v2149 = vunpack.c.h.b16 %v1810
      %v2150 = vunpack.c.l.b16 %v1811
      %v2151 = vunpack.c.h.b16 %v1811
      %v2152 = vunpack.c.l.b16 %v1812
      %v2153 = vunpack.c.h.b16 %v1812
      %v2154 = vunpack.c.l.b16 %v1813
      %v2155 = vunpack.c.h.b16 %v1813
      %v2156 = vunpack.c.l.b16 %v1814
      %v2157 = vunpack.c.h.b16 %v1814
      %v2158 = vunpack.c.l.b16 %v1815
      %v2159 = vunpack.c.h.b16 %v1815
      %v2160 = vunpack.c.l.b16 %v1816
      %v2161 = vunpack.c.h.b16 %v1816
      %v2162 = vunpack.c.l.b16 %v1817
      %v2163 = vunpack.c.h.b16 %v1817
      %v2164 = vunpack.c.l.b16 %v1818
      %v2165 = vunpack.c.h.b16 %v1818
      %v2166 = vunpack.c.l.b16 %v1819
      %v2167 = vunpack.c.h.b16 %v1819
      %v2168 = vunpack.c.l.b16 %v1820
      %v2169 = vunpack.c.h.b16 %v1820
      %v2170 = vunpack.c.l.b16 %v1821
      %v2171 = vunpack.c.h.b16 %v1821
      %v2172 = vunpack.c.l.b16 %v1822
      %v2173 = vunpack.c.h.b16 %v1822
      %v2174 = vunpack.c.l.b16 %v1823
      %v2175 = vunpack.c.h.b16 %v1823
      %v2176 = vunpack.c.l.b16 %v1824
      %v2177 = vunpack.c.h.b16 %v1824
      %v2178 = vunpack.c.l.b16 %v1825
      %v2179 = vunpack.c.h.b16 %v1825
      %v2180 = vunpack.c.l.b16 %v1826
      %v2181 = vunpack.c.h.b16 %v1826
      %v2182 = vunpack.c.l.b16 %v1827
      %v2183 = vunpack.c.h.b16 %v1827
      %v2184 = vunpack.c.l.b16 %v1828
      %v2185 = vunpack.c.h.b16 %v1828
      %v2186 = vunpack.c.l.b16 %v1829
      %v2187 = vunpack.c.h.b16 %v1829
      %v2188 = vunpack.c.l.b16 %v1830
      %v2189 = vunpack.c.h.b16 %v1830
      %v2190 = vunpack.c.l.b16 %v1831
      %v2191 = vunpack.c.h.b16 %v1831
      %v2192 = vunpack.c.l.b16 %v1832
      %v2193 = vunpack.c.h.b16 %v1832
      %v2194 = vunpack.c.l.b16 %v1833
      %v2195 = vunpack.c.h.b16 %v1833
      %v2196 = vunpack.c.l.b16 %v1834
      %v2197 = vunpack.c.h.b16 %v1834
      %v2198 = vunpack.c.l.b16 %v1835
      %v2199 = vunpack.c.h.b16 %v1835
      %v2200 = vunpack.c.l.b16 %v1836
      %v2201 = vunpack.c.h.b16 %v1836
      %v2202 = vunpack.c.l.b16 %v1837
      %v2203 = vunpack.c.h.b16 %v1837
      %v2204 = vunpack.c.l.b16 %v1838
      %v2205 = vunpack.c.h.b16 %v1838
      %v2206 = vunpack.c.l.b16 %v1839
      %v2207 = vunpack.c.h.b16 %v1839
      %v2208 = vunpack.c.l.b16 %v1840
      %v2209 = vunpack.c.h.b16 %v1840
      %v2210 = vunpack.c.l.b16 %v1841
      %v2211 = vunpack.c.h.b16 %v1841
      %v2212 = vunpack.c.l.b16 %v1842
      %v2213 = vunpack.c.h.b16 %v1842
      %v2214 = vunpack.c.l.b16 %v1843
      %v2215 = vunpack.c.h.b16 %v1843
      %v2216 = vunpack.c.l.b16 %v1844
      %v2217 = vunpack.c.h.b16 %v1844
      %v2218 = vunpack.c.l.b16 %v1845
      %v2219 = vunpack.c.h.b16 %v1845
      %v2220 = vunpack.c.l.b16 %v1846
      %v2221 = vunpack.c.h.b16 %v1846
      %v2222 = vunpack.c.l.b16 %v1847
      %v2223 = vunpack.c.h.b16 %v1847
      %v2224 = vunpack.c.l.b16 %v1848
      %v2225 = vunpack.c.h.b16 %v1848
      %v2226 = vunpack.c.l.b16 %v1849
      %v2227 = vunpack.c.h.b16 %v1849
      %v2228 = vunpack.c.l.b16 %v1850
      %v2229 = vunpack.c.h.b16 %v1850
      %v2230 = vunpack.c.l.b16 %v1851
      %v2231 = vunpack.c.h.b16 %v1851
      %v2232 = vunpack.c.l.b16 %v1852
      %v2233 = vunpack.c.h.b16 %v1852
      %v2234 = vunpack.c.l.b16 %v1853
      %v2235 = vunpack.c.h.b16 %v1853
      %v2236 = vunpack.c.l.b16 %v1854
      %v2237 = vunpack.c.h.b16 %v1854
      %v2238 = vunpack.c.l.b16 %v1855
      %v2239 = vunpack.c.h.b16 %v1855
      %v2240 = vunpack.c.l.b16 %v1856
      %v2241 = vunpack.c.h.b16 %v1856
      %v2242 = vunpack.c.l.b16 %v1857
      %v2243 = vunpack.c.h.b16 %v1857
      %v2244 = vunpack.c.l.b16 %v1858
      %v2245 = vunpack.c.h.b16 %v1858
      %v2246 = vunpack.c.l.b16 %v1859
      %v2247 = vunpack.c.h.b16 %v1859
      %v2248 = vunpack.c.l.b16 %v1860
      %v2249 = vunpack.c.h.b16 %v1860
      %v2250 = vunpack.c.l.b16 %v1861
      %v2251 = vunpack.c.h.b16 %v1861
      %v2252 = vunpack.c.l.b16 %v1862
      %v2253 = vunpack.c.h.b16 %v1862
      %v2254 = vunpack.c.l.b16 %v1863
      %v2255 = vunpack.c.h.b16 %v1863
      %v2256 = vunpack.c.l.b16 %v1864
      %v2257 = vunpack.c.h.b16 %v1864
      %v2258 = vunpack.c.l.b16 %v1865
      %v2259 = vunpack.c.h.b16 %v1865
      %v2260 = vunpack.c.l.b16 %v1866
      %v2261 = vunpack.c.h.b16 %v1866
      %v2262 = vunpack.c.l.b16 %v1867
      %v2263 = vunpack.c.h.b16 %v1867
      %v2264 = vunpack.c.l.b16 %v1868
      %v2265 = vunpack.c.h.b16 %v1868
      %v2266 = vunpack.c.l.b16 %v1869
      %v2267 = vunpack.c.h.b16 %v1869
      %v2268 = vunpack.c.l.b16 %v1870
      %v2269 = vunpack.c.h.b16 %v1870
      %v2270 = vunpack.c.l.b16 %v1871
      %v2271 = vunpack.c.h.b16 %v1871
      %v2272 = vunpack.c.l.b16 %v1872
      %v2273 = vunpack.c.h.b16 %v1872
      %v2274 = vunpack.c.l.b16 %v1873
      %v2275 = vunpack.c.h.b16 %v1873
      %v2276 = vunpack.c.l.b16 %v1874
      %v2277 = vunpack.c.h.b16 %v1874
      %v2278 = vunpack.c.l.b16 %v1875
      %v2279 = vunpack.c.h.b16 %v1875
      %v2280 = vunpack.c.l.b16 %v1876
      %v2281 = vunpack.c.h.b16 %v1876
      %v2282 = vunpack.c.l.b16 %v1877
      %v2283 = vunpack.c.h.b16 %v1877
      %v2284 = vpack.c.b16 %v2032, %v2028
      %v2285 = vpack.c.b16 %v2033, %v2029
      %v2286 = vpack.c.b16 %v2034, %v2030
      %v2287 = vpack.c.b16 %v2035, %v2031
      %v2288 = vpack.c.b16 %v2040, %v2036
      %v2289 = vpack.c.b16 %v2041, %v2037
      %v2290 = vpack.c.b16 %v2042, %v2038
      %v2291 = vpack.c.b16 %v2043, %v2039
      %v2292 = vpack.c.b16 %v2048, %v2044
      %v2293 = vpack.c.b16 %v2049, %v2045
      %v2294 = vpack.c.b16 %v2050, %v2046
      %v2295 = vpack.c.b16 %v2051, %v2047
      %v2296 = vpack.c.b16 %v2056, %v2052
      %v2297 = vpack.c.b16 %v2057, %v2053
      %v2298 = vpack.c.b16 %v2058, %v2054
      %v2299 = vpack.c.b16 %v2059, %v2055
      %v2300 = vpack.c.b16 %v2064, %v2060
      %v2301 = vpack.c.b16 %v2065, %v2061
      %v2302 = vpack.c.b16 %v2066, %v2062
      %v2303 = vpack.c.b16 %v2067, %v2063
      %v2304 = vpack.c.b16 %v2072, %v2068
      %v2305 = vpack.c.b16 %v2073, %v2069
      %v2306 = vpack.c.b16 %v2074, %v2070
      %v2307 = vpack.c.b16 %v2075, %v2071
      %v2308 = vpack.c.b16 %v2080, %v2076
      %v2309 = vpack.c.b16 %v2081, %v2077
      %v2310 = vpack.c.b16 %v2082, %v2078
      %v2311 = vpack.c.b16 %v2083, %v2079
      %v2312 = vpack.c.b16 %v2088, %v2084
      %v2313 = vpack.c.b16 %v2089, %v2085
      %v2314 = vpack.c.b16 %v2090, %v2086
      %v2315 = vpack.c.b16 %v2091, %v2087
      %v2316 = vpack.c.b16 %v2096, %v2092
      %v2317 = vpack.c.b16 %v2097, %v2093
      %v2318 = vpack.c.b16 %v2098, %v2094
      %v2319 = vpack.c.b16 %v2099, %v2095
      %v2320 = vpack.c.b16 %v2104, %v2100
      %v2321 = vpack.c.b16 %v2105, %v2101
      %v2322 = vpack.c.b16 %v2106, %v2102
      %v2323 = vpack.c.b16 %v2107, %v2103
      %v2324 = vpack.c.b16 %v2112, %v2108
      %v2325 = vpack.c.b16 %v2113, %v2109
      %v2326 = vpack.c.b16 %v2114, %v2110
      %v2327 = vpack.c.b16 %v2115, %v2111
      %v2328 = vpack.c.b16 %v2120, %v2116
      %v2329 = vpack.c.b16 %v2121, %v2117
      %v2330 = vpack.c.b16 %v2122, %v2118
      %v2331 = vpack.c.b16 %v2123, %v2119
      %v2332 = vpack.c.b16 %v2128, %v2124
      %v2333 = vpack.c.b16 %v2129, %v2125
      %v2334 = vpack.c.b16 %v2130, %v2126
      %v2335 = vpack.c.b16 %v2131, %v2127
      %v2336 = vpack.c.b16 %v2136, %v2132
      %v2337 = vpack.c.b16 %v2137, %v2133
      %v2338 = vpack.c.b16 %v2138, %v2134
      %v2339 = vpack.c.b16 %v2139, %v2135
      %v2340 = vpack.c.b16 %v2144, %v2140
      %v2341 = vpack.c.b16 %v2145, %v2141
      %v2342 = vpack.c.b16 %v2146, %v2142
      %v2343 = vpack.c.b16 %v2147, %v2143
      %v2344 = vpack.c.b16 %v2152, %v2148
      %v2345 = vpack.c.b16 %v2153, %v2149
      %v2346 = vpack.c.b16 %v2154, %v2150
      %v2347 = vpack.c.b16 %v2155, %v2151
      %v2348 = vpack.c.b16 %v2160, %v2156
      %v2349 = vpack.c.b16 %v2161, %v2157
      %v2350 = vpack.c.b16 %v2162, %v2158
      %v2351 = vpack.c.b16 %v2163, %v2159
      %v2352 = vpack.c.b16 %v2168, %v2164
      %v2353 = vpack.c.b16 %v2169, %v2165
      %v2354 = vpack.c.b16 %v2170, %v2166
      %v2355 = vpack.c.b16 %v2171, %v2167
      %v2356 = vpack.c.b16 %v2176, %v2172
      %v2357 = vpack.c.b16 %v2177, %v2173
      %v2358 = vpack.c.b16 %v2178, %v2174
      %v2359 = vpack.c.b16 %v2179, %v2175
      %v2360 = vpack.c.b16 %v2184, %v2180
      %v2361 = vpack.c.b16 %v2185, %v2181
      %v2362 = vpack.c.b16 %v2186, %v2182
      %v2363 = vpack.c.b16 %v2187, %v2183
      %v2364 = vpack.c.b16 %v2192, %v2188
      %v2365 = vpack.c.b16 %v2193, %v2189
      %v2366 = vpack.c.b16 %v2194, %v2190
      %v2367 = vpack.c.b16 %v2195, %v2191
      %v2368 = vpack.c.b16 %v2200, %v2196
      %v2369 = vpack.c.b16 %v2201, %v2197
      %v2370 = vpack.c.b16 %v2202, %v2198
      %v2371 = vpack.c.b16 %v2203, %v2199
      %v2372 = vpack.c.b16 %v2208, %v2204
      %v2373 = vpack.c.b16 %v2209, %v2205
      %v2374 = vpack.c.b16 %v2210, %v2206
      %v2375 = vpack.c.b16 %v2211, %v2207
      %v2376 = vpack.c.b16 %v2216, %v2212
      %v2377 = vpack.c.b16 %v2217, %v2213
      %v2378 = vpack.c.b16 %v2218, %v2214
      %v2379 = vpack.c.b16 %v2219, %v2215
      %v2380 = vpack.c.b16 %v2224, %v2220
      %v2381 = vpack.c.b16 %v2225, %v2221
      %v2382 = vpack.c.b16 %v2226, %v2222
      %v2383 = vpack.c.b16 %v2227, %v2223
      %v2384 = vpack.c.b16 %v2232, %v2228
      %v2385 = vpack.c.b16 %v2233, %v2229
      %v2386 = vpack.c.b16 %v2234, %v2230
      %v2387 = vpack.c.b16 %v2235, %v2231
      %v2388 = vpack.c.b16 %v2240, %v2236
      %v2389 = vpack.c.b16 %v2241, %v2237
      %v2390 = vpack.c.b16 %v2242, %v2238
      %v2391 = vpack.c.b16 %v2243, %v2239
      %v2392 = vpack.c.b16 %v2248, %v2244
      %v2393 = vpack.c.b16 %v2249, %v2245
      %v2394 = vpack.c.b16 %v2250, %v2246
      %v2395 = vpack.c.b16 %v2251, %v2247
      %v2396 = vpack.c.b16 %v2256, %v2252
      %v2397 = vpack.c.b16 %v2257, %v2253
      %v2398 = vpack.c.b16 %v2258, %v2254
      %v2399 = vpack.c.b16 %v2259, %v2255
      %v2400 = vpack.c.b16 %v2264, %v2260
      %v2401 = vpack.c.b16 %v2265, %v2261
      %v2402 = vpack.c.b16 %v2266, %v2262
      %v2403 = vpack.c.b16 %v2267, %v2263
      %v2404 = vpack.c.b16 %v2272, %v2268
      %v2405 = vpack.c.b16 %v2273, %v2269
      %v2406 = vpack.c.b16 %v2274, %v2270
      %v2407 = vpack.c.b16 %v2275, %v2271
      %v2408 = vpack.c.b16 %v2280, %v2276
      %v2409 = vpack.c.b16 %v2281, %v2277
      %v2410 = vpack.c.b16 %v2282, %v2278
      %v2411 = vpack.c.b16 %v2283, %v2279
      %2540 = vmatprep.subr.bf16.mxu0 %v2285
      %2541 = vmatpush1.bf16.msra.mxu0 %v2284
      %2542 = vmatprep.subr.bf16.mxu0 %v2289
      %2543 = vmatpush1.bf16.msra.mxu0 %v2288
      %2544 = vmatprep.subr.bf16.mxu0 %v2293
      %2545 = vmatpush1.bf16.msra.mxu0 %v2292
      %2546 = vmatprep.subr.bf16.mxu0 %v2297
      %2547 = vmatpush1.bf16.msra.mxu0 %v2296
      %2548 = vmatprep.subr.bf16.mxu0 %v2301
      %2549 = vmatpush1.bf16.msra.mxu0 %v2300
      %2550 = vmatprep.subr.bf16.mxu0 %v2305
      %2551 = vmatpush1.bf16.msra.mxu0 %v2304
      %2552 = vmatprep.subr.bf16.mxu0 %v2309
      %2553 = vmatpush1.bf16.msra.mxu0 %v2308
      %2554 = vmatprep.subr.bf16.mxu0 %v2313
      %2555 = vmatpush1.bf16.msra.mxu0 %v2312
      %2556 = vmatprep.subr.bf16.mxu0 %v2317
      %2557 = vmatpush1.bf16.msra.mxu0 %v2316
      %2558 = vmatprep.subr.bf16.mxu0 %v2321
      %2559 = vmatpush1.bf16.msra.mxu0 %v2320
      %2560 = vmatprep.subr.bf16.mxu0 %v2325
      %2561 = vmatpush1.bf16.msra.mxu0 %v2324
      %2562 = vmatprep.subr.bf16.mxu0 %v2329
      %2563 = vmatpush1.bf16.msra.mxu0 %v2328
      %2564 = vmatprep.subr.bf16.mxu0 %v2333
      %2565 = vmatpush1.bf16.msra.mxu0 %v2332
      %2566 = vmatprep.subr.bf16.mxu0 %v2337
      %2567 = vmatpush1.bf16.msra.mxu0 %v2336
      %2568 = vmatprep.subr.bf16.mxu0 %v2341
      %2569 = vmatpush1.bf16.msra.mxu0 %v2340
      %2570 = vmatprep.subr.bf16.mxu0 %v2345
      %2571 = vmatpush1.bf16.msra.mxu0 %v2344
      %2572 = vmatprep.mubr.bf16.mxu0 %v1687
      %2573 = vmatmul.mubr.bf16.gmra.mrb[0].mxu0 %v1686
      %v2574 = vpop.f32.mrb[0].mxu0
      %v2575 = vadd.f32 %v1883, %v2574
      %v2576 = vpop.f32.mrb[0].mxu0
      %v2577 = vadd.f32 %v1887, %v2576
      %v2578 = vpop.f32.mrb[0].mxu0
      %v2579 = vadd.f32 %v1883, %v2578
      %v2580 = vpop.f32.mrb[0].mxu0
      %v2581 = vadd.f32 %v1887, %v2580
      %2582 = vmatprep.mubr.bf16.mxu0 %v1691
      %2583 = vmatmul.mubr.bf16.gmra.mrb[0].mxu0 %v1690
      %v2584 = vpop.f32.mrb[0].mxu0
      %v2585 = vadd.f32 %v1883, %v2584
      %v2586 = vpop.f32.mrb[0].mxu0
      %v2587 = vadd.f32 %v1887, %v2586
      %v2588 = vpop.f32.mrb[0].mxu0
      %v2589 = vadd.f32 %v1883, %v2588
      %v2590 = vpop.f32.mrb[0].mxu0
      %v2591 = vadd.f32 %v1887, %v2590
      %2592 = vmatprep.mubr.bf16.mxu0 %v1695
      %2593 = vmatmul.mubr.bf16.gmra.mrb[0].mxu0 %v1694
      %v2594 = vpop.f32.mrb[0].mxu0
      %v2595 = vadd.f32 %v1883, %v2594
      %v2596 = vpop.f32.mrb[0].mxu0
      %v2597 = vadd.f32 %v1887, %v2596
      %v2598 = vpop.f32.mrb[0].mxu0
      %v2599 = vadd.f32 %v1883, %v2598
      %v2600 = vpop.f32.mrb[0].mxu0
      %v2601 = vadd.f32 %v1887, %v2600
      %2602 = vmatprep.mubr.bf16.mxu0 %v1699
      %2603 = vmatmul.mubr.bf16.gmra.mrb[0].mxu0 %v1698
      %v2604 = vpop.f32.mrb[0].mxu0
      %v2605 = vadd.f32 %v1883, %v2604
      %v2606 = vpop.f32.mrb[0].mxu0
      %v2607 = vadd.f32 %v1887, %v2606
      %v2608 = vpop.f32.mrb[0].mxu0
      %v2609 = vadd.f32 %v1883, %v2608
      %v2610 = vpop.f32.mrb[0].mxu0
      %v2611 = vadd.f32 %v1887, %v2610
      %2612 = vmatprep.mubr.bf16.mxu0 %v1703
      %2613 = vmatmul.mubr.bf16.gmra.mrb[0].mxu0 %v1702
      %v2614 = vpop.f32.mrb[0].mxu0
      %v2615 = vadd.f32 %v1883, %v2614
      %v2616 = vpop.f32.mrb[0].mxu0
      %v2617 = vadd.f32 %v1887, %v2616
      %v2618 = vpop.f32.mrb[0].mxu0
      %v2619 = vadd.f32 %v1883, %v2618
      %v2620 = vpop.f32.mrb[0].mxu0
      %v2621 = vadd.f32 %v1887, %v2620
      %2622 = vmatprep.mubr.bf16.mxu0 %v1707
      %2623 = vmatmul.mubr.bf16.gmra.mrb[0].mxu0 %v1706
      %v2624 = vpop.f32.mrb[0].mxu0
      %v2625 = vadd.f32 %v1883, %v2624
      %v2626 = vpop.f32.mrb[0].mxu0
      %v2627 = vadd.f32 %v1887, %v2626
      %v2628 = vpop.f32.mrb[0].mxu0
      %v2629 = vadd.f32 %v1883, %v2628
      %v2630 = vpop.f32.mrb[0].mxu0
      %v2631 = vadd.f32 %v1887, %v2630
      %2632 = vmatprep.mubr.bf16.mxu0 %v1711
      %2633 = vmatmul.mubr.bf16.gmra.mrb[0].mxu0 %v1710
      %v2634 = vpop.f32.mrb[0].mxu0
      %v2635 = vadd.f32 %v1883, %v2634
      %v2636 = vpop.f32.mrb[0].mxu0
      %v2637 = vadd.f32 %v1887, %v2636
      %v2638 = vpop.f32.mrb[0].mxu0
      %v2639 = vadd.f32 %v1883, %v2638
      %v2640 = vpop.f32.mrb[0].mxu0
      %v2641 = vadd.f32 %v1887, %v2640
      %2642 = vmatprep.mubr.bf16.mxu0 %v1715
      %2643 = vmatmul.mubr.bf16.gmra.mrb[0].mxu0 %v1714
      %v2644 = vpop.f32.mrb[0].mxu0
      %v2645 = vadd.f32 %v1883, %v2644
      %v2646 = vpop.f32.mrb[0].mxu0
      %v2647 = vadd.f32 %v1887, %v2646
      %v2648 = vpop.f32.mrb[0].mxu0
      %v2649 = vadd.f32 %v1883, %v2648
      %v2650 = vpop.f32.mrb[0].mxu0
      %v2651 = vadd.f32 %v1887, %v2650
      %2652 = vmatprep.mubr.bf16.mxu0 %v1719
      %2653 = vmatmul.mubr.bf16.gmra.mrb[0].mxu0 %v1718
      %v2654 = vpop.f32.mrb[0].mxu0
      %v2655 = vadd.f32 %v1883, %v2654
      %v2656 = vpop.f32.mrb[0].mxu0
      %v2657 = vadd.f32 %v1887, %v2656
      %v2658 = vpop.f32.mrb[0].mxu0
      %v2659 = vadd.f32 %v1883, %v2658
      %v2660 = vpop.f32.mrb[0].mxu0
      %v2661 = vadd.f32 %v1887, %v2660
      %2662 = vmatprep.mubr.bf16.mxu0 %v1723
      %2663 = vmatmul.mubr.bf16.gmra.mrb[0].mxu0 %v1722
      %v2664 = vpop.f32.mrb[0].mxu0
      %v2665 = vadd.f32 %v1883, %v2664
      %v2666 = vpop.f32.mrb[0].mxu0
      %v2667 = vadd.f32 %v1887, %v2666
      %v2668 = vpop.f32.mrb[0].mxu0
      %v2669 = vadd.f32 %v1883, %v2668
      %v2670 = vpop.f32.mrb[0].mxu0
      %v2671 = vadd.f32 %v1887, %v2670
      %2672 = vmatprep.mubr.bf16.mxu0 %v1727
      %2673 = vmatmul.mubr.bf16.gmra.mrb[0].mxu0 %v1726
      %v2674 = vpop.f32.mrb[0].mxu0
      %v2675 = vadd.f32 %v1883, %v2674
      %v2676 = vpop.f32.mrb[0].mxu0
      %v2677 = vadd.f32 %v1887, %v2676
      %v2678 = vpop.f32.mrb[0].mxu0
      %v2679 = vadd.f32 %v1883, %v2678
      %v2680 = vpop.f32.mrb[0].mxu0
      %v2681 = vadd.f32 %v1887, %v2680
      %2682 = vmatprep.mubr.bf16.mxu0 %v1731
      %2683 = vmatmul.mubr.bf16.gmra.mrb[0].mxu0 %v1730
      %v2684 = vpop.f32.mrb[0].mxu0
      %v2685 = vadd.f32 %v1883, %v2684
      %v2686 = vpop.f32.mrb[0].mxu0
      %v2687 = vadd.f32 %v1887, %v2686
      %v2688 = vpop.f32.mrb[0].mxu0
      %v2689 = vadd.f32 %v1883, %v2688
      %v2690 = vpop.f32.mrb[0].mxu0
      %v2691 = vadd.f32 %v1887, %v2690
      %2692 = vmatprep.mubr.bf16.mxu0 %v1735
      %2693 = vmatmul.mubr.bf16.gmra.mrb[0].mxu0 %v1734
      %v2694 = vpop.f32.mrb[0].mxu0
      %v2695 = vadd.f32 %v1883, %v2694
      %v2696 = vpop.f32.mrb[0].mxu0
      %v2697 = vadd.f32 %v1887, %v2696
      %v2698 = vpop.f32.mrb[0].mxu0
      %v2699 = vadd.f32 %v1883, %v2698
      %v2700 = vpop.f32.mrb[0].mxu0
      %v2701 = vadd.f32 %v1887, %v2700
      %2702 = vmatprep.mubr.bf16.mxu0 %v1739
      %2703 = vmatmul.mubr.bf16.gmra.mrb[0].mxu0 %v1738
      %v2704 = vpop.f32.mrb[0].mxu0
      %v2705 = vadd.f32 %v1883, %v2704
      %v2706 = vpop.f32.mrb[0].mxu0
      %v2707 = vadd.f32 %v1887, %v2706
      %v2708 = vpop.f32.mrb[0].mxu0
      %v2709 = vadd.f32 %v1883, %v2708
      %v2710 = vpop.f32.mrb[0].mxu0
      %v2711 = vadd.f32 %v1887, %v2710
      %2712 = vmatprep.mubr.bf16.mxu0 %v1743
      %2713 = vmatmul.mubr.bf16.gmra.mrb[0].mxu0 %v1742
      %v2714 = vpop.f32.mrb[0].mxu0
      %v2715 = vadd.f32 %v1883, %v2714
      %v2716 = vpop.f32.mrb[0].mxu0
      %v2717 = vadd.f32 %v1887, %v2716
      %v2718 = vpop.f32.mrb[0].mxu0
      %v2719 = vadd.f32 %v1883, %v2718
      %v2720 = vpop.f32.mrb[0].mxu0
      %v2721 = vadd.f32 %v1887, %v2720
      %2722 = vmatprep.mubr.bf16.mxu0 %v1747
      %2723 = vmatmul.mubr.bf16.gmra.mrb[0].mxu0 %v1746
      %v2724 = vpop.f32.mrb[0].mxu0
      %v2725 = vadd.f32 %v1883, %v2724
      %v2726 = vpop.f32.mrb[0].mxu0
      %v2727 = vadd.f32 %v1887, %v2726
      %v2728 = vpop.f32.mrb[0].mxu0
      %v2729 = vadd.f32 %v1883, %v2728
      %v2730 = vpop.f32.mrb[0].mxu0
      %v2731 = vadd.f32 %v1887, %v2730
      %2732 = vdwg.mxu0
      %2733 = vmatprep.subr.bf16.mxu0 %v2349
      %2734 = vmatpush1.bf16.msra.mxu0 %v2348
      %2735 = vmatprep.subr.bf16.mxu0 %v2353
      %2736 = vmatpush1.bf16.msra.mxu0 %v2352
      %2737 = vmatprep.subr.bf16.mxu0 %v2357
      %2738 = vmatpush1.bf16.msra.mxu0 %v2356
      %2739 = vmatprep.subr.bf16.mxu0 %v2361
      %2740 = vmatpush1.bf16.msra.mxu0 %v2360
      %2741 = vmatprep.subr.bf16.mxu0 %v2365
      %2742 = vmatpush1.bf16.msra.mxu0 %v2364
      %2743 = vmatprep.subr.bf16.mxu0 %v2369
      %2744 = vmatpush1.bf16.msra.mxu0 %v2368
      %2745 = vmatprep.subr.bf16.mxu0 %v2373
      %2746 = vmatpush1.bf16.msra.mxu0 %v2372
      %2747 = vmatprep.subr.bf16.mxu0 %v2377
      %2748 = vmatpush1.bf16.msra.mxu0 %v2376
      %2749 = vmatprep.subr.bf16.mxu0 %v2381
      %2750 = vmatpush1.bf16.msra.mxu0 %v2380
      %2751 = vmatprep.subr.bf16.mxu0 %v2385
      %2752 = vmatpush1.bf16.msra.mxu0 %v2384
      %2753 = vmatprep.subr.bf16.mxu0 %v2389
      %2754 = vmatpush1.bf16.msra.mxu0 %v2388
      %2755 = vmatprep.subr.bf16.mxu0 %v2393
      %2756 = vmatpush1.bf16.msra.mxu0 %v2392
      %2757 = vmatprep.subr.bf16.mxu0 %v2397
      %2758 = vmatpush1.bf16.msra.mxu0 %v2396
      %2759 = vmatprep.subr.bf16.mxu0 %v2401
      %2760 = vmatpush1.bf16.msra.mxu0 %v2400
      %2761 = vmatprep.subr.bf16.mxu0 %v2405
      %2762 = vmatpush1.bf16.msra.mxu0 %v2404
      %2763 = vmatprep.subr.bf16.mxu0 %v2409
      %2764 = vmatpush1.bf16.msra.mxu0 %v2408
      %2765 = vmatprep.mubr.bf16.mxu0 %v1689
      %2766 = vmatmul.mubr.bf16.gmra.mrb[0].mxu0 %v1688
      %v2767 = vpop.f32.mrb[0].mxu0
      %v2768 = vadd.f32 %v2575, %v2767
      %v2769 = vpop.f32.mrb[0].mxu0
      %v2770 = vadd.f32 %v2577, %v2769
      %v2771 = vpop.f32.mrb[0].mxu0
      %v2772 = vadd.f32 %v2579, %v2771
      %v2773 = vpop.f32.mrb[0].mxu0
      %v2774 = vadd.f32 %v2581, %v2773
      %2775 = vmatprep.mubr.bf16.mxu0 %v1693
      %2776 = vmatmul.mubr.bf16.gmra.mrb[0].mxu0 %v1692
      %v2777 = vpop.f32.mrb[0].mxu0
      %v2778 = vadd.f32 %v2585, %v2777
      %v2779 = vpop.f32.mrb[0].mxu0
      %v2780 = vadd.f32 %v2587, %v2779
      %v2781 = vpop.f32.mrb[0].mxu0
      %v2782 = vadd.f32 %v2589, %v2781
      %v2783 = vpop.f32.mrb[0].mxu0
      %v2784 = vadd.f32 %v2591, %v2783
      %2785 = vmatprep.mubr.bf16.mxu0 %v1697
      %2786 = vmatmul.mubr.bf16.gmra.mrb[0].mxu0 %v1696
      %v2787 = vpop.f32.mrb[0].mxu0
      %v2788 = vadd.f32 %v2595, %v2787
      %v2789 = vpop.f32.mrb[0].mxu0
      %v2790 = vadd.f32 %v2597, %v2789
      %v2791 = vpop.f32.mrb[0].mxu0
      %v2792 = vadd.f32 %v2599, %v2791
      %v2793 = vpop.f32.mrb[0].mxu0
      %v2794 = vadd.f32 %v2601, %v2793
      %2795 = vmatprep.mubr.bf16.mxu0 %v1701
      %2796 = vmatmul.mubr.bf16.gmra.mrb[0].mxu0 %v1700
      %v2797 = vpop.f32.mrb[0].mxu0
      %v2798 = vadd.f32 %v2605, %v2797
      %v2799 = vpop.f32.mrb[0].mxu0
      %v2800 = vadd.f32 %v2607, %v2799
      %v2801 = vpop.f32.mrb[0].mxu0
      %v2802 = vadd.f32 %v2609, %v2801
      %v2803 = vpop.f32.mrb[0].mxu0
      %v2804 = vadd.f32 %v2611, %v2803
      %2805 = vmatprep.mubr.bf16.mxu0 %v1705
      %2806 = vmatmul.mubr.bf16.gmra.mrb[0].mxu0 %v1704
      %v2807 = vpop.f32.mrb[0].mxu0
      %v2808 = vadd.f32 %v2615, %v2807
      %v2809 = vpop.f32.mrb[0].mxu0
      %v2810 = vadd.f32 %v2617, %v2809
      %v2811 = vpop.f32.mrb[0].mxu0
      %v2812 = vadd.f32 %v2619, %v2811
      %v2813 = vpop.f32.mrb[0].mxu0
      %v2814 = vadd.f32 %v2621, %v2813
      %2815 = vmatprep.mubr.bf16.mxu0 %v1709
      %2816 = vmatmul.mubr.bf16.gmra.mrb[0].mxu0 %v1708
      %v2817 = vpop.f32.mrb[0].mxu0
      %v2818 = vadd.f32 %v2625, %v2817
      %v2819 = vpop.f32.mrb[0].mxu0
      %v2820 = vadd.f32 %v2627, %v2819
      %v2821 = vpop.f32.mrb[0].mxu0
      %v2822 = vadd.f32 %v2629, %v2821
      %v2823 = vpop.f32.mrb[0].mxu0
      %v2824 = vadd.f32 %v2631, %v2823
      %2825 = vmatprep.mubr.bf16.mxu0 %v1713
      %2826 = vmatmul.mubr.bf16.gmra.mrb[0].mxu0 %v1712
      %v2827 = vpop.f32.mrb[0].mxu0
      %v2828 = vadd.f32 %v2635, %v2827
      %v2829 = vpop.f32.mrb[0].mxu0
      %v2830 = vadd.f32 %v2637, %v2829
      %v2831 = vpop.f32.mrb[0].mxu0
      %v2832 = vadd.f32 %v2639, %v2831
      %v2833 = vpop.f32.mrb[0].mxu0
      %v2834 = vadd.f32 %v2641, %v2833
      %2835 = vmatprep.mubr.bf16.mxu0 %v1717
      %2836 = vmatmul.mubr.bf16.gmra.mrb[0].mxu0 %v1716
      %v2837 = vpop.f32.mrb[0].mxu0
      %v2838 = vadd.f32 %v2645, %v2837
      %v2839 = vpop.f32.mrb[0].mxu0
      %v2840 = vadd.f32 %v2647, %v2839
      %v2841 = vpop.f32.mrb[0].mxu0
      %v2842 = vadd.f32 %v2649, %v2841
      %v2843 = vpop.f32.mrb[0].mxu0
      %v2844 = vadd.f32 %v2651, %v2843
      %2845 = vmatprep.mubr.bf16.mxu0 %v1721
      %2846 = vmatmul.mubr.bf16.gmra.mrb[0].mxu0 %v1720
      %v2847 = vpop.f32.mrb[0].mxu0
      %v2848 = vadd.f32 %v2655, %v2847
      %v2849 = vpop.f32.mrb[0].mxu0
      %v2850 = vadd.f32 %v2657, %v2849
      %v2851 = vpop.f32.mrb[0].mxu0
      %v2852 = vadd.f32 %v2659, %v2851
      %v2853 = vpop.f32.mrb[0].mxu0
      %v2854 = vadd.f32 %v2661, %v2853
      %2855 = vmatprep.mubr.bf16.mxu0 %v1725
      %2856 = vmatmul.mubr.bf16.gmra.mrb[0].mxu0 %v1724
      %v2857 = vpop.f32.mrb[0].mxu0
      %v2858 = vadd.f32 %v2665, %v2857
      %v2859 = vpop.f32.mrb[0].mxu0
      %v2860 = vadd.f32 %v2667, %v2859
      %v2861 = vpop.f32.mrb[0].mxu0
      %v2862 = vadd.f32 %v2669, %v2861
      %v2863 = vpop.f32.mrb[0].mxu0
      %v2864 = vadd.f32 %v2671, %v2863
      %2865 = vmatprep.mubr.bf16.mxu0 %v1729
      %2866 = vmatmul.mubr.bf16.gmra.mrb[0].mxu0 %v1728
      %v2867 = vpop.f32.mrb[0].mxu0
      %v2868 = vadd.f32 %v2675, %v2867
      %v2869 = vpop.f32.mrb[0].mxu0
      %v2870 = vadd.f32 %v2677, %v2869
      %v2871 = vpop.f32.mrb[0].mxu0
      %v2872 = vadd.f32 %v2679, %v2871
      %v2873 = vpop.f32.mrb[0].mxu0
      %v2874 = vadd.f32 %v2681, %v2873
      %2875 = vmatprep.mubr.bf16.mxu0 %v1733
      %2876 = vmatmul.mubr.bf16.gmra.mrb[0].mxu0 %v1732
      %v2877 = vpop.f32.mrb[0].mxu0
      %v2878 = vadd.f32 %v2685, %v2877
      %v2879 = vpop.f32.mrb[0].mxu0
      %v2880 = vadd.f32 %v2687, %v2879
      %v2881 = vpop.f32.mrb[0].mxu0
      %v2882 = vadd.f32 %v2689, %v2881
      %v2883 = vpop.f32.mrb[0].mxu0
      %v2884 = vadd.f32 %v2691, %v2883
      %2885 = vmatprep.mubr.bf16.mxu0 %v1737
      %2886 = vmatmul.mubr.bf16.gmra.mrb[0].mxu0 %v1736
      %v2887 = vpop.f32.mrb[0].mxu0
      %v2888 = vadd.f32 %v2695, %v2887
      %v2889 = vpop.f32.mrb[0].mxu0
      %v2890 = vadd.f32 %v2697, %v2889
      %v2891 = vpop.f32.mrb[0].mxu0
      %v2892 = vadd.f32 %v2699, %v2891
      %v2893 = vpop.f32.mrb[0].mxu0
      %v2894 = vadd.f32 %v2701, %v2893
      %2895 = vmatprep.mubr.bf16.mxu0 %v1741
      %2896 = vmatmul.mubr.bf16.gmra.mrb[0].mxu0 %v1740
      %v2897 = vpop.f32.mrb[0].mxu0
      %v2898 = vadd.f32 %v2705, %v2897
      %v2899 = vpop.f32.mrb[0].mxu0
      %v2900 = vadd.f32 %v2707, %v2899
      %v2901 = vpop.f32.mrb[0].mxu0
      %v2902 = vadd.f32 %v2709, %v2901
      %v2903 = vpop.f32.mrb[0].mxu0
      %v2904 = vadd.f32 %v2711, %v2903
      %2905 = vmatprep.mubr.bf16.mxu0 %v1745
      %2906 = vmatmul.mubr.bf16.gmra.mrb[0].mxu0 %v1744
      %v2907 = vpop.f32.mrb[0].mxu0
      %v2908 = vadd.f32 %v2715, %v2907
      %v2909 = vpop.f32.mrb[0].mxu0
      %v2910 = vadd.f32 %v2717, %v2909
      %v2911 = vpop.f32.mrb[0].mxu0
      %v2912 = vadd.f32 %v2719, %v2911
      %v2913 = vpop.f32.mrb[0].mxu0
      %v2914 = vadd.f32 %v2721, %v2913
      %2915 = vmatprep.mubr.bf16.mxu0 %v1749
      %2916 = vmatmul.mubr.bf16.gmra.mrb[0].mxu0 %v1748
      %v2917 = vpop.f32.mrb[0].mxu0
      %v2918 = vadd.f32 %v2725, %v2917
      %v2919 = vpop.f32.mrb[0].mxu0
      %v2920 = vadd.f32 %v2727, %v2919
      %v2921 = vpop.f32.mrb[0].mxu0
      %v2922 = vadd.f32 %v2729, %v2921
      %v2923 = vpop.f32.mrb[0].mxu0
      %v2924 = vadd.f32 %v2731, %v2923
      %2925 = vdwg.mxu0
      %2926 = vmatprep.subr.bf16.mxu0 %v2287
      %2927 = vmatpush1.bf16.msra.mxu0 %v2286
      %2928 = vmatprep.subr.bf16.mxu0 %v2291
      %2929 = vmatpush1.bf16.msra.mxu0 %v2290
      %2930 = vmatprep.subr.bf16.mxu0 %v2295
      %2931 = vmatpush1.bf16.msra.mxu0 %v2294
      %2932 = vmatprep.subr.bf16.mxu0 %v2299
      %2933 = vmatpush1.bf16.msra.mxu0 %v2298
      %2934 = vmatprep.subr.bf16.mxu0 %v2303
      %2935 = vmatpush1.bf16.msra.mxu0 %v2302
      %2936 = vmatprep.subr.bf16.mxu0 %v2307
      %2937 = vmatpush1.bf16.msra.mxu0 %v2306
      %2938 = vmatprep.subr.bf16.mxu0 %v2311
      %2939 = vmatpush1.bf16.msra.mxu0 %v2310
      %2940 = vmatprep.subr.bf16.mxu0 %v2315
      %2941 = vmatpush1.bf16.msra.mxu0 %v2314
      %2942 = vmatprep.subr.bf16.mxu0 %v2319
      %2943 = vmatpush1.bf16.msra.mxu0 %v2318
      %2944 = vmatprep.subr.bf16.mxu0 %v2323
      %2945 = vmatpush1.bf16.msra.mxu0 %v2322
      %2946 = vmatprep.subr.bf16.mxu0 %v2327
      %2947 = vmatpush1.bf16.msra.mxu0 %v2326
      %2948 = vmatprep.subr.bf16.mxu0 %v2331
      %2949 = vmatpush1.bf16.msra.mxu0 %v2330
      %2950 = vmatprep.subr.bf16.mxu0 %v2335
      %2951 = vmatpush1.bf16.msra.mxu0 %v2334
      %2952 = vmatprep.subr.bf16.mxu0 %v2339
      %2953 = vmatpush1.bf16.msra.mxu0 %v2338
      %2954 = vmatprep.subr.bf16.mxu0 %v2343
      %2955 = vmatpush1.bf16.msra.mxu0 %v2342
      %2956 = vmatprep.subr.bf16.mxu0 %v2347
      %2957 = vmatpush1.bf16.msra.mxu0 %v2346
      %2958 = vmatprep.mubr.bf16.mxu0 %v1687
      %2959 = vmatmul.mubr.bf16.gmra.mrb[0].mxu0 %v1686
      %v2960 = vpop.f32.mrb[0].mxu0
      %v2961 = vadd.f32 %v1891, %v2960
      %v2962 = vpop.f32.mrb[0].mxu0
      %v2963 = vadd.f32 %v1895, %v2962
      %v2964 = vpop.f32.mrb[0].mxu0
      %v2965 = vadd.f32 %v1891, %v2964
      %v2966 = vpop.f32.mrb[0].mxu0
      %v2967 = vadd.f32 %v1895, %v2966
      %2968 = vmatprep.mubr.bf16.mxu0 %v1691
      %2969 = vmatmul.mubr.bf16.gmra.mrb[0].mxu0 %v1690
      %v2970 = vpop.f32.mrb[0].mxu0
      %v2971 = vadd.f32 %v1891, %v2970
      %v2972 = vpop.f32.mrb[0].mxu0
      %v2973 = vadd.f32 %v1895, %v2972
      %v2974 = vpop.f32.mrb[0].mxu0
      %v2975 = vadd.f32 %v1891, %v2974
      %v2976 = vpop.f32.mrb[0].mxu0
      %v2977 = vadd.f32 %v1895, %v2976
      %2978 = vmatprep.mubr.bf16.mxu0 %v1695
      %2979 = vmatmul.mubr.bf16.gmra.mrb[0].mxu0 %v1694
      %v2980 = vpop.f32.mrb[0].mxu0
      %v2981 = vadd.f32 %v1891, %v2980
      %v2982 = vpop.f32.mrb[0].mxu0
      %v2983 = vadd.f32 %v1895, %v2982
      %v2984 = vpop.f32.mrb[0].mxu0
      %v2985 = vadd.f32 %v1891, %v2984
      %v2986 = vpop.f32.mrb[0].mxu0
      %v2987 = vadd.f32 %v1895, %v2986
      %2988 = vmatprep.mubr.bf16.mxu0 %v1699
      %2989 = vmatmul.mubr.bf16.gmra.mrb[0].mxu0 %v1698
      %v2990 = vpop.f32.mrb[0].mxu0
      %v2991 = vadd.f32 %v1891, %v2990
      %v2992 = vpop.f32.mrb[0].mxu0
      %v2993 = vadd.f32 %v1895, %v2992
      %v2994 = vpop.f32.mrb[0].mxu0
      %v2995 = vadd.f32 %v1891, %v2994
      %v2996 = vpop.f32.mrb[0].mxu0
      %v2997 = vadd.f32 %v1895, %v2996
      %2998 = vmatprep.mubr.bf16.mxu0 %v1703
      %2999 = vmatmul.mubr.bf16.gmra.mrb[0].mxu0 %v1702
      %v3000 = vpop.f32.mrb[0].mxu0
      %v3001 = vadd.f32 %v1891, %v3000
      %v3002 = vpop.f32.mrb[0].mxu0
      %v3003 = vadd.f32 %v1895, %v3002
      %v3004 = vpop.f32.mrb[0].mxu0
      %v3005 = vadd.f32 %v1891, %v3004
      %v3006 = vpop.f32.mrb[0].mxu0
      %v3007 = vadd.f32 %v1895, %v3006
      %3008 = vmatprep.mubr.bf16.mxu0 %v1707
      %3009 = vmatmul.mubr.bf16.gmra.mrb[0].mxu0 %v1706
      %v3010 = vpop.f32.mrb[0].mxu0
      %v3011 = vadd.f32 %v1891, %v3010
      %v3012 = vpop.f32.mrb[0].mxu0
      %v3013 = vadd.f32 %v1895, %v3012
      %v3014 = vpop.f32.mrb[0].mxu0
      %v3015 = vadd.f32 %v1891, %v3014
      %v3016 = vpop.f32.mrb[0].mxu0
      %v3017 = vadd.f32 %v1895, %v3016
      %3018 = vmatprep.mubr.bf16.mxu0 %v1711
      %3019 = vmatmul.mubr.bf16.gmra.mrb[0].mxu0 %v1710
      %v3020 = vpop.f32.mrb[0].mxu0
      %v3021 = vadd.f32 %v1891, %v3020
      %v3022 = vpop.f32.mrb[0].mxu0
      %v3023 = vadd.f32 %v1895, %v3022
      %v3024 = vpop.f32.mrb[0].mxu0
      %v3025 = vadd.f32 %v1891, %v3024
      %v3026 = vpop.f32.mrb[0].mxu0
      %v3027 = vadd.f32 %v1895, %v3026
      %3028 = vmatprep.mubr.bf16.mxu0 %v1715
      %3029 = vmatmul.mubr.bf16.gmra.mrb[0].mxu0 %v1714
      %v3030 = vpop.f32.mrb[0].mxu0
      %v3031 = vadd.f32 %v1891, %v3030
      %v3032 = vpop.f32.mrb[0].mxu0
      %v3033 = vadd.f32 %v1895, %v3032
      %v3034 = vpop.f32.mrb[0].mxu0
      %v3035 = vadd.f32 %v1891, %v3034
      %v3036 = vpop.f32.mrb[0].mxu0
      %v3037 = vadd.f32 %v1895, %v3036
      %3038 = vmatprep.mubr.bf16.mxu0 %v1719
      %3039 = vmatmul.mubr.bf16.gmra.mrb[0].mxu0 %v1718
      %v3040 = vpop.f32.mrb[0].mxu0
      %v3041 = vadd.f32 %v1891, %v3040
      %v3042 = vpop.f32.mrb[0].mxu0
      %v3043 = vadd.f32 %v1895, %v3042
      %v3044 = vpop.f32.mrb[0].mxu0
      %v3045 = vadd.f32 %v1891, %v3044
      %v3046 = vpop.f32.mrb[0].mxu0
      %v3047 = vadd.f32 %v1895, %v3046
      %3048 = vmatprep.mubr.bf16.mxu0 %v1723
      %3049 = vmatmul.mubr.bf16.gmra.mrb[0].mxu0 %v1722
      %v3050 = vpop.f32.mrb[0].mxu0
      %v3051 = vadd.f32 %v1891, %v3050
      %v3052 = vpop.f32.mrb[0].mxu0
      %v3053 = vadd.f32 %v1895, %v3052
      %v3054 = vpop.f32.mrb[0].mxu0
      %v3055 = vadd.f32 %v1891, %v3054
      %v3056 = vpop.f32.mrb[0].mxu0
      %v3057 = vadd.f32 %v1895, %v3056
      %3058 = vmatprep.mubr.bf16.mxu0 %v1727
      %3059 = vmatmul.mubr.bf16.gmra.mrb[0].mxu0 %v1726
      %v3060 = vpop.f32.mrb[0].mxu0
      %v3061 = vadd.f32 %v1891, %v3060
      %v3062 = vpop.f32.mrb[0].mxu0
      %v3063 = vadd.f32 %v1895, %v3062
      %v3064 = vpop.f32.mrb[0].mxu0
      %v3065 = vadd.f32 %v1891, %v3064
      %v3066 = vpop.f32.mrb[0].mxu0
      %v3067 = vadd.f32 %v1895, %v3066
      %3068 = vmatprep.mubr.bf16.mxu0 %v1731
      %3069 = vmatmul.mubr.bf16.gmra.mrb[0].mxu0 %v1730
      %v3070 = vpop.f32.mrb[0].mxu0
      %v3071 = vadd.f32 %v1891, %v3070
      %v3072 = vpop.f32.mrb[0].mxu0
      %v3073 = vadd.f32 %v1895, %v3072
      %v3074 = vpop.f32.mrb[0].mxu0
      %v3075 = vadd.f32 %v1891, %v3074
      %v3076 = vpop.f32.mrb[0].mxu0
      %v3077 = vadd.f32 %v1895, %v3076
      %3078 = vmatprep.mubr.bf16.mxu0 %v1735
      %3079 = vmatmul.mubr.bf16.gmra.mrb[0].mxu0 %v1734
      %v3080 = vpop.f32.mrb[0].mxu0
      %v3081 = vadd.f32 %v1891, %v3080
      %v3082 = vpop.f32.mrb[0].mxu0
      %v3083 = vadd.f32 %v1895, %v3082
      %v3084 = vpop.f32.mrb[0].mxu0
      %v3085 = vadd.f32 %v1891, %v3084
      %v3086 = vpop.f32.mrb[0].mxu0
      %v3087 = vadd.f32 %v1895, %v3086
      %3088 = vmatprep.mubr.bf16.mxu0 %v1739
      %3089 = vmatmul.mubr.bf16.gmra.mrb[0].mxu0 %v1738
      %v3090 = vpop.f32.mrb[0].mxu0
      %v3091 = vadd.f32 %v1891, %v3090
      %v3092 = vpop.f32.mrb[0].mxu0
      %v3093 = vadd.f32 %v1895, %v3092
      %v3094 = vpop.f32.mrb[0].mxu0
      %v3095 = vadd.f32 %v1891, %v3094
      %v3096 = vpop.f32.mrb[0].mxu0
      %v3097 = vadd.f32 %v1895, %v3096
      %3098 = vmatprep.mubr.bf16.mxu0 %v1743
      %3099 = vmatmul.mubr.bf16.gmra.mrb[0].mxu0 %v1742
      %v3100 = vpop.f32.mrb[0].mxu0
      %v3101 = vadd.f32 %v1891, %v3100
      %v3102 = vpop.f32.mrb[0].mxu0
      %v3103 = vadd.f32 %v1895, %v3102
      %v3104 = vpop.f32.mrb[0].mxu0
      %v3105 = vadd.f32 %v1891, %v3104
      %v3106 = vpop.f32.mrb[0].mxu0
      %v3107 = vadd.f32 %v1895, %v3106
      %3108 = vmatprep.mubr.bf16.mxu0 %v1747
      %3109 = vmatmul.mubr.bf16.gmra.mrb[0].mxu0 %v1746
      %v3110 = vpop.f32.mrb[0].mxu0
      %v3111 = vadd.f32 %v1891, %v3110
      %v3112 = vpop.f32.mrb[0].mxu0
      %v3113 = vadd.f32 %v1895, %v3112
      %v3114 = vpop.f32.mrb[0].mxu0
      %v3115 = vadd.f32 %v1891, %v3114
      %v3116 = vpop.f32.mrb[0].mxu0
      %v3117 = vadd.f32 %v1895, %v3116
      %3118 = vdwg.mxu0
      %3119 = vmatprep.subr.bf16.mxu0 %v2351
      %3120 = vmatpush1.bf16.msra.mxu0 %v2350
      %3121 = vmatprep.subr.bf16.mxu0 %v2355
      %3122 = vmatpush1.bf16.msra.mxu0 %v2354
      %3123 = vmatprep.subr.bf16.mxu0 %v2359
      %3124 = vmatpush1.bf16.msra.mxu0 %v2358
      %3125 = vmatprep.subr.bf16.mxu0 %v2363
      %3126 = vmatpush1.bf16.msra.mxu0 %v2362
      %3127 = vmatprep.subr.bf16.mxu0 %v2367
      %3128 = vmatpush1.bf16.msra.mxu0 %v2366
      %3129 = vmatprep.subr.bf16.mxu0 %v2371
      %3130 = vmatpush1.bf16.msra.mxu0 %v2370
      %3131 = vmatprep.subr.bf16.mxu0 %v2375
      %3132 = vmatpush1.bf16.msra.mxu0 %v2374
      %3133 = vmatprep.subr.bf16.mxu0 %v2379
      %3134 = vmatpush1.bf16.msra.mxu0 %v2378
      %3135 = vmatprep.subr.bf16.mxu0 %v2383
      %3136 = vmatpush1.bf16.msra.mxu0 %v2382
      %3137 = vmatprep.subr.bf16.mxu0 %v2387
      %3138 = vmatpush1.bf16.msra.mxu0 %v2386
      %3139 = vmatprep.subr.bf16.mxu0 %v2391
      %3140 = vmatpush1.bf16.msra.mxu0 %v2390
      %3141 = vmatprep.subr.bf16.mxu0 %v2395
      %3142 = vmatpush1.bf16.msra.mxu0 %v2394
      %3143 = vmatprep.subr.bf16.mxu0 %v2399
      %3144 = vmatpush1.bf16.msra.mxu0 %v2398
      %3145 = vmatprep.subr.bf16.mxu0 %v2403
      %3146 = vmatpush1.bf16.msra.mxu0 %v2402
      %3147 = vmatprep.subr.bf16.mxu0 %v2407
      %3148 = vmatpush1.bf16.msra.mxu0 %v2406
      %3149 = vmatprep.subr.bf16.mxu0 %v2411
      %3150 = vmatpush1.bf16.msra.mxu0 %v2410
      %3151 = vmatprep.mubr.bf16.mxu0 %v1689
      %3152 = vmatmul.mubr.bf16.gmra.mrb[0].mxu0 %v1688
      %v3153 = vpop.f32.mrb[0].mxu0
      %v3154 = vadd.f32 %v2961, %v3153
      %v3155 = vpop.f32.mrb[0].mxu0
      %v3156 = vadd.f32 %v2963, %v3155
      %v3157 = vpop.f32.mrb[0].mxu0
      %v3158 = vadd.f32 %v2965, %v3157
      %v3159 = vpop.f32.mrb[0].mxu0
      %v3160 = vadd.f32 %v2967, %v3159
      %3161 = vmatprep.mubr.bf16.mxu0 %v1693
      %3162 = vmatmul.mubr.bf16.gmra.mrb[0].mxu0 %v1692
      %v3163 = vpop.f32.mrb[0].mxu0
      %v3164 = vadd.f32 %v2971, %v3163
      %v3165 = vpop.f32.mrb[0].mxu0
      %v3166 = vadd.f32 %v2973, %v3165
      %v3167 = vpop.f32.mrb[0].mxu0
      %v3168 = vadd.f32 %v2975, %v3167
      %v3169 = vpop.f32.mrb[0].mxu0
      %v3170 = vadd.f32 %v2977, %v3169
      %3171 = vmatprep.mubr.bf16.mxu0 %v1697
      %3172 = vmatmul.mubr.bf16.gmra.mrb[0].mxu0 %v1696
      %v3173 = vpop.f32.mrb[0].mxu0
      %v3174 = vadd.f32 %v2981, %v3173
      %v3175 = vpop.f32.mrb[0].mxu0
      %v3176 = vadd.f32 %v2983, %v3175
      %v3177 = vpop.f32.mrb[0].mxu0
      %v3178 = vadd.f32 %v2985, %v3177
      %v3179 = vpop.f32.mrb[0].mxu0
      %v3180 = vadd.f32 %v2987, %v3179
      %3181 = vmatprep.mubr.bf16.mxu0 %v1701
      %3182 = vmatmul.mubr.bf16.gmra.mrb[0].mxu0 %v1700
      %v3183 = vpop.f32.mrb[0].mxu0
      %v3184 = vadd.f32 %v2991, %v3183
      %v3185 = vpop.f32.mrb[0].mxu0
      %v3186 = vadd.f32 %v2993, %v3185
      %v3187 = vpop.f32.mrb[0].mxu0
      %v3188 = vadd.f32 %v2995, %v3187
      %v3189 = vpop.f32.mrb[0].mxu0
      %v3190 = vadd.f32 %v2997, %v3189
      %3191 = vmatprep.mubr.bf16.mxu0 %v1705
      %3192 = vmatmul.mubr.bf16.gmra.mrb[0].mxu0 %v1704
      %v3193 = vpop.f32.mrb[0].mxu0
      %v3194 = vadd.f32 %v3001, %v3193
      %v3195 = vpop.f32.mrb[0].mxu0
      %v3196 = vadd.f32 %v3003, %v3195
      %v3197 = vpop.f32.mrb[0].mxu0
      %v3198 = vadd.f32 %v3005, %v3197
      %v3199 = vpop.f32.mrb[0].mxu0
      %v3200 = vadd.f32 %v3007, %v3199
      %3201 = vmatprep.mubr.bf16.mxu0 %v1709
      %3202 = vmatmul.mubr.bf16.gmra.mrb[0].mxu0 %v1708
      %v3203 = vpop.f32.mrb[0].mxu0
      %v3204 = vadd.f32 %v3011, %v3203
      %v3205 = vpop.f32.mrb[0].mxu0
      %v3206 = vadd.f32 %v3013, %v3205
      %v3207 = vpop.f32.mrb[0].mxu0
      %v3208 = vadd.f32 %v3015, %v3207
      %v3209 = vpop.f32.mrb[0].mxu0
      %v3210 = vadd.f32 %v3017, %v3209
      %3211 = vmatprep.mubr.bf16.mxu0 %v1713
      %3212 = vmatmul.mubr.bf16.gmra.mrb[0].mxu0 %v1712
      %v3213 = vpop.f32.mrb[0].mxu0
      %v3214 = vadd.f32 %v3021, %v3213
      %v3215 = vpop.f32.mrb[0].mxu0
      %v3216 = vadd.f32 %v3023, %v3215
      %v3217 = vpop.f32.mrb[0].mxu0
      %v3218 = vadd.f32 %v3025, %v3217
      %v3219 = vpop.f32.mrb[0].mxu0
      %v3220 = vadd.f32 %v3027, %v3219
      %3221 = vmatprep.mubr.bf16.mxu0 %v1717
      %3222 = vmatmul.mubr.bf16.gmra.mrb[0].mxu0 %v1716
      %v3223 = vpop.f32.mrb[0].mxu0
      %v3224 = vadd.f32 %v3031, %v3223
      %v3225 = vpop.f32.mrb[0].mxu0
      %v3226 = vadd.f32 %v3033, %v3225
      %v3227 = vpop.f32.mrb[0].mxu0
      %v3228 = vadd.f32 %v3035, %v3227
      %v3229 = vpop.f32.mrb[0].mxu0
      %v3230 = vadd.f32 %v3037, %v3229
      %3231 = vmatprep.mubr.bf16.mxu0 %v1721
      %3232 = vmatmul.mubr.bf16.gmra.mrb[0].mxu0 %v1720
      %v3233 = vpop.f32.mrb[0].mxu0
      %v3234 = vadd.f32 %v3041, %v3233
      %v3235 = vpop.f32.mrb[0].mxu0
      %v3236 = vadd.f32 %v3043, %v3235
      %v3237 = vpop.f32.mrb[0].mxu0
      %v3238 = vadd.f32 %v3045, %v3237
      %v3239 = vpop.f32.mrb[0].mxu0
      %v3240 = vadd.f32 %v3047, %v3239
      %3241 = vmatprep.mubr.bf16.mxu0 %v1725
      %3242 = vmatmul.mubr.bf16.gmra.mrb[0].mxu0 %v1724
      %v3243 = vpop.f32.mrb[0].mxu0
      %v3244 = vadd.f32 %v3051, %v3243
      %v3245 = vpop.f32.mrb[0].mxu0
      %v3246 = vadd.f32 %v3053, %v3245
      %v3247 = vpop.f32.mrb[0].mxu0
      %v3248 = vadd.f32 %v3055, %v3247
      %v3249 = vpop.f32.mrb[0].mxu0
      %v3250 = vadd.f32 %v3057, %v3249
      %3251 = vmatprep.mubr.bf16.mxu0 %v1729
      %3252 = vmatmul.mubr.bf16.gmra.mrb[0].mxu0 %v1728
      %v3253 = vpop.f32.mrb[0].mxu0
      %v3254 = vadd.f32 %v3061, %v3253
      %v3255 = vpop.f32.mrb[0].mxu0
      %v3256 = vadd.f32 %v3063, %v3255
      %v3257 = vpop.f32.mrb[0].mxu0
      %v3258 = vadd.f32 %v3065, %v3257
      %v3259 = vpop.f32.mrb[0].mxu0
      %v3260 = vadd.f32 %v3067, %v3259
      %3261 = vmatprep.mubr.bf16.mxu0 %v1733
      %3262 = vmatmul.mubr.bf16.gmra.mrb[0].mxu0 %v1732
      %v3263 = vpop.f32.mrb[0].mxu0
      %v3264 = vadd.f32 %v3071, %v3263
      %v3265 = vpop.f32.mrb[0].mxu0
      %v3266 = vadd.f32 %v3073, %v3265
      %v3267 = vpop.f32.mrb[0].mxu0
      %v3268 = vadd.f32 %v3075, %v3267
      %v3269 = vpop.f32.mrb[0].mxu0
      %v3270 = vadd.f32 %v3077, %v3269
      %3271 = vmatprep.mubr.bf16.mxu0 %v1737
      %3272 = vmatmul.mubr.bf16.gmra.mrb[0].mxu0 %v1736
      %v3273 = vpop.f32.mrb[0].mxu0
      %v3274 = vadd.f32 %v3081, %v3273
      %v3275 = vpop.f32.mrb[0].mxu0
      %v3276 = vadd.f32 %v3083, %v3275
      %v3277 = vpop.f32.mrb[0].mxu0
      %v3278 = vadd.f32 %v3085, %v3277
      %v3279 = vpop.f32.mrb[0].mxu0
      %v3280 = vadd.f32 %v3087, %v3279
      %3281 = vmatprep.mubr.bf16.mxu0 %v1741
      %3282 = vmatmul.mubr.bf16.gmra.mrb[0].mxu0 %v1740
      %v3283 = vpop.f32.mrb[0].mxu0
      %v3284 = vadd.f32 %v3091, %v3283
      %v3285 = vpop.f32.mrb[0].mxu0
      %v3286 = vadd.f32 %v3093, %v3285
      %v3287 = vpop.f32.mrb[0].mxu0
      %v3288 = vadd.f32 %v3095, %v3287
      %v3289 = vpop.f32.mrb[0].mxu0
      %v3290 = vadd.f32 %v3097, %v3289
      %3291 = vmatprep.mubr.bf16.mxu0 %v1745
      %3292 = vmatmul.mubr.bf16.gmra.mrb[0].mxu0 %v1744
      %v3293 = vpop.f32.mrb[0].mxu0
      %v3294 = vadd.f32 %v3101, %v3293
      %v3295 = vpop.f32.mrb[0].mxu0
      %v3296 = vadd.f32 %v3103, %v3295
      %v3297 = vpop.f32.mrb[0].mxu0
      %v3298 = vadd.f32 %v3105, %v3297
      %v3299 = vpop.f32.mrb[0].mxu0
      %v3300 = vadd.f32 %v3107, %v3299
      %3301 = vmatprep.mubr.bf16.mxu0 %v1749
      %3302 = vmatmul.mubr.bf16.gmra.mrb[0].mxu0 %v1748
      %v3303 = vpop.f32.mrb[0].mxu0
      %v3304 = vadd.f32 %v3111, %v3303
      %v3305 = vpop.f32.mrb[0].mxu0
      %v3306 = vadd.f32 %v3113, %v3305
      %v3307 = vpop.f32.mrb[0].mxu0
      %v3308 = vadd.f32 %v3115, %v3307
      %v3309 = vpop.f32.mrb[0].mxu0
      %v3310 = vadd.f32 %v3117, %v3309
      %3311 = vdwg.mxu0
      %v3312 = vmax.f32 %v2768, 0.0
      %v3313 = vmax.f32 %v2770, 0.0
      %v3314 = vmax.f32 %v3154, 0.0
      %v3315 = vmax.f32 %v3156, 0.0
      %v3316 = vmax.f32 %v2772, 0.0
      %v3317 = vmax.f32 %v2774, 0.0
      %v3318 = vmax.f32 %v3158, 0.0
      %v3319 = vmax.f32 %v3160, 0.0
      %v3320 = vmax.f32 %v2778, 0.0
      %v3321 = vmax.f32 %v2780, 0.0
      %v3322 = vmax.f32 %v3164, 0.0
      %v3323 = vmax.f32 %v3166, 0.0
      %v3324 = vmax.f32 %v2782, 0.0
      %v3325 = vmax.f32 %v2784, 0.0
      %v3326 = vmax.f32 %v3168, 0.0
      %v3327 = vmax.f32 %v3170, 0.0
      %v3328 = vmax.f32 %v2788, 0.0
      %v3329 = vmax.f32 %v2790, 0.0
      %v3330 = vmax.f32 %v3174, 0.0
      %v3331 = vmax.f32 %v3176, 0.0
      %v3332 = vmax.f32 %v2792, 0.0
      %v3333 = vmax.f32 %v2794, 0.0
      %v3334 = vmax.f32 %v3178, 0.0
      %v3335 = vmax.f32 %v3180, 0.0
      %v3336 = vmax.f32 %v2798, 0.0
      %v3337 = vmax.f32 %v2800, 0.0
      %v3338 = vmax.f32 %v3184, 0.0
      %v3339 = vmax.f32 %v3186, 0.0
      %v3340 = vmax.f32 %v2802, 0.0
      %v3341 = vmax.f32 %v2804, 0.0
      %v3342 = vmax.f32 %v3188, 0.0
      %v3343 = vmax.f32 %v3190, 0.0
      %v3344 = vmax.f32 %v2808, 0.0
      %v3345 = vmax.f32 %v2810, 0.0
      %v3346 = vmax.f32 %v3194, 0.0
      %v3347 = vmax.f32 %v3196, 0.0
      %v3348 = vmax.f32 %v2812, 0.0
      %v3349 = vmax.f32 %v2814, 0.0
      %v3350 = vmax.f32 %v3198, 0.0
      %v3351 = vmax.f32 %v3200, 0.0
      %v3352 = vmax.f32 %v2818, 0.0
      %v3353 = vmax.f32 %v2820, 0.0
      %v3354 = vmax.f32 %v3204, 0.0
      %v3355 = vmax.f32 %v3206, 0.0
      %v3356 = vmax.f32 %v2822, 0.0
      %v3357 = vmax.f32 %v2824, 0.0
      %v3358 = vmax.f32 %v3208, 0.0
      %v3359 = vmax.f32 %v3210, 0.0
      %v3360 = vmax.f32 %v2828, 0.0
      %v3361 = vmax.f32 %v2830, 0.0
      %v3362 = vmax.f32 %v3214, 0.0
      %v3363 = vmax.f32 %v3216, 0.0
      %v3364 = vmax.f32 %v2832, 0.0
      %v3365 = vmax.f32 %v2834, 0.0
      %v3366 = vmax.f32 %v3218, 0.0
      %v3367 = vmax.f32 %v3220, 0.0
      %v3368 = vmax.f32 %v2838, 0.0
      %v3369 = vmax.f32 %v2840, 0.0
      %v3370 = vmax.f32 %v3224, 0.0
      %v3371 = vmax.f32 %v3226, 0.0
      %v3372 = vmax.f32 %v2842, 0.0
      %v3373 = vmax.f32 %v2844, 0.0
      %v3374 = vmax.f32 %v3228, 0.0
      %v3375 = vmax.f32 %v3230, 0.0
      %v3376 = vmax.f32 %v2848, 0.0
      %v3377 = vmax.f32 %v2850, 0.0
      %v3378 = vmax.f32 %v3234, 0.0
      %v3379 = vmax.f32 %v3236, 0.0
      %v3380 = vmax.f32 %v2852, 0.0
      %v3381 = vmax.f32 %v2854, 0.0
      %v3382 = vmax.f32 %v3238, 0.0
      %v3383 = vmax.f32 %v3240, 0.0
      %v3384 = vmax.f32 %v2858, 0.0
      %v3385 = vmax.f32 %v2860, 0.0
      %v3386 = vmax.f32 %v3244, 0.0
      %v3387 = vmax.f32 %v3246, 0.0
      %v3388 = vmax.f32 %v2862, 0.0
      %v3389 = vmax.f32 %v2864, 0.0
      %v3390 = vmax.f32 %v3248, 0.0
      %v3391 = vmax.f32 %v3250, 0.0
      %v3392 = vmax.f32 %v2868, 0.0
      %v3393 = vmax.f32 %v2870, 0.0
      %v3394 = vmax.f32 %v3254, 0.0
      %v3395 = vmax.f32 %v3256, 0.0
      %v3396 = vmax.f32 %v2872, 0.0
      %v3397 = vmax.f32 %v2874, 0.0
      %v3398 = vmax.f32 %v3258, 0.0
      %v3399 = vmax.f32 %v3260, 0.0
      %v3400 = vmax.f32 %v2878, 0.0
      %v3401 = vmax.f32 %v2880, 0.0
      %v3402 = vmax.f32 %v3264, 0.0
      %v3403 = vmax.f32 %v3266, 0.0
      %v3404 = vmax.f32 %v2882, 0.0
      %v3405 = vmax.f32 %v2884, 0.0
      %v3406 = vmax.f32 %v3268, 0.0
      %v3407 = vmax.f32 %v3270, 0.0
      %v3408 = vmax.f32 %v2888, 0.0
      %v3409 = vmax.f32 %v2890, 0.0
      %v3410 = vmax.f32 %v3274, 0.0
      %v3411 = vmax.f32 %v3276, 0.0
      %v3412 = vmax.f32 %v2892, 0.0
      %v3413 = vmax.f32 %v2894, 0.0
      %v3414 = vmax.f32 %v3278, 0.0
      %v3415 = vmax.f32 %v3280, 0.0
      %v3416 = vmax.f32 %v2898, 0.0
      %v3417 = vmax.f32 %v2900, 0.0
      %v3418 = vmax.f32 %v3284, 0.0
      %v3419 = vmax.f32 %v3286, 0.0
      %v3420 = vmax.f32 %v2902, 0.0
      %v3421 = vmax.f32 %v2904, 0.0
      %v3422 = vmax.f32 %v3288, 0.0
      %v3423 = vmax.f32 %v3290, 0.0
      %v3424 = vmax.f32 %v2908, 0.0
      %v3425 = vmax.f32 %v2910, 0.0
      %v3426 = vmax.f32 %v3294, 0.0
      %v3427 = vmax.f32 %v3296, 0.0
      %v3428 = vmax.f32 %v2912, 0.0
      %v3429 = vmax.f32 %v2914, 0.0
      %v3430 = vmax.f32 %v3298, 0.0
      %v3431 = vmax.f32 %v3300, 0.0
      %v3432 = vmax.f32 %v2918, 0.0
      %v3433 = vmax.f32 %v2920, 0.0
      %v3434 = vmax.f32 %v3304, 0.0
      %v3435 = vmax.f32 %v3306, 0.0
      %v3436 = vmax.f32 %v2922, 0.0
      %v3437 = vmax.f32 %v2924, 0.0
      %v3438 = vmax.f32 %v3308, 0.0
      %v3439 = vmax.f32 %v3310, 0.0
      %v3440 = vpack.c.bf16 %v3316, %v3312
      %v3441 = vpack.c.bf16 %v3317, %v3313
      %v3442 = vpack.c.bf16 %v3318, %v3314
      %v3443 = vpack.c.bf16 %v3319, %v3315
      %v3444 = vpack.c.bf16 %v3324, %v3320
      %v3445 = vpack.c.bf16 %v3325, %v3321
      %v3446 = vpack.c.bf16 %v3326, %v3322
      %v3447 = vpack.c.bf16 %v3327, %v3323
      %v3448 = vpack.c.bf16 %v3332, %v3328
      %v3449 = vpack.c.bf16 %v3333, %v3329
      %v3450 = vpack.c.bf16 %v3334, %v3330
      %v3451 = vpack.c.bf16 %v3335, %v3331
      %v3452 = vpack.c.bf16 %v3340, %v3336
      %v3453 = vpack.c.bf16 %v3341, %v3337
      %v3454 = vpack.c.bf16 %v3342, %v3338
      %v3455 = vpack.c.bf16 %v3343, %v3339
      %v3456 = vpack.c.bf16 %v3348, %v3344
      %v3457 = vpack.c.bf16 %v3349, %v3345
      %v3458 = vpack.c.bf16 %v3350, %v3346
      %v3459 = vpack.c.bf16 %v3351, %v3347
      %v3460 = vpack.c.bf16 %v3356, %v3352
      %v3461 = vpack.c.bf16 %v3357, %v3353
      %v3462 = vpack.c.bf16 %v3358, %v3354
      %v3463 = vpack.c.bf16 %v3359, %v3355
      %v3464 = vpack.c.bf16 %v3364, %v3360
      %v3465 = vpack.c.bf16 %v3365, %v3361
      %v3466 = vpack.c.bf16 %v3366, %v3362
      %v3467 = vpack.c.bf16 %v3367, %v3363
      %v3468 = vpack.c.bf16 %v3372, %v3368
      %v3469 = vpack.c.bf16 %v3373, %v3369
      %v3470 = vpack.c.bf16 %v3374, %v3370
      %v3471 = vpack.c.bf16 %v3375, %v3371
      %v3472 = vpack.c.bf16 %v3380, %v3376
      %v3473 = vpack.c.bf16 %v3381, %v3377
      %v3474 = vpack.c.bf16 %v3382, %v3378
      %v3475 = vpack.c.bf16 %v3383, %v3379
      %v3476 = vpack.c.bf16 %v3388, %v3384
      %v3477 = vpack.c.bf16 %v3389, %v3385
      %v3478 = vpack.c.bf16 %v3390, %v3386
      %v3479 = vpack.c.bf16 %v3391, %v3387
      %v3480 = vpack.c.bf16 %v3396, %v3392
      %v3481 = vpack.c.bf16 %v3397, %v3393
      %v3482 = vpack.c.bf16 %v3398, %v3394
      %v3483 = vpack.c.bf16 %v3399, %v3395
      %v3484 = vpack.c.bf16 %v3404, %v3400
      %v3485 = vpack.c.bf16 %v3405, %v3401
      %v3486 = vpack.c.bf16 %v3406, %v3402
      %v3487 = vpack.c.bf16 %v3407, %v3403
      %v3488 = vpack.c.bf16 %v3412, %v3408
      %v3489 = vpack.c.bf16 %v3413, %v3409
      %v3490 = vpack.c.bf16 %v3414, %v3410
      %v3491 = vpack.c.bf16 %v3415, %v3411
      %v3492 = vpack.c.bf16 %v3420, %v3416
      %v3493 = vpack.c.bf16 %v3421, %v3417
      %v3494 = vpack.c.bf16 %v3422, %v3418
      %v3495 = vpack.c.bf16 %v3423, %v3419
      %v3496 = vpack.c.bf16 %v3428, %v3424
      %v3497 = vpack.c.bf16 %v3429, %v3425
      %v3498 = vpack.c.bf16 %v3430, %v3426
      %v3499 = vpack.c.bf16 %v3431, %v3427
      %v3500 = vpack.c.bf16 %v3436, %v3432
      %v3501 = vpack.c.bf16 %v3437, %v3433
      %v3502 = vpack.c.bf16 %v3438, %v3434
      %v3503 = vpack.c.bf16 %v3439, %v3435
      %v3504 = vld [vmem:[%s4] sm:$0xff]
      %v3505 = vld [vmem:[%s4 + $0x8] sm:$0xff]
      %v3506 = vld [vmem:[%s4 + $0x10] sm:$0xff]
      %v3507 = vld [vmem:[%s4 + $0x18] sm:$0xff]
      %v3508 = vld [vmem:[%s4 + $0x20] sm:$0xff]
      %v3509 = vld [vmem:[%s4 + $0x28] sm:$0xff]
      %v3510 = vld [vmem:[%s4 + $0x30] sm:$0xff]
      %v3511 = vld [vmem:[%s4 + $0x38] sm:$0xff]
      %v3512 = vld [vmem:[%s4 + $0x40] sm:$0xff]
      %v3513 = vld [vmem:[%s4 + $0x48] sm:$0xff]
      %v3514 = vld [vmem:[%s4 + $0x50] sm:$0xff]
      %v3515 = vld [vmem:[%s4 + $0x58] sm:$0xff]
      %v3516 = vld [vmem:[%s4 + $0x60] sm:$0xff]
      %v3517 = vld [vmem:[%s4 + $0x68] sm:$0xff]
      %v3518 = vld [vmem:[%s4 + $0x70] sm:$0xff]
      %v3519 = vld [vmem:[%s4 + $0x78] sm:$0xff]
      %v3520 = vld [vmem:[%s4 + $0x80] sm:$0xff]
      %v3521 = vld [vmem:[%s4 + $0x88] sm:$0xff]
      %v3522 = vld [vmem:[%s4 + $0x90] sm:$0xff]
      %v3523 = vld [vmem:[%s4 + $0x98] sm:$0xff]
      %v3524 = vld [vmem:[%s4 + $0xa0] sm:$0xff]
      %v3525 = vld [vmem:[%s4 + $0xa8] sm:$0xff]
      %v3526 = vld [vmem:[%s4 + $0xb0] sm:$0xff]
      %v3527 = vld [vmem:[%s4 + $0xb8] sm:$0xff]
      %v3528 = vld [vmem:[%s4 + $0xc0] sm:$0xff]
      %v3529 = vld [vmem:[%s4 + $0xc8] sm:$0xff]
      %v3530 = vld [vmem:[%s4 + $0xd0] sm:$0xff]
      %v3531 = vld [vmem:[%s4 + $0xd8] sm:$0xff]
      %v3532 = vld [vmem:[%s4 + $0xe0] sm:$0xff]
      %v3533 = vld [vmem:[%s4 + $0xe8] sm:$0xff]
      %v3534 = vld [vmem:[%s4 + $0xf0] sm:$0xff]
      %v3535 = vld [vmem:[%s4 + $0xf8] sm:$0xff]
      %v3536 = vld [vmem:[%s4 + $0x100] sm:$0xff]
      %v3537 = vld [vmem:[%s4 + $0x108] sm:$0xff]
      %v3538 = vld [vmem:[%s4 + $0x110] sm:$0xff]
      %v3539 = vld [vmem:[%s4 + $0x118] sm:$0xff]
      %v3540 = vld [vmem:[%s4 + $0x120] sm:$0xff]
      %v3541 = vld [vmem:[%s4 + $0x128] sm:$0xff]
      %v3542 = vld [vmem:[%s4 + $0x130] sm:$0xff]
      %v3543 = vld [vmem:[%s4 + $0x138] sm:$0xff]
      %v3544 = vld [vmem:[%s4 + $0x140] sm:$0xff]
      %v3545 = vld [vmem:[%s4 + $0x148] sm:$0xff]
      %v3546 = vld [vmem:[%s4 + $0x150] sm:$0xff]
      %v3547 = vld [vmem:[%s4 + $0x158] sm:$0xff]
      %v3548 = vld [vmem:[%s4 + $0x160] sm:$0xff]
      %v3549 = vld [vmem:[%s4 + $0x168] sm:$0xff]
      %v3550 = vld [vmem:[%s4 + $0x170] sm:$0xff]
      %v3551 = vld [vmem:[%s4 + $0x178] sm:$0xff]
      %v3552 = vld [vmem:[%s4 + $0x180] sm:$0xff]
      %v3553 = vld [vmem:[%s4 + $0x188] sm:$0xff]
      %v3554 = vld [vmem:[%s4 + $0x190] sm:$0xff]
      %v3555 = vld [vmem:[%s4 + $0x198] sm:$0xff]
      %v3556 = vld [vmem:[%s4 + $0x1a0] sm:$0xff]
      %v3557 = vld [vmem:[%s4 + $0x1a8] sm:$0xff]
      %v3558 = vld [vmem:[%s4 + $0x1b0] sm:$0xff]
      %v3559 = vld [vmem:[%s4 + $0x1b8] sm:$0xff]
      %v3560 = vld [vmem:[%s4 + $0x1c0] sm:$0xff]
      %v3561 = vld [vmem:[%s4 + $0x1c8] sm:$0xff]
      %v3562 = vld [vmem:[%s4 + $0x1d0] sm:$0xff]
      %v3563 = vld [vmem:[%s4 + $0x1d8] sm:$0xff]
      %v3564 = vld [vmem:[%s4 + $0x1e0] sm:$0xff]
      %v3565 = vld [vmem:[%s4 + $0x1e8] sm:$0xff]
      %v3566 = vld [vmem:[%s4 + $0x1f0] sm:$0xff]
      %v3567 = vld [vmem:[%s4 + $0x1f8] sm:$0xff]
      %v3568 = vld [vmem:[%s4 + $0x200] sm:$0xff]
      %v3569 = vld [vmem:[%s4 + $0x208] sm:$0xff]
      %v3570 = vld [vmem:[%s4 + $0x210] sm:$0xff]
      %v3571 = vld [vmem:[%s4 + $0x218] sm:$0xff]
      %v3572 = vld [vmem:[%s4 + $0x220] sm:$0xff]
      %v3573 = vld [vmem:[%s4 + $0x228] sm:$0xff]
      %v3574 = vld [vmem:[%s4 + $0x230] sm:$0xff]
      %v3575 = vld [vmem:[%s4 + $0x238] sm:$0xff]
      %v3576 = vld [vmem:[%s4 + $0x240] sm:$0xff]
      %v3577 = vld [vmem:[%s4 + $0x248] sm:$0xff]
      %v3578 = vld [vmem:[%s4 + $0x250] sm:$0xff]
      %v3579 = vld [vmem:[%s4 + $0x258] sm:$0xff]
      %v3580 = vld [vmem:[%s4 + $0x260] sm:$0xff]
      %v3581 = vld [vmem:[%s4 + $0x268] sm:$0xff]
      %v3582 = vld [vmem:[%s4 + $0x270] sm:$0xff]
      %v3583 = vld [vmem:[%s4 + $0x278] sm:$0xff]
      %v3584 = vld [vmem:[%s4 + $0x280] sm:$0xff]
      %v3585 = vld [vmem:[%s4 + $0x288] sm:$0xff]
      %v3586 = vld [vmem:[%s4 + $0x290] sm:$0xff]
      %v3587 = vld [vmem:[%s4 + $0x298] sm:$0xff]
      %v3588 = vld [vmem:[%s4 + $0x2a0] sm:$0xff]
      %v3589 = vld [vmem:[%s4 + $0x2a8] sm:$0xff]
      %v3590 = vld [vmem:[%s4 + $0x2b0] sm:$0xff]
      %v3591 = vld [vmem:[%s4 + $0x2b8] sm:$0xff]
      %v3592 = vld [vmem:[%s4 + $0x2c0] sm:$0xff]
      %v3593 = vld [vmem:[%s4 + $0x2c8] sm:$0xff]
      %v3594 = vld [vmem:[%s4 + $0x2d0] sm:$0xff]
      %v3595 = vld [vmem:[%s4 + $0x2d8] sm:$0xff]
      %v3596 = vld [vmem:[%s4 + $0x2e0] sm:$0xff]
      %v3597 = vld [vmem:[%s4 + $0x2e8] sm:$0xff]
      %v3598 = vld [vmem:[%s4 + $0x2f0] sm:$0xff]
      %v3599 = vld [vmem:[%s4 + $0x2f8] sm:$0xff]
      %v3600 = vld [vmem:[%s4 + $0x300] sm:$0xff]
      %v3601 = vld [vmem:[%s4 + $0x308] sm:$0xff]
      %v3602 = vld [vmem:[%s4 + $0x310] sm:$0xff]
      %v3603 = vld [vmem:[%s4 + $0x318] sm:$0xff]
      %v3604 = vld [vmem:[%s4 + $0x320] sm:$0xff]
      %v3605 = vld [vmem:[%s4 + $0x328] sm:$0xff]
      %v3606 = vld [vmem:[%s4 + $0x330] sm:$0xff]
      %v3607 = vld [vmem:[%s4 + $0x338] sm:$0xff]
      %v3608 = vld [vmem:[%s4 + $0x340] sm:$0xff]
      %v3609 = vld [vmem:[%s4 + $0x348] sm:$0xff]
      %v3610 = vld [vmem:[%s4 + $0x350] sm:$0xff]
      %v3611 = vld [vmem:[%s4 + $0x358] sm:$0xff]
      %v3612 = vld [vmem:[%s4 + $0x360] sm:$0xff]
      %v3613 = vld [vmem:[%s4 + $0x368] sm:$0xff]
      %v3614 = vld [vmem:[%s4 + $0x370] sm:$0xff]
      %v3615 = vld [vmem:[%s4 + $0x378] sm:$0xff]
      %v3616 = vld [vmem:[%s4 + $0x380] sm:$0xff]
      %v3617 = vld [vmem:[%s4 + $0x388] sm:$0xff]
      %v3618 = vld [vmem:[%s4 + $0x390] sm:$0xff]
      %v3619 = vld [vmem:[%s4 + $0x398] sm:$0xff]
      %v3620 = vld [vmem:[%s4 + $0x3a0] sm:$0xff]
      %v3621 = vld [vmem:[%s4 + $0x3a8] sm:$0xff]
      %v3622 = vld [vmem:[%s4 + $0x3b0] sm:$0xff]
      %v3623 = vld [vmem:[%s4 + $0x3b8] sm:$0xff]
      %v3624 = vld [vmem:[%s4 + $0x3c0] sm:$0xff]
      %v3625 = vld [vmem:[%s4 + $0x3c8] sm:$0xff]
      %v3626 = vld [vmem:[%s4 + $0x3d0] sm:$0xff]
      %v3627 = vld [vmem:[%s4 + $0x3d8] sm:$0xff]
      %v3628 = vld [vmem:[%s4 + $0x3e0] sm:$0xff]
      %v3629 = vld [vmem:[%s4 + $0x3e8] sm:$0xff]
      %v3630 = vld [vmem:[%s4 + $0x3f0] sm:$0xff]
      %v3631 = vld [vmem:[%s4 + $0x3f8] sm:$0xff]
      %v3632 = vld [vmem:[%s8 + $0xa] sm:$0xf]
      %v3634 = vlaneseq
      %v3635 = vshrl.u32 %v3634, 7
      %v3636 = vsub.s32 0, %v3635
      %v3637 = vrot.slane %v3632, %v3636
      %v3638 = vlaneseq
      %v3639 = vshrl.u32 %v3638, 7
      %v3640 = vsub.s32 1, %v3639
      %v3641 = vrot.slane %v3632, %v3640
      %v3642 = vlaneseq
      %v3643 = vshrl.u32 %v3642, 7
      %v3644 = vsub.s32 2, %v3643
      %v3645 = vrot.slane %v3632, %v3644
      %v3646 = vlaneseq
      %v3647 = vshrl.u32 %v3646, 7
      %v3648 = vsub.s32 3, %v3647
      %v3649 = vrot.slane %v3632, %v3648
      %v3782 = vunpack.c.l.b16 %v3504
      %v3783 = vunpack.c.h.b16 %v3504
      %v3784 = vunpack.c.l.b16 %v3505
      %v3785 = vunpack.c.h.b16 %v3505
      %v3786 = vunpack.c.l.b16 %v3506
      %v3787 = vunpack.c.h.b16 %v3506
      %v3788 = vunpack.c.l.b16 %v3507
      %v3789 = vunpack.c.h.b16 %v3507
      %v3790 = vunpack.c.l.b16 %v3508
      %v3791 = vunpack.c.h.b16 %v3508
      %v3792 = vunpack.c.l.b16 %v3509
      %v3793 = vunpack.c.h.b16 %v3509
      %v3794 = vunpack.c.l.b16 %v3510
      %v3795 = vunpack.c.h.b16 %v3510
      %v3796 = vunpack.c.l.b16 %v3511
      %v3797 = vunpack.c.h.b16 %v3511
      %v3798 = vunpack.c.l.b16 %v3512
      %v3799 = vunpack.c.h.b16 %v3512
      %v3800 = vunpack.c.l.b16 %v3513
      %v3801 = vunpack.c.h.b16 %v3513
      %v3802 = vunpack.c.l.b16 %v3514
      %v3803 = vunpack.c.h.b16 %v3514
      %v3804 = vunpack.c.l.b16 %v3515
      %v3805 = vunpack.c.h.b16 %v3515
      %v3806 = vunpack.c.l.b16 %v3516
      %v3807 = vunpack.c.h.b16 %v3516
      %v3808 = vunpack.c.l.b16 %v3517
      %v3809 = vunpack.c.h.b16 %v3517
      %v3810 = vunpack.c.l.b16 %v3518
      %v3811 = vunpack.c.h.b16 %v3518
      %v3812 = vunpack.c.l.b16 %v3519
      %v3813 = vunpack.c.h.b16 %v3519
      %v3814 = vunpack.c.l.b16 %v3520
      %v3815 = vunpack.c.h.b16 %v3520
      %v3816 = vunpack.c.l.b16 %v3521
      %v3817 = vunpack.c.h.b16 %v3521
      %v3818 = vunpack.c.l.b16 %v3522
      %v3819 = vunpack.c.h.b16 %v3522
      %v3820 = vunpack.c.l.b16 %v3523
      %v3821 = vunpack.c.h.b16 %v3523
      %v3822 = vunpack.c.l.b16 %v3524
      %v3823 = vunpack.c.h.b16 %v3524
      %v3824 = vunpack.c.l.b16 %v3525
      %v3825 = vunpack.c.h.b16 %v3525
      %v3826 = vunpack.c.l.b16 %v3526
      %v3827 = vunpack.c.h.b16 %v3526
      %v3828 = vunpack.c.l.b16 %v3527
      %v3829 = vunpack.c.h.b16 %v3527
      %v3830 = vunpack.c.l.b16 %v3528
      %v3831 = vunpack.c.h.b16 %v3528
      %v3832 = vunpack.c.l.b16 %v3529
      %v3833 = vunpack.c.h.b16 %v3529
      %v3834 = vunpack.c.l.b16 %v3530
      %v3835 = vunpack.c.h.b16 %v3530
      %v3836 = vunpack.c.l.b16 %v3531
      %v3837 = vunpack.c.h.b16 %v3531
      %v3838 = vunpack.c.l.b16 %v3532
      %v3839 = vunpack.c.h.b16 %v3532
      %v3840 = vunpack.c.l.b16 %v3533
      %v3841 = vunpack.c.h.b16 %v3533
      %v3842 = vunpack.c.l.b16 %v3534
      %v3843 = vunpack.c.h.b16 %v3534
      %v3844 = vunpack.c.l.b16 %v3535
      %v3845 = vunpack.c.h.b16 %v3535
      %v3846 = vunpack.c.l.b16 %v3536
      %v3847 = vunpack.c.h.b16 %v3536
      %v3848 = vunpack.c.l.b16 %v3537
      %v3849 = vunpack.c.h.b16 %v3537
      %v3850 = vunpack.c.l.b16 %v3538
      %v3851 = vunpack.c.h.b16 %v3538
      %v3852 = vunpack.c.l.b16 %v3539
      %v3853 = vunpack.c.h.b16 %v3539
      %v3854 = vunpack.c.l.b16 %v3540
      %v3855 = vunpack.c.h.b16 %v3540
      %v3856 = vunpack.c.l.b16 %v3541
      %v3857 = vunpack.c.h.b16 %v3541
      %v3858 = vunpack.c.l.b16 %v3542
      %v3859 = vunpack.c.h.b16 %v3542
      %v3860 = vunpack.c.l.b16 %v3543
      %v3861 = vunpack.c.h.b16 %v3543
      %v3862 = vunpack.c.l.b16 %v3544
      %v3863 = vunpack.c.h.b16 %v3544
      %v3864 = vunpack.c.l.b16 %v3545
      %v3865 = vunpack.c.h.b16 %v3545
      %v3866 = vunpack.c.l.b16 %v3546
      %v3867 = vunpack.c.h.b16 %v3546
      %v3868 = vunpack.c.l.b16 %v3547
      %v3869 = vunpack.c.h.b16 %v3547
      %v3870 = vunpack.c.l.b16 %v3548
      %v3871 = vunpack.c.h.b16 %v3548
      %v3872 = vunpack.c.l.b16 %v3549
      %v3873 = vunpack.c.h.b16 %v3549
      %v3874 = vunpack.c.l.b16 %v3550
      %v3875 = vunpack.c.h.b16 %v3550
      %v3876 = vunpack.c.l.b16 %v3551
      %v3877 = vunpack.c.h.b16 %v3551
      %v3878 = vunpack.c.l.b16 %v3552
      %v3879 = vunpack.c.h.b16 %v3552
      %v3880 = vunpack.c.l.b16 %v3553
      %v3881 = vunpack.c.h.b16 %v3553
      %v3882 = vunpack.c.l.b16 %v3554
      %v3883 = vunpack.c.h.b16 %v3554
      %v3884 = vunpack.c.l.b16 %v3555
      %v3885 = vunpack.c.h.b16 %v3555
      %v3886 = vunpack.c.l.b16 %v3556
      %v3887 = vunpack.c.h.b16 %v3556
      %v3888 = vunpack.c.l.b16 %v3557
      %v3889 = vunpack.c.h.b16 %v3557
      %v3890 = vunpack.c.l.b16 %v3558
      %v3891 = vunpack.c.h.b16 %v3558
      %v3892 = vunpack.c.l.b16 %v3559
      %v3893 = vunpack.c.h.b16 %v3559
      %v3894 = vunpack.c.l.b16 %v3560
      %v3895 = vunpack.c.h.b16 %v3560
      %v3896 = vunpack.c.l.b16 %v3561
      %v3897 = vunpack.c.h.b16 %v3561
      %v3898 = vunpack.c.l.b16 %v3562
      %v3899 = vunpack.c.h.b16 %v3562
      %v3900 = vunpack.c.l.b16 %v3563
      %v3901 = vunpack.c.h.b16 %v3563
      %v3902 = vunpack.c.l.b16 %v3564
      %v3903 = vunpack.c.h.b16 %v3564
      %v3904 = vunpack.c.l.b16 %v3565
      %v3905 = vunpack.c.h.b16 %v3565
      %v3906 = vunpack.c.l.b16 %v3566
      %v3907 = vunpack.c.h.b16 %v3566
      %v3908 = vunpack.c.l.b16 %v3567
      %v3909 = vunpack.c.h.b16 %v3567
      %v3910 = vunpack.c.l.b16 %v3568
      %v3911 = vunpack.c.h.b16 %v3568
      %v3912 = vunpack.c.l.b16 %v3569
      %v3913 = vunpack.c.h.b16 %v3569
      %v3914 = vunpack.c.l.b16 %v3570
      %v3915 = vunpack.c.h.b16 %v3570
      %v3916 = vunpack.c.l.b16 %v3571
      %v3917 = vunpack.c.h.b16 %v3571
      %v3918 = vunpack.c.l.b16 %v3572
      %v3919 = vunpack.c.h.b16 %v3572
      %v3920 = vunpack.c.l.b16 %v3573
      %v3921 = vunpack.c.h.b16 %v3573
      %v3922 = vunpack.c.l.b16 %v3574
      %v3923 = vunpack.c.h.b16 %v3574
      %v3924 = vunpack.c.l.b16 %v3575
      %v3925 = vunpack.c.h.b16 %v3575
      %v3926 = vunpack.c.l.b16 %v3576
      %v3927 = vunpack.c.h.b16 %v3576
      %v3928 = vunpack.c.l.b16 %v3577
      %v3929 = vunpack.c.h.b16 %v3577
      %v3930 = vunpack.c.l.b16 %v3578
      %v3931 = vunpack.c.h.b16 %v3578
      %v3932 = vunpack.c.l.b16 %v3579
      %v3933 = vunpack.c.h.b16 %v3579
      %v3934 = vunpack.c.l.b16 %v3580
      %v3935 = vunpack.c.h.b16 %v3580
      %v3936 = vunpack.c.l.b16 %v3581
      %v3937 = vunpack.c.h.b16 %v3581
      %v3938 = vunpack.c.l.b16 %v3582
      %v3939 = vunpack.c.h.b16 %v3582
      %v3940 = vunpack.c.l.b16 %v3583
      %v3941 = vunpack.c.h.b16 %v3583
      %v3942 = vunpack.c.l.b16 %v3584
      %v3943 = vunpack.c.h.b16 %v3584
      %v3944 = vunpack.c.l.b16 %v3585
      %v3945 = vunpack.c.h.b16 %v3585
      %v3946 = vunpack.c.l.b16 %v3586
      %v3947 = vunpack.c.h.b16 %v3586
      %v3948 = vunpack.c.l.b16 %v3587
      %v3949 = vunpack.c.h.b16 %v3587
      %v3950 = vunpack.c.l.b16 %v3588
      %v3951 = vunpack.c.h.b16 %v3588
      %v3952 = vunpack.c.l.b16 %v3589
      %v3953 = vunpack.c.h.b16 %v3589
      %v3954 = vunpack.c.l.b16 %v3590
      %v3955 = vunpack.c.h.b16 %v3590
      %v3956 = vunpack.c.l.b16 %v3591
      %v3957 = vunpack.c.h.b16 %v3591
      %v3958 = vunpack.c.l.b16 %v3592
      %v3959 = vunpack.c.h.b16 %v3592
      %v3960 = vunpack.c.l.b16 %v3593
      %v3961 = vunpack.c.h.b16 %v3593
      %v3962 = vunpack.c.l.b16 %v3594
      %v3963 = vunpack.c.h.b16 %v3594
      %v3964 = vunpack.c.l.b16 %v3595
      %v3965 = vunpack.c.h.b16 %v3595
      %v3966 = vunpack.c.l.b16 %v3596
      %v3967 = vunpack.c.h.b16 %v3596
      %v3968 = vunpack.c.l.b16 %v3597
      %v3969 = vunpack.c.h.b16 %v3597
      %v3970 = vunpack.c.l.b16 %v3598
      %v3971 = vunpack.c.h.b16 %v3598
      %v3972 = vunpack.c.l.b16 %v3599
      %v3973 = vunpack.c.h.b16 %v3599
      %v3974 = vunpack.c.l.b16 %v3600
      %v3975 = vunpack.c.h.b16 %v3600
      %v3976 = vunpack.c.l.b16 %v3601
      %v3977 = vunpack.c.h.b16 %v3601
      %v3978 = vunpack.c.l.b16 %v3602
      %v3979 = vunpack.c.h.b16 %v3602
      %v3980 = vunpack.c.l.b16 %v3603
      %v3981 = vunpack.c.h.b16 %v3603
      %v3982 = vunpack.c.l.b16 %v3604
      %v3983 = vunpack.c.h.b16 %v3604
      %v3984 = vunpack.c.l.b16 %v3605
      %v3985 = vunpack.c.h.b16 %v3605
      %v3986 = vunpack.c.l.b16 %v3606
      %v3987 = vunpack.c.h.b16 %v3606
      %v3988 = vunpack.c.l.b16 %v3607
      %v3989 = vunpack.c.h.b16 %v3607
      %v3990 = vunpack.c.l.b16 %v3608
      %v3991 = vunpack.c.h.b16 %v3608
      %v3992 = vunpack.c.l.b16 %v3609
      %v3993 = vunpack.c.h.b16 %v3609
      %v3994 = vunpack.c.l.b16 %v3610
      %v3995 = vunpack.c.h.b16 %v3610
      %v3996 = vunpack.c.l.b16 %v3611
      %v3997 = vunpack.c.h.b16 %v3611
      %v3998 = vunpack.c.l.b16 %v3612
      %v3999 = vunpack.c.h.b16 %v3612
      %v4000 = vunpack.c.l.b16 %v3613
      %v4001 = vunpack.c.h.b16 %v3613
      %v4002 = vunpack.c.l.b16 %v3614
      %v4003 = vunpack.c.h.b16 %v3614
      %v4004 = vunpack.c.l.b16 %v3615
      %v4005 = vunpack.c.h.b16 %v3615
      %v4006 = vunpack.c.l.b16 %v3616
      %v4007 = vunpack.c.h.b16 %v3616
      %v4008 = vunpack.c.l.b16 %v3617
      %v4009 = vunpack.c.h.b16 %v3617
      %v4010 = vunpack.c.l.b16 %v3618
      %v4011 = vunpack.c.h.b16 %v3618
      %v4012 = vunpack.c.l.b16 %v3619
      %v4013 = vunpack.c.h.b16 %v3619
      %v4014 = vunpack.c.l.b16 %v3620
      %v4015 = vunpack.c.h.b16 %v3620
      %v4016 = vunpack.c.l.b16 %v3621
      %v4017 = vunpack.c.h.b16 %v3621
      %v4018 = vunpack.c.l.b16 %v3622
      %v4019 = vunpack.c.h.b16 %v3622
      %v4020 = vunpack.c.l.b16 %v3623
      %v4021 = vunpack.c.h.b16 %v3623
      %v4022 = vunpack.c.l.b16 %v3624
      %v4023 = vunpack.c.h.b16 %v3624
      %v4024 = vunpack.c.l.b16 %v3625
      %v4025 = vunpack.c.h.b16 %v3625
      %v4026 = vunpack.c.l.b16 %v3626
      %v4027 = vunpack.c.h.b16 %v3626
      %v4028 = vunpack.c.l.b16 %v3627
      %v4029 = vunpack.c.h.b16 %v3627
      %v4030 = vunpack.c.l.b16 %v3628
      %v4031 = vunpack.c.h.b16 %v3628
      %v4032 = vunpack.c.l.b16 %v3629
      %v4033 = vunpack.c.h.b16 %v3629
      %v4034 = vunpack.c.l.b16 %v3630
      %v4035 = vunpack.c.h.b16 %v3630
      %v4036 = vunpack.c.l.b16 %v3631
      %v4037 = vunpack.c.h.b16 %v3631
      %v4038 = vpack.c.b16 %v3786, %v3782
      %v4039 = vpack.c.b16 %v3787, %v3783
      %v4040 = vpack.c.b16 %v3788, %v3784
      %v4041 = vpack.c.b16 %v3789, %v3785
      %v4042 = vpack.c.b16 %v3794, %v3790
      %v4043 = vpack.c.b16 %v3795, %v3791
      %v4044 = vpack.c.b16 %v3796, %v3792
      %v4045 = vpack.c.b16 %v3797, %v3793
      %v4046 = vpack.c.b16 %v3802, %v3798
      %v4047 = vpack.c.b16 %v3803, %v3799
      %v4048 = vpack.c.b16 %v3804, %v3800
      %v4049 = vpack.c.b16 %v3805, %v3801
      %v4050 = vpack.c.b16 %v3810, %v3806
      %v4051 = vpack.c.b16 %v3811, %v3807
      %v4052 = vpack.c.b16 %v3812, %v3808
      %v4053 = vpack.c.b16 %v3813, %v3809
      %v4054 = vpack.c.b16 %v3818, %v3814
      %v4055 = vpack.c.b16 %v3819, %v3815
      %v4056 = vpack.c.b16 %v3820, %v3816
      %v4057 = vpack.c.b16 %v3821, %v3817
      %v4058 = vpack.c.b16 %v3826, %v3822
      %v4059 = vpack.c.b16 %v3827, %v3823
      %v4060 = vpack.c.b16 %v3828, %v3824
      %v4061 = vpack.c.b16 %v3829, %v3825
      %v4062 = vpack.c.b16 %v3834, %v3830
      %v4063 = vpack.c.b16 %v3835, %v3831
      %v4064 = vpack.c.b16 %v3836, %v3832
      %v4065 = vpack.c.b16 %v3837, %v3833
      %v4066 = vpack.c.b16 %v3842, %v3838
      %v4067 = vpack.c.b16 %v3843, %v3839
      %v4068 = vpack.c.b16 %v3844, %v3840
      %v4069 = vpack.c.b16 %v3845, %v3841
      %v4070 = vpack.c.b16 %v3850, %v3846
      %v4071 = vpack.c.b16 %v3851, %v3847
      %v4072 = vpack.c.b16 %v3852, %v3848
      %v4073 = vpack.c.b16 %v3853, %v3849
      %v4074 = vpack.c.b16 %v3858, %v3854
      %v4075 = vpack.c.b16 %v3859, %v3855
      %v4076 = vpack.c.b16 %v3860, %v3856
      %v4077 = vpack.c.b16 %v3861, %v3857
      %v4078 = vpack.c.b16 %v3866, %v3862
      %v4079 = vpack.c.b16 %v3867, %v3863
      %v4080 = vpack.c.b16 %v3868, %v3864
      %v4081 = vpack.c.b16 %v3869, %v3865
      %v4082 = vpack.c.b16 %v3874, %v3870
      %v4083 = vpack.c.b16 %v3875, %v3871
      %v4084 = vpack.c.b16 %v3876, %v3872
      %v4085 = vpack.c.b16 %v3877, %v3873
      %v4086 = vpack.c.b16 %v3882, %v3878
      %v4087 = vpack.c.b16 %v3883, %v3879
      %v4088 = vpack.c.b16 %v3884, %v3880
      %v4089 = vpack.c.b16 %v3885, %v3881
      %v4090 = vpack.c.b16 %v3890, %v3886
      %v4091 = vpack.c.b16 %v3891, %v3887
      %v4092 = vpack.c.b16 %v3892, %v3888
      %v4093 = vpack.c.b16 %v3893, %v3889
      %v4094 = vpack.c.b16 %v3898, %v3894
      %v4095 = vpack.c.b16 %v3899, %v3895
      %v4096 = vpack.c.b16 %v3900, %v3896
      %v4097 = vpack.c.b16 %v3901, %v3897
      %v4098 = vpack.c.b16 %v3906, %v3902
      %v4099 = vpack.c.b16 %v3907, %v3903
      %v4100 = vpack.c.b16 %v3908, %v3904
      %v4101 = vpack.c.b16 %v3909, %v3905
      %v4102 = vpack.c.b16 %v3914, %v3910
      %v4103 = vpack.c.b16 %v3915, %v3911
      %v4104 = vpack.c.b16 %v3916, %v3912
      %v4105 = vpack.c.b16 %v3917, %v3913
      %v4106 = vpack.c.b16 %v3922, %v3918
      %v4107 = vpack.c.b16 %v3923, %v3919
      %v4108 = vpack.c.b16 %v3924, %v3920
      %v4109 = vpack.c.b16 %v3925, %v3921
      %v4110 = vpack.c.b16 %v3930, %v3926
      %v4111 = vpack.c.b16 %v3931, %v3927
      %v4112 = vpack.c.b16 %v3932, %v3928
      %v4113 = vpack.c.b16 %v3933, %v3929
      %v4114 = vpack.c.b16 %v3938, %v3934
      %v4115 = vpack.c.b16 %v3939, %v3935
      %v4116 = vpack.c.b16 %v3940, %v3936
      %v4117 = vpack.c.b16 %v3941, %v3937
      %v4118 = vpack.c.b16 %v3946, %v3942
      %v4119 = vpack.c.b16 %v3947, %v3943
      %v4120 = vpack.c.b16 %v3948, %v3944
      %v4121 = vpack.c.b16 %v3949, %v3945
      %v4122 = vpack.c.b16 %v3954, %v3950
      %v4123 = vpack.c.b16 %v3955, %v3951
      %v4124 = vpack.c.b16 %v3956, %v3952
      %v4125 = vpack.c.b16 %v3957, %v3953
      %v4126 = vpack.c.b16 %v3962, %v3958
      %v4127 = vpack.c.b16 %v3963, %v3959
      %v4128 = vpack.c.b16 %v3964, %v3960
      %v4129 = vpack.c.b16 %v3965, %v3961
      %v4130 = vpack.c.b16 %v3970, %v3966
      %v4131 = vpack.c.b16 %v3971, %v3967
      %v4132 = vpack.c.b16 %v3972, %v3968
      %v4133 = vpack.c.b16 %v3973, %v3969
      %v4134 = vpack.c.b16 %v3978, %v3974
      %v4135 = vpack.c.b16 %v3979, %v3975
      %v4136 = vpack.c.b16 %v3980, %v3976
      %v4137 = vpack.c.b16 %v3981, %v3977
      %v4138 = vpack.c.b16 %v3986, %v3982
      %v4139 = vpack.c.b16 %v3987, %v3983
      %v4140 = vpack.c.b16 %v3988, %v3984
      %v4141 = vpack.c.b16 %v3989, %v3985
      %v4142 = vpack.c.b16 %v3994, %v3990
      %v4143 = vpack.c.b16 %v3995, %v3991
      %v4144 = vpack.c.b16 %v3996, %v3992
      %v4145 = vpack.c.b16 %v3997, %v3993
      %v4146 = vpack.c.b16 %v4002, %v3998
      %v4147 = vpack.c.b16 %v4003, %v3999
      %v4148 = vpack.c.b16 %v4004, %v4000
      %v4149 = vpack.c.b16 %v4005, %v4001
      %v4150 = vpack.c.b16 %v4010, %v4006
      %v4151 = vpack.c.b16 %v4011, %v4007
      %v4152 = vpack.c.b16 %v4012, %v4008
      %v4153 = vpack.c.b16 %v4013, %v4009
      %v4154 = vpack.c.b16 %v4018, %v4014
      %v4155 = vpack.c.b16 %v4019, %v4015
      %v4156 = vpack.c.b16 %v4020, %v4016
      %v4157 = vpack.c.b16 %v4021, %v4017
      %v4158 = vpack.c.b16 %v4026, %v4022
      %v4159 = vpack.c.b16 %v4027, %v4023
      %v4160 = vpack.c.b16 %v4028, %v4024
      %v4161 = vpack.c.b16 %v4029, %v4025
      %v4162 = vpack.c.b16 %v4034, %v4030
      %v4163 = vpack.c.b16 %v4035, %v4031
      %v4164 = vpack.c.b16 %v4036, %v4032
      %v4165 = vpack.c.b16 %v4037, %v4033
      %4294 = vmatprep.subr.bf16.mxu0 %v4039
      %4295 = vmatpush1.bf16.msra.mxu0 %v4038
      %4296 = vmatprep.subr.bf16.mxu0 %v4043
      %4297 = vmatpush1.bf16.msra.mxu0 %v4042
      %4298 = vmatprep.subr.bf16.mxu0 %v4047
      %4299 = vmatpush1.bf16.msra.mxu0 %v4046
      %4300 = vmatprep.subr.bf16.mxu0 %v4051
      %4301 = vmatpush1.bf16.msra.mxu0 %v4050
      %4302 = vmatprep.subr.bf16.mxu0 %v4055
      %4303 = vmatpush1.bf16.msra.mxu0 %v4054
      %4304 = vmatprep.subr.bf16.mxu0 %v4059
      %4305 = vmatpush1.bf16.msra.mxu0 %v4058
      %4306 = vmatprep.subr.bf16.mxu0 %v4063
      %4307 = vmatpush1.bf16.msra.mxu0 %v4062
      %4308 = vmatprep.subr.bf16.mxu0 %v4067
      %4309 = vmatpush1.bf16.msra.mxu0 %v4066
      %4310 = vmatprep.subr.bf16.mxu0 %v4071
      %4311 = vmatpush1.bf16.msra.mxu0 %v4070
      %4312 = vmatprep.subr.bf16.mxu0 %v4075
      %4313 = vmatpush1.bf16.msra.mxu0 %v4074
      %4314 = vmatprep.subr.bf16.mxu0 %v4079
      %4315 = vmatpush1.bf16.msra.mxu0 %v4078
      %4316 = vmatprep.subr.bf16.mxu0 %v4083
      %4317 = vmatpush1.bf16.msra.mxu0 %v4082
      %4318 = vmatprep.subr.bf16.mxu0 %v4087
      %4319 = vmatpush1.bf16.msra.mxu0 %v4086
      %4320 = vmatprep.subr.bf16.mxu0 %v4091
      %4321 = vmatpush1.bf16.msra.mxu0 %v4090
      %4322 = vmatprep.subr.bf16.mxu0 %v4095
      %4323 = vmatpush1.bf16.msra.mxu0 %v4094
      %4324 = vmatprep.subr.bf16.mxu0 %v4099
      %4325 = vmatpush1.bf16.msra.mxu0 %v4098
      %4326 = vmatprep.mubr.bf16.mxu0 %v3441
      %4327 = vmatmul.mubr.bf16.gmra.mrb[0].mxu0 %v3440
      %v4328 = vpop.f32.mrb[0].mxu0
      %v4329 = vadd.f32 %v3637, %v4328
      %v4330 = vpop.f32.mrb[0].mxu0
      %v4331 = vadd.f32 %v3641, %v4330
      %v4332 = vpop.f32.mrb[0].mxu0
      %v4333 = vadd.f32 %v3637, %v4332
      %v4334 = vpop.f32.mrb[0].mxu0
      %v4335 = vadd.f32 %v3641, %v4334
      %4336 = vmatprep.mubr.bf16.mxu0 %v3445
      %4337 = vmatmul.mubr.bf16.gmra.mrb[0].mxu0 %v3444
      %v4338 = vpop.f32.mrb[0].mxu0
      %v4339 = vadd.f32 %v3637, %v4338
      %v4340 = vpop.f32.mrb[0].mxu0
      %v4341 = vadd.f32 %v3641, %v4340
      %v4342 = vpop.f32.mrb[0].mxu0
      %v4343 = vadd.f32 %v3637, %v4342
      %v4344 = vpop.f32.mrb[0].mxu0
      %v4345 = vadd.f32 %v3641, %v4344
      %4346 = vmatprep.mubr.bf16.mxu0 %v3449
      %4347 = vmatmul.mubr.bf16.gmra.mrb[0].mxu0 %v3448
      %v4348 = vpop.f32.mrb[0].mxu0
      %v4349 = vadd.f32 %v3637, %v4348
      %v4350 = vpop.f32.mrb[0].mxu0
      %v4351 = vadd.f32 %v3641, %v4350
      %v4352 = vpop.f32.mrb[0].mxu0
      %v4353 = vadd.f32 %v3637, %v4352
      %v4354 = vpop.f32.mrb[0].mxu0
      %v4355 = vadd.f32 %v3641, %v4354
      %4356 = vmatprep.mubr.bf16.mxu0 %v3453
      %4357 = vmatmul.mubr.bf16.gmra.mrb[0].mxu0 %v3452
      %v4358 = vpop.f32.mrb[0].mxu0
      %v4359 = vadd.f32 %v3637, %v4358
      %v4360 = vpop.f32.mrb[0].mxu0
      %v4361 = vadd.f32 %v3641, %v4360
      %v4362 = vpop.f32.mrb[0].mxu0
      %v4363 = vadd.f32 %v3637, %v4362
      %v4364 = vpop.f32.mrb[0].mxu0
      %v4365 = vadd.f32 %v3641, %v4364
      %4366 = vmatprep.mubr.bf16.mxu0 %v3457
      %4367 = vmatmul.mubr.bf16.gmra.mrb[0].mxu0 %v3456
      %v4368 = vpop.f32.mrb[0].mxu0
      %v4369 = vadd.f32 %v3637, %v4368
      %v4370 = vpop.f32.mrb[0].mxu0
      %v4371 = vadd.f32 %v3641, %v4370
      %v4372 = vpop.f32.mrb[0].mxu0
      %v4373 = vadd.f32 %v3637, %v4372
      %v4374 = vpop.f32.mrb[0].mxu0
      %v4375 = vadd.f32 %v3641, %v4374
      %4376 = vmatprep.mubr.bf16.mxu0 %v3461
      %4377 = vmatmul.mubr.bf16.gmra.mrb[0].mxu0 %v3460
      %v4378 = vpop.f32.mrb[0].mxu0
      %v4379 = vadd.f32 %v3637, %v4378
      %v4380 = vpop.f32.mrb[0].mxu0
      %v4381 = vadd.f32 %v3641, %v4380
      %v4382 = vpop.f32.mrb[0].mxu0
      %v4383 = vadd.f32 %v3637, %v4382
      %v4384 = vpop.f32.mrb[0].mxu0
      %v4385 = vadd.f32 %v3641, %v4384
      %4386 = vmatprep.mubr.bf16.mxu0 %v3465
      %4387 = vmatmul.mubr.bf16.gmra.mrb[0].mxu0 %v3464
      %v4388 = vpop.f32.mrb[0].mxu0
      %v4389 = vadd.f32 %v3637, %v4388
      %v4390 = vpop.f32.mrb[0].mxu0
      %v4391 = vadd.f32 %v3641, %v4390
      %v4392 = vpop.f32.mrb[0].mxu0
      %v4393 = vadd.f32 %v3637, %v4392
      %v4394 = vpop.f32.mrb[0].mxu0
      %v4395 = vadd.f32 %v3641, %v4394
      %4396 = vmatprep.mubr.bf16.mxu0 %v3469
      %4397 = vmatmul.mubr.bf16.gmra.mrb[0].mxu0 %v3468
      %v4398 = vpop.f32.mrb[0].mxu0
      %v4399 = vadd.f32 %v3637, %v4398
      %v4400 = vpop.f32.mrb[0].mxu0
      %v4401 = vadd.f32 %v3641, %v4400
      %v4402 = vpop.f32.mrb[0].mxu0
      %v4403 = vadd.f32 %v3637, %v4402
      %v4404 = vpop.f32.mrb[0].mxu0
      %v4405 = vadd.f32 %v3641, %v4404
      %4406 = vmatprep.mubr.bf16.mxu0 %v3473
      %4407 = vmatmul.mubr.bf16.gmra.mrb[0].mxu0 %v3472
      %v4408 = vpop.f32.mrb[0].mxu0
      %v4409 = vadd.f32 %v3637, %v4408
      %v4410 = vpop.f32.mrb[0].mxu0
      %v4411 = vadd.f32 %v3641, %v4410
      %v4412 = vpop.f32.mrb[0].mxu0
      %v4413 = vadd.f32 %v3637, %v4412
      %v4414 = vpop.f32.mrb[0].mxu0
      %v4415 = vadd.f32 %v3641, %v4414
      %4416 = vmatprep.mubr.bf16.mxu0 %v3477
      %4417 = vmatmul.mubr.bf16.gmra.mrb[0].mxu0 %v3476
      %v4418 = vpop.f32.mrb[0].mxu0
      %v4419 = vadd.f32 %v3637, %v4418
      %v4420 = vpop.f32.mrb[0].mxu0
      %v4421 = vadd.f32 %v3641, %v4420
      %v4422 = vpop.f32.mrb[0].mxu0
      %v4423 = vadd.f32 %v3637, %v4422
      %v4424 = vpop.f32.mrb[0].mxu0
      %v4425 = vadd.f32 %v3641, %v4424
      %4426 = vmatprep.mubr.bf16.mxu0 %v3481
      %4427 = vmatmul.mubr.bf16.gmra.mrb[0].mxu0 %v3480
      %v4428 = vpop.f32.mrb[0].mxu0
      %v4429 = vadd.f32 %v3637, %v4428
      %v4430 = vpop.f32.mrb[0].mxu0
      %v4431 = vadd.f32 %v3641, %v4430
      %v4432 = vpop.f32.mrb[0].mxu0
      %v4433 = vadd.f32 %v3637, %v4432
      %v4434 = vpop.f32.mrb[0].mxu0
      %v4435 = vadd.f32 %v3641, %v4434
      %4436 = vmatprep.mubr.bf16.mxu0 %v3485
      %4437 = vmatmul.mubr.bf16.gmra.mrb[0].mxu0 %v3484
      %v4438 = vpop.f32.mrb[0].mxu0
      %v4439 = vadd.f32 %v3637, %v4438
      %v4440 = vpop.f32.mrb[0].mxu0
      %v4441 = vadd.f32 %v3641, %v4440
      %v4442 = vpop.f32.mrb[0].mxu0
      %v4443 = vadd.f32 %v3637, %v4442
      %v4444 = vpop.f32.mrb[0].mxu0
      %v4445 = vadd.f32 %v3641, %v4444
      %4446 = vmatprep.mubr.bf16.mxu0 %v3489
      %4447 = vmatmul.mubr.bf16.gmra.mrb[0].mxu0 %v3488
      %v4448 = vpop.f32.mrb[0].mxu0
      %v4449 = vadd.f32 %v3637, %v4448
      %v4450 = vpop.f32.mrb[0].mxu0
      %v4451 = vadd.f32 %v3641, %v4450
      %v4452 = vpop.f32.mrb[0].mxu0
      %v4453 = vadd.f32 %v3637, %v4452
      %v4454 = vpop.f32.mrb[0].mxu0
      %v4455 = vadd.f32 %v3641, %v4454
      %4456 = vmatprep.mubr.bf16.mxu0 %v3493
      %4457 = vmatmul.mubr.bf16.gmra.mrb[0].mxu0 %v3492
      %v4458 = vpop.f32.mrb[0].mxu0
      %v4459 = vadd.f32 %v3637, %v4458
      %v4460 = vpop.f32.mrb[0].mxu0
      %v4461 = vadd.f32 %v3641, %v4460
      %v4462 = vpop.f32.mrb[0].mxu0
      %v4463 = vadd.f32 %v3637, %v4462
      %v4464 = vpop.f32.mrb[0].mxu0
      %v4465 = vadd.f32 %v3641, %v4464
      %4466 = vmatprep.mubr.bf16.mxu0 %v3497
      %4467 = vmatmul.mubr.bf16.gmra.mrb[0].mxu0 %v3496
      %v4468 = vpop.f32.mrb[0].mxu0
      %v4469 = vadd.f32 %v3637, %v4468
      %v4470 = vpop.f32.mrb[0].mxu0
      %v4471 = vadd.f32 %v3641, %v4470
      %v4472 = vpop.f32.mrb[0].mxu0
      %v4473 = vadd.f32 %v3637, %v4472
      %v4474 = vpop.f32.mrb[0].mxu0
      %v4475 = vadd.f32 %v3641, %v4474
      %4476 = vmatprep.mubr.bf16.mxu0 %v3501
      %4477 = vmatmul.mubr.bf16.gmra.mrb[0].mxu0 %v3500
      %v4478 = vpop.f32.mrb[0].mxu0
      %v4479 = vadd.f32 %v3637, %v4478
      %v4480 = vpop.f32.mrb[0].mxu0
      %v4481 = vadd.f32 %v3641, %v4480
      %v4482 = vpop.f32.mrb[0].mxu0
      %v4483 = vadd.f32 %v3637, %v4482
      %v4484 = vpop.f32.mrb[0].mxu0
      %v4485 = vadd.f32 %v3641, %v4484
      %4486 = vdwg.mxu0
      %4487 = vmatprep.subr.bf16.mxu0 %v4103
      %4488 = vmatpush1.bf16.msra.mxu0 %v4102
      %4489 = vmatprep.subr.bf16.mxu0 %v4107
      %4490 = vmatpush1.bf16.msra.mxu0 %v4106
      %4491 = vmatprep.subr.bf16.mxu0 %v4111
      %4492 = vmatpush1.bf16.msra.mxu0 %v4110
      %4493 = vmatprep.subr.bf16.mxu0 %v4115
      %4494 = vmatpush1.bf16.msra.mxu0 %v4114
      %4495 = vmatprep.subr.bf16.mxu0 %v4119
      %4496 = vmatpush1.bf16.msra.mxu0 %v4118
      %4497 = vmatprep.subr.bf16.mxu0 %v4123
      %4498 = vmatpush1.bf16.msra.mxu0 %v4122
      %4499 = vmatprep.subr.bf16.mxu0 %v4127
      %4500 = vmatpush1.bf16.msra.mxu0 %v4126
      %4501 = vmatprep.subr.bf16.mxu0 %v4131
      %4502 = vmatpush1.bf16.msra.mxu0 %v4130
      %4503 = vmatprep.subr.bf16.mxu0 %v4135
      %4504 = vmatpush1.bf16.msra.mxu0 %v4134
      %4505 = vmatprep.subr.bf16.mxu0 %v4139
      %4506 = vmatpush1.bf16.msra.mxu0 %v4138
      %4507 = vmatprep.subr.bf16.mxu0 %v4143
      %4508 = vmatpush1.bf16.msra.mxu0 %v4142
      %4509 = vmatprep.subr.bf16.mxu0 %v4147
      %4510 = vmatpush1.bf16.msra.mxu0 %v4146
      %4511 = vmatprep.subr.bf16.mxu0 %v4151
      %4512 = vmatpush1.bf16.msra.mxu0 %v4150
      %4513 = vmatprep.subr.bf16.mxu0 %v4155
      %4514 = vmatpush1.bf16.msra.mxu0 %v4154
      %4515 = vmatprep.subr.bf16.mxu0 %v4159
      %4516 = vmatpush1.bf16.msra.mxu0 %v4158
      %4517 = vmatprep.subr.bf16.mxu0 %v4163
      %4518 = vmatpush1.bf16.msra.mxu0 %v4162
      %4519 = vmatprep.mubr.bf16.mxu0 %v3443
      %4520 = vmatmul.mubr.bf16.gmra.mrb[0].mxu0 %v3442
      %v4521 = vpop.f32.mrb[0].mxu0
      %v4522 = vadd.f32 %v4329, %v4521
      %v4523 = vpop.f32.mrb[0].mxu0
      %v4524 = vadd.f32 %v4331, %v4523
      %v4525 = vpop.f32.mrb[0].mxu0
      %v4526 = vadd.f32 %v4333, %v4525
      %v4527 = vpop.f32.mrb[0].mxu0
      %v4528 = vadd.f32 %v4335, %v4527
      %4529 = vmatprep.mubr.bf16.mxu0 %v3447
      %4530 = vmatmul.mubr.bf16.gmra.mrb[0].mxu0 %v3446
      %v4531 = vpop.f32.mrb[0].mxu0
      %v4532 = vadd.f32 %v4339, %v4531
      %v4533 = vpop.f32.mrb[0].mxu0
      %v4534 = vadd.f32 %v4341, %v4533
      %v4535 = vpop.f32.mrb[0].mxu0
      %v4536 = vadd.f32 %v4343, %v4535
      %v4537 = vpop.f32.mrb[0].mxu0
      %v4538 = vadd.f32 %v4345, %v4537
      %4539 = vmatprep.mubr.bf16.mxu0 %v3451
      %4540 = vmatmul.mubr.bf16.gmra.mrb[0].mxu0 %v3450
      %v4541 = vpop.f32.mrb[0].mxu0
      %v4542 = vadd.f32 %v4349, %v4541
      %v4543 = vpop.f32.mrb[0].mxu0
      %v4544 = vadd.f32 %v4351, %v4543
      %v4545 = vpop.f32.mrb[0].mxu0
      %v4546 = vadd.f32 %v4353, %v4545
      %v4547 = vpop.f32.mrb[0].mxu0
      %v4548 = vadd.f32 %v4355, %v4547
      %4549 = vmatprep.mubr.bf16.mxu0 %v3455
      %4550 = vmatmul.mubr.bf16.gmra.mrb[0].mxu0 %v3454
      %v4551 = vpop.f32.mrb[0].mxu0
      %v4552 = vadd.f32 %v4359, %v4551
      %v4553 = vpop.f32.mrb[0].mxu0
      %v4554 = vadd.f32 %v4361, %v4553
      %v4555 = vpop.f32.mrb[0].mxu0
      %v4556 = vadd.f32 %v4363, %v4555
      %v4557 = vpop.f32.mrb[0].mxu0
      %v4558 = vadd.f32 %v4365, %v4557
      %4559 = vmatprep.mubr.bf16.mxu0 %v3459
      %4560 = vmatmul.mubr.bf16.gmra.mrb[0].mxu0 %v3458
      %v4561 = vpop.f32.mrb[0].mxu0
      %v4562 = vadd.f32 %v4369, %v4561
      %v4563 = vpop.f32.mrb[0].mxu0
      %v4564 = vadd.f32 %v4371, %v4563
      %v4565 = vpop.f32.mrb[0].mxu0
      %v4566 = vadd.f32 %v4373, %v4565
      %v4567 = vpop.f32.mrb[0].mxu0
      %v4568 = vadd.f32 %v4375, %v4567
      %4569 = vmatprep.mubr.bf16.mxu0 %v3463
      %4570 = vmatmul.mubr.bf16.gmra.mrb[0].mxu0 %v3462
      %v4571 = vpop.f32.mrb[0].mxu0
      %v4572 = vadd.f32 %v4379, %v4571
      %v4573 = vpop.f32.mrb[0].mxu0
      %v4574 = vadd.f32 %v4381, %v4573
      %v4575 = vpop.f32.mrb[0].mxu0
      %v4576 = vadd.f32 %v4383, %v4575
      %v4577 = vpop.f32.mrb[0].mxu0
      %v4578 = vadd.f32 %v4385, %v4577
      %4579 = vmatprep.mubr.bf16.mxu0 %v3467
      %4580 = vmatmul.mubr.bf16.gmra.mrb[0].mxu0 %v3466
      %v4581 = vpop.f32.mrb[0].mxu0
      %v4582 = vadd.f32 %v4389, %v4581
      %v4583 = vpop.f32.mrb[0].mxu0
      %v4584 = vadd.f32 %v4391, %v4583
      %v4585 = vpop.f32.mrb[0].mxu0
      %v4586 = vadd.f32 %v4393, %v4585
      %v4587 = vpop.f32.mrb[0].mxu0
      %v4588 = vadd.f32 %v4395, %v4587
      %4589 = vmatprep.mubr.bf16.mxu0 %v3471
      %4590 = vmatmul.mubr.bf16.gmra.mrb[0].mxu0 %v3470
      %v4591 = vpop.f32.mrb[0].mxu0
      %v4592 = vadd.f32 %v4399, %v4591
      %v4593 = vpop.f32.mrb[0].mxu0
      %v4594 = vadd.f32 %v4401, %v4593
      %v4595 = vpop.f32.mrb[0].mxu0
      %v4596 = vadd.f32 %v4403, %v4595
      %v4597 = vpop.f32.mrb[0].mxu0
      %v4598 = vadd.f32 %v4405, %v4597
      %4599 = vmatprep.mubr.bf16.mxu0 %v3475
      %4600 = vmatmul.mubr.bf16.gmra.mrb[0].mxu0 %v3474
      %v4601 = vpop.f32.mrb[0].mxu0
      %v4602 = vadd.f32 %v4409, %v4601
      %v4603 = vpop.f32.mrb[0].mxu0
      %v4604 = vadd.f32 %v4411, %v4603
      %v4605 = vpop.f32.mrb[0].mxu0
      %v4606 = vadd.f32 %v4413, %v4605
      %v4607 = vpop.f32.mrb[0].mxu0
      %v4608 = vadd.f32 %v4415, %v4607
      %4609 = vmatprep.mubr.bf16.mxu0 %v3479
      %4610 = vmatmul.mubr.bf16.gmra.mrb[0].mxu0 %v3478
      %v4611 = vpop.f32.mrb[0].mxu0
      %v4612 = vadd.f32 %v4419, %v4611
      %v4613 = vpop.f32.mrb[0].mxu0
      %v4614 = vadd.f32 %v4421, %v4613
      %v4615 = vpop.f32.mrb[0].mxu0
      %v4616 = vadd.f32 %v4423, %v4615
      %v4617 = vpop.f32.mrb[0].mxu0
      %v4618 = vadd.f32 %v4425, %v4617
      %4619 = vmatprep.mubr.bf16.mxu0 %v3483
      %4620 = vmatmul.mubr.bf16.gmra.mrb[0].mxu0 %v3482
      %v4621 = vpop.f32.mrb[0].mxu0
      %v4622 = vadd.f32 %v4429, %v4621
      %v4623 = vpop.f32.mrb[0].mxu0
      %v4624 = vadd.f32 %v4431, %v4623
      %v4625 = vpop.f32.mrb[0].mxu0
      %v4626 = vadd.f32 %v4433, %v4625
      %v4627 = vpop.f32.mrb[0].mxu0
      %v4628 = vadd.f32 %v4435, %v4627
      %4629 = vmatprep.mubr.bf16.mxu0 %v3487
      %4630 = vmatmul.mubr.bf16.gmra.mrb[0].mxu0 %v3486
      %v4631 = vpop.f32.mrb[0].mxu0
      %v4632 = vadd.f32 %v4439, %v4631
      %v4633 = vpop.f32.mrb[0].mxu0
      %v4634 = vadd.f32 %v4441, %v4633
      %v4635 = vpop.f32.mrb[0].mxu0
      %v4636 = vadd.f32 %v4443, %v4635
      %v4637 = vpop.f32.mrb[0].mxu0
      %v4638 = vadd.f32 %v4445, %v4637
      %4639 = vmatprep.mubr.bf16.mxu0 %v3491
      %4640 = vmatmul.mubr.bf16.gmra.mrb[0].mxu0 %v3490
      %v4641 = vpop.f32.mrb[0].mxu0
      %v4642 = vadd.f32 %v4449, %v4641
      %v4643 = vpop.f32.mrb[0].mxu0
      %v4644 = vadd.f32 %v4451, %v4643
      %v4645 = vpop.f32.mrb[0].mxu0
      %v4646 = vadd.f32 %v4453, %v4645
      %v4647 = vpop.f32.mrb[0].mxu0
      %v4648 = vadd.f32 %v4455, %v4647
      %4649 = vmatprep.mubr.bf16.mxu0 %v3495
      %4650 = vmatmul.mubr.bf16.gmra.mrb[0].mxu0 %v3494
      %v4651 = vpop.f32.mrb[0].mxu0
      %v4652 = vadd.f32 %v4459, %v4651
      %v4653 = vpop.f32.mrb[0].mxu0
      %v4654 = vadd.f32 %v4461, %v4653
      %v4655 = vpop.f32.mrb[0].mxu0
      %v4656 = vadd.f32 %v4463, %v4655
      %v4657 = vpop.f32.mrb[0].mxu0
      %v4658 = vadd.f32 %v4465, %v4657
      %4659 = vmatprep.mubr.bf16.mxu0 %v3499
      %4660 = vmatmul.mubr.bf16.gmra.mrb[0].mxu0 %v3498
      %v4661 = vpop.f32.mrb[0].mxu0
      %v4662 = vadd.f32 %v4469, %v4661
      %v4663 = vpop.f32.mrb[0].mxu0
      %v4664 = vadd.f32 %v4471, %v4663
      %v4665 = vpop.f32.mrb[0].mxu0
      %v4666 = vadd.f32 %v4473, %v4665
      %v4667 = vpop.f32.mrb[0].mxu0
      %v4668 = vadd.f32 %v4475, %v4667
      %4669 = vmatprep.mubr.bf16.mxu0 %v3503
      %4670 = vmatmul.mubr.bf16.gmra.mrb[0].mxu0 %v3502
      %v4671 = vpop.f32.mrb[0].mxu0
      %v4672 = vadd.f32 %v4479, %v4671
      %v4673 = vpop.f32.mrb[0].mxu0
      %v4674 = vadd.f32 %v4481, %v4673
      %v4675 = vpop.f32.mrb[0].mxu0
      %v4676 = vadd.f32 %v4483, %v4675
      %v4677 = vpop.f32.mrb[0].mxu0
      %v4678 = vadd.f32 %v4485, %v4677
      %4679 = vdwg.mxu0
      %4680 = vmatprep.subr.bf16.mxu0 %v4041
      %4681 = vmatpush1.bf16.msra.mxu0 %v4040
      %4682 = vmatprep.subr.bf16.mxu0 %v4045
      %4683 = vmatpush1.bf16.msra.mxu0 %v4044
      %4684 = vmatprep.subr.bf16.mxu0 %v4049
      %4685 = vmatpush1.bf16.msra.mxu0 %v4048
      %4686 = vmatprep.subr.bf16.mxu0 %v4053
      %4687 = vmatpush1.bf16.msra.mxu0 %v4052
      %4688 = vmatprep.subr.bf16.mxu0 %v4057
      %4689 = vmatpush1.bf16.msra.mxu0 %v4056
      %4690 = vmatprep.subr.bf16.mxu0 %v4061
      %4691 = vmatpush1.bf16.msra.mxu0 %v4060
      %4692 = vmatprep.subr.bf16.mxu0 %v4065
      %4693 = vmatpush1.bf16.msra.mxu0 %v4064
      %4694 = vmatprep.subr.bf16.mxu0 %v4069
      %4695 = vmatpush1.bf16.msra.mxu0 %v4068
      %4696 = vmatprep.subr.bf16.mxu0 %v4073
      %4697 = vmatpush1.bf16.msra.mxu0 %v4072
      %4698 = vmatprep.subr.bf16.mxu0 %v4077
      %4699 = vmatpush1.bf16.msra.mxu0 %v4076
      %4700 = vmatprep.subr.bf16.mxu0 %v4081
      %4701 = vmatpush1.bf16.msra.mxu0 %v4080
      %4702 = vmatprep.subr.bf16.mxu0 %v4085
      %4703 = vmatpush1.bf16.msra.mxu0 %v4084
      %4704 = vmatprep.subr.bf16.mxu0 %v4089
      %4705 = vmatpush1.bf16.msra.mxu0 %v4088
      %4706 = vmatprep.subr.bf16.mxu0 %v4093
      %4707 = vmatpush1.bf16.msra.mxu0 %v4092
      %4708 = vmatprep.subr.bf16.mxu0 %v4097
      %4709 = vmatpush1.bf16.msra.mxu0 %v4096
      %4710 = vmatprep.subr.bf16.mxu0 %v4101
      %4711 = vmatpush1.bf16.msra.mxu0 %v4100
      %4712 = vmatprep.mubr.bf16.mxu0 %v3441
      %4713 = vmatmul.mubr.bf16.gmra.mrb[0].mxu0 %v3440
      %v4714 = vpop.f32.mrb[0].mxu0
      %v4715 = vadd.f32 %v3645, %v4714
      %v4716 = vpop.f32.mrb[0].mxu0
      %v4717 = vadd.f32 %v3649, %v4716
      %v4718 = vpop.f32.mrb[0].mxu0
      %v4719 = vadd.f32 %v3645, %v4718
      %v4720 = vpop.f32.mrb[0].mxu0
      %v4721 = vadd.f32 %v3649, %v4720
      %4722 = vmatprep.mubr.bf16.mxu0 %v3445
      %4723 = vmatmul.mubr.bf16.gmra.mrb[0].mxu0 %v3444
      %v4724 = vpop.f32.mrb[0].mxu0
      %v4725 = vadd.f32 %v3645, %v4724
      %v4726 = vpop.f32.mrb[0].mxu0
      %v4727 = vadd.f32 %v3649, %v4726
      %v4728 = vpop.f32.mrb[0].mxu0
      %v4729 = vadd.f32 %v3645, %v4728
      %v4730 = vpop.f32.mrb[0].mxu0
      %v4731 = vadd.f32 %v3649, %v4730
      %4732 = vmatprep.mubr.bf16.mxu0 %v3449
      %4733 = vmatmul.mubr.bf16.gmra.mrb[0].mxu0 %v3448
      %v4734 = vpop.f32.mrb[0].mxu0
      %v4735 = vadd.f32 %v3645, %v4734
      %v4736 = vpop.f32.mrb[0].mxu0
      %v4737 = vadd.f32 %v3649, %v4736
      %v4738 = vpop.f32.mrb[0].mxu0
      %v4739 = vadd.f32 %v3645, %v4738
      %v4740 = vpop.f32.mrb[0].mxu0
      %v4741 = vadd.f32 %v3649, %v4740
      %4742 = vmatprep.mubr.bf16.mxu0 %v3453
      %4743 = vmatmul.mubr.bf16.gmra.mrb[0].mxu0 %v3452
      %v4744 = vpop.f32.mrb[0].mxu0
      %v4745 = vadd.f32 %v3645, %v4744
      %v4746 = vpop.f32.mrb[0].mxu0
      %v4747 = vadd.f32 %v3649, %v4746
      %v4748 = vpop.f32.mrb[0].mxu0
      %v4749 = vadd.f32 %v3645, %v4748
      %v4750 = vpop.f32.mrb[0].mxu0
      %v4751 = vadd.f32 %v3649, %v4750
      %4752 = vmatprep.mubr.bf16.mxu0 %v3457
      %4753 = vmatmul.mubr.bf16.gmra.mrb[0].mxu0 %v3456
      %v4754 = vpop.f32.mrb[0].mxu0
      %v4755 = vadd.f32 %v3645, %v4754
      %v4756 = vpop.f32.mrb[0].mxu0
      %v4757 = vadd.f32 %v3649, %v4756
      %v4758 = vpop.f32.mrb[0].mxu0
      %v4759 = vadd.f32 %v3645, %v4758
      %v4760 = vpop.f32.mrb[0].mxu0
      %v4761 = vadd.f32 %v3649, %v4760
      %4762 = vmatprep.mubr.bf16.mxu0 %v3461
      %4763 = vmatmul.mubr.bf16.gmra.mrb[0].mxu0 %v3460
      %v4764 = vpop.f32.mrb[0].mxu0
      %v4765 = vadd.f32 %v3645, %v4764
      %v4766 = vpop.f32.mrb[0].mxu0
      %v4767 = vadd.f32 %v3649, %v4766
      %v4768 = vpop.f32.mrb[0].mxu0
      %v4769 = vadd.f32 %v3645, %v4768
      %v4770 = vpop.f32.mrb[0].mxu0
      %v4771 = vadd.f32 %v3649, %v4770
      %4772 = vmatprep.mubr.bf16.mxu0 %v3465
      %4773 = vmatmul.mubr.bf16.gmra.mrb[0].mxu0 %v3464
      %v4774 = vpop.f32.mrb[0].mxu0
      %v4775 = vadd.f32 %v3645, %v4774
      %v4776 = vpop.f32.mrb[0].mxu0
      %v4777 = vadd.f32 %v3649, %v4776
      %v4778 = vpop.f32.mrb[0].mxu0
      %v4779 = vadd.f32 %v3645, %v4778
      %v4780 = vpop.f32.mrb[0].mxu0
      %v4781 = vadd.f32 %v3649, %v4780
      %4782 = vmatprep.mubr.bf16.mxu0 %v3469
      %4783 = vmatmul.mubr.bf16.gmra.mrb[0].mxu0 %v3468
      %v4784 = vpop.f32.mrb[0].mxu0
      %v4785 = vadd.f32 %v3645, %v4784
      %v4786 = vpop.f32.mrb[0].mxu0
      %v4787 = vadd.f32 %v3649, %v4786
      %v4788 = vpop.f32.mrb[0].mxu0
      %v4789 = vadd.f32 %v3645, %v4788
      %v4790 = vpop.f32.mrb[0].mxu0
      %v4791 = vadd.f32 %v3649, %v4790
      %4792 = vmatprep.mubr.bf16.mxu0 %v3473
      %4793 = vmatmul.mubr.bf16.gmra.mrb[0].mxu0 %v3472
      %v4794 = vpop.f32.mrb[0].mxu0
      %v4795 = vadd.f32 %v3645, %v4794
      %v4796 = vpop.f32.mrb[0].mxu0
      %v4797 = vadd.f32 %v3649, %v4796
      %v4798 = vpop.f32.mrb[0].mxu0
      %v4799 = vadd.f32 %v3645, %v4798
      %v4800 = vpop.f32.mrb[0].mxu0
      %v4801 = vadd.f32 %v3649, %v4800
      %4802 = vmatprep.mubr.bf16.mxu0 %v3477
      %4803 = vmatmul.mubr.bf16.gmra.mrb[0].mxu0 %v3476
      %v4804 = vpop.f32.mrb[0].mxu0
      %v4805 = vadd.f32 %v3645, %v4804
      %v4806 = vpop.f32.mrb[0].mxu0
      %v4807 = vadd.f32 %v3649, %v4806
      %v4808 = vpop.f32.mrb[0].mxu0
      %v4809 = vadd.f32 %v3645, %v4808
      %v4810 = vpop.f32.mrb[0].mxu0
      %v4811 = vadd.f32 %v3649, %v4810
      %4812 = vmatprep.mubr.bf16.mxu0 %v3481
      %4813 = vmatmul.mubr.bf16.gmra.mrb[0].mxu0 %v3480
      %v4814 = vpop.f32.mrb[0].mxu0
      %v4815 = vadd.f32 %v3645, %v4814
      %v4816 = vpop.f32.mrb[0].mxu0
      %v4817 = vadd.f32 %v3649, %v4816
      %v4818 = vpop.f32.mrb[0].mxu0
      %v4819 = vadd.f32 %v3645, %v4818
      %v4820 = vpop.f32.mrb[0].mxu0
      %v4821 = vadd.f32 %v3649, %v4820
      %4822 = vmatprep.mubr.bf16.mxu0 %v3485
      %4823 = vmatmul.mubr.bf16.gmra.mrb[0].mxu0 %v3484
      %v4824 = vpop.f32.mrb[0].mxu0
      %v4825 = vadd.f32 %v3645, %v4824
      %v4826 = vpop.f32.mrb[0].mxu0
      %v4827 = vadd.f32 %v3649, %v4826
      %v4828 = vpop.f32.mrb[0].mxu0
      %v4829 = vadd.f32 %v3645, %v4828
      %v4830 = vpop.f32.mrb[0].mxu0
      %v4831 = vadd.f32 %v3649, %v4830
      %4832 = vmatprep.mubr.bf16.mxu0 %v3489
      %4833 = vmatmul.mubr.bf16.gmra.mrb[0].mxu0 %v3488
      %v4834 = vpop.f32.mrb[0].mxu0
      %v4835 = vadd.f32 %v3645, %v4834
      %v4836 = vpop.f32.mrb[0].mxu0
      %v4837 = vadd.f32 %v3649, %v4836
      %v4838 = vpop.f32.mrb[0].mxu0
      %v4839 = vadd.f32 %v3645, %v4838
      %v4840 = vpop.f32.mrb[0].mxu0
      %v4841 = vadd.f32 %v3649, %v4840
      %4842 = vmatprep.mubr.bf16.mxu0 %v3493
      %4843 = vmatmul.mubr.bf16.gmra.mrb[0].mxu0 %v3492
      %v4844 = vpop.f32.mrb[0].mxu0
      %v4845 = vadd.f32 %v3645, %v4844
      %v4846 = vpop.f32.mrb[0].mxu0
      %v4847 = vadd.f32 %v3649, %v4846
      %v4848 = vpop.f32.mrb[0].mxu0
      %v4849 = vadd.f32 %v3645, %v4848
      %v4850 = vpop.f32.mrb[0].mxu0
      %v4851 = vadd.f32 %v3649, %v4850
      %4852 = vmatprep.mubr.bf16.mxu0 %v3497
      %4853 = vmatmul.mubr.bf16.gmra.mrb[0].mxu0 %v3496
      %v4854 = vpop.f32.mrb[0].mxu0
      %v4855 = vadd.f32 %v3645, %v4854
      %v4856 = vpop.f32.mrb[0].mxu0
      %v4857 = vadd.f32 %v3649, %v4856
      %v4858 = vpop.f32.mrb[0].mxu0
      %v4859 = vadd.f32 %v3645, %v4858
      %v4860 = vpop.f32.mrb[0].mxu0
      %v4861 = vadd.f32 %v3649, %v4860
      %4862 = vmatprep.mubr.bf16.mxu0 %v3501
      %4863 = vmatmul.mubr.bf16.gmra.mrb[0].mxu0 %v3500
      %v4864 = vpop.f32.mrb[0].mxu0
      %v4865 = vadd.f32 %v3645, %v4864
      %v4866 = vpop.f32.mrb[0].mxu0
      %v4867 = vadd.f32 %v3649, %v4866
      %v4868 = vpop.f32.mrb[0].mxu0
      %v4869 = vadd.f32 %v3645, %v4868
      %v4870 = vpop.f32.mrb[0].mxu0
      %v4871 = vadd.f32 %v3649, %v4870
      %4872 = vdwg.mxu0
      %4873 = vmatprep.subr.bf16.mxu0 %v4105
      %4874 = vmatpush1.bf16.msra.mxu0 %v4104
      %4875 = vmatprep.subr.bf16.mxu0 %v4109
      %4876 = vmatpush1.bf16.msra.mxu0 %v4108
      %4877 = vmatprep.subr.bf16.mxu0 %v4113
      %4878 = vmatpush1.bf16.msra.mxu0 %v4112
      %4879 = vmatprep.subr.bf16.mxu0 %v4117
      %4880 = vmatpush1.bf16.msra.mxu0 %v4116
      %4881 = vmatprep.subr.bf16.mxu0 %v4121
      %4882 = vmatpush1.bf16.msra.mxu0 %v4120
      %4883 = vmatprep.subr.bf16.mxu0 %v4125
      %4884 = vmatpush1.bf16.msra.mxu0 %v4124
      %4885 = vmatprep.subr.bf16.mxu0 %v4129
      %4886 = vmatpush1.bf16.msra.mxu0 %v4128
      %4887 = vmatprep.subr.bf16.mxu0 %v4133
      %4888 = vmatpush1.bf16.msra.mxu0 %v4132
      %4889 = vmatprep.subr.bf16.mxu0 %v4137
      %4890 = vmatpush1.bf16.msra.mxu0 %v4136
      %4891 = vmatprep.subr.bf16.mxu0 %v4141
      %4892 = vmatpush1.bf16.msra.mxu0 %v4140
      %4893 = vmatprep.subr.bf16.mxu0 %v4145
      %4894 = vmatpush1.bf16.msra.mxu0 %v4144
      %4895 = vmatprep.subr.bf16.mxu0 %v4149
      %4896 = vmatpush1.bf16.msra.mxu0 %v4148
      %4897 = vmatprep.subr.bf16.mxu0 %v4153
      %4898 = vmatpush1.bf16.msra.mxu0 %v4152
      %4899 = vmatprep.subr.bf16.mxu0 %v4157
      %4900 = vmatpush1.bf16.msra.mxu0 %v4156
      %4901 = vmatprep.subr.bf16.mxu0 %v4161
      %4902 = vmatpush1.bf16.msra.mxu0 %v4160
      %4903 = vmatprep.subr.bf16.mxu0 %v4165
      %4904 = vmatpush1.bf16.msra.mxu0 %v4164
      %4905 = vmatprep.mubr.bf16.mxu0 %v3443
      %4906 = vmatmul.mubr.bf16.gmra.mrb[0].mxu0 %v3442
      %v4907 = vpop.f32.mrb[0].mxu0
      %v4908 = vadd.f32 %v4715, %v4907
      %v4909 = vpop.f32.mrb[0].mxu0
      %v4910 = vadd.f32 %v4717, %v4909
      %v4911 = vpop.f32.mrb[0].mxu0
      %v4912 = vadd.f32 %v4719, %v4911
      %v4913 = vpop.f32.mrb[0].mxu0
      %v4914 = vadd.f32 %v4721, %v4913
      %4915 = vmatprep.mubr.bf16.mxu0 %v3447
      %4916 = vmatmul.mubr.bf16.gmra.mrb[0].mxu0 %v3446
      %v4917 = vpop.f32.mrb[0].mxu0
      %v4918 = vadd.f32 %v4725, %v4917
      %v4919 = vpop.f32.mrb[0].mxu0
      %v4920 = vadd.f32 %v4727, %v4919
      %v4921 = vpop.f32.mrb[0].mxu0
      %v4922 = vadd.f32 %v4729, %v4921
      %v4923 = vpop.f32.mrb[0].mxu0
      %v4924 = vadd.f32 %v4731, %v4923
      %4925 = vmatprep.mubr.bf16.mxu0 %v3451
      %4926 = vmatmul.mubr.bf16.gmra.mrb[0].mxu0 %v3450
      %v4927 = vpop.f32.mrb[0].mxu0
      %v4928 = vadd.f32 %v4735, %v4927
      %v4929 = vpop.f32.mrb[0].mxu0
      %v4930 = vadd.f32 %v4737, %v4929
      %v4931 = vpop.f32.mrb[0].mxu0
      %v4932 = vadd.f32 %v4739, %v4931
      %v4933 = vpop.f32.mrb[0].mxu0
      %v4934 = vadd.f32 %v4741, %v4933
      %4935 = vmatprep.mubr.bf16.mxu0 %v3455
      %4936 = vmatmul.mubr.bf16.gmra.mrb[0].mxu0 %v3454
      %v4937 = vpop.f32.mrb[0].mxu0
      %v4938 = vadd.f32 %v4745, %v4937
      %v4939 = vpop.f32.mrb[0].mxu0
      %v4940 = vadd.f32 %v4747, %v4939
      %v4941 = vpop.f32.mrb[0].mxu0
      %v4942 = vadd.f32 %v4749, %v4941
      %v4943 = vpop.f32.mrb[0].mxu0
      %v4944 = vadd.f32 %v4751, %v4943
      %4945 = vmatprep.mubr.bf16.mxu0 %v3459
      %4946 = vmatmul.mubr.bf16.gmra.mrb[0].mxu0 %v3458
      %v4947 = vpop.f32.mrb[0].mxu0
      %v4948 = vadd.f32 %v4755, %v4947
      %v4949 = vpop.f32.mrb[0].mxu0
      %v4950 = vadd.f32 %v4757, %v4949
      %v4951 = vpop.f32.mrb[0].mxu0
      %v4952 = vadd.f32 %v4759, %v4951
      %v4953 = vpop.f32.mrb[0].mxu0
      %v4954 = vadd.f32 %v4761, %v4953
      %4955 = vmatprep.mubr.bf16.mxu0 %v3463
      %4956 = vmatmul.mubr.bf16.gmra.mrb[0].mxu0 %v3462
      %v4957 = vpop.f32.mrb[0].mxu0
      %v4958 = vadd.f32 %v4765, %v4957
      %v4959 = vpop.f32.mrb[0].mxu0
      %v4960 = vadd.f32 %v4767, %v4959
      %v4961 = vpop.f32.mrb[0].mxu0
      %v4962 = vadd.f32 %v4769, %v4961
      %v4963 = vpop.f32.mrb[0].mxu0
      %v4964 = vadd.f32 %v4771, %v4963
      %4965 = vmatprep.mubr.bf16.mxu0 %v3467
      %4966 = vmatmul.mubr.bf16.gmra.mrb[0].mxu0 %v3466
      %v4967 = vpop.f32.mrb[0].mxu0
      %v4968 = vadd.f32 %v4775, %v4967
      %v4969 = vpop.f32.mrb[0].mxu0
      %v4970 = vadd.f32 %v4777, %v4969
      %v4971 = vpop.f32.mrb[0].mxu0
      %v4972 = vadd.f32 %v4779, %v4971
      %v4973 = vpop.f32.mrb[0].mxu0
      %v4974 = vadd.f32 %v4781, %v4973
      %4975 = vmatprep.mubr.bf16.mxu0 %v3471
      %4976 = vmatmul.mubr.bf16.gmra.mrb[0].mxu0 %v3470
      %v4977 = vpop.f32.mrb[0].mxu0
      %v4978 = vadd.f32 %v4785, %v4977
      %v4979 = vpop.f32.mrb[0].mxu0
      %v4980 = vadd.f32 %v4787, %v4979
      %v4981 = vpop.f32.mrb[0].mxu0
      %v4982 = vadd.f32 %v4789, %v4981
      %v4983 = vpop.f32.mrb[0].mxu0
      %v4984 = vadd.f32 %v4791, %v4983
      %4985 = vmatprep.mubr.bf16.mxu0 %v3475
      %4986 = vmatmul.mubr.bf16.gmra.mrb[0].mxu0 %v3474
      %v4987 = vpop.f32.mrb[0].mxu0
      %v4988 = vadd.f32 %v4795, %v4987
      %v4989 = vpop.f32.mrb[0].mxu0
      %v4990 = vadd.f32 %v4797, %v4989
      %v4991 = vpop.f32.mrb[0].mxu0
      %v4992 = vadd.f32 %v4799, %v4991
      %v4993 = vpop.f32.mrb[0].mxu0
      %v4994 = vadd.f32 %v4801, %v4993
      %4995 = vmatprep.mubr.bf16.mxu0 %v3479
      %4996 = vmatmul.mubr.bf16.gmra.mrb[0].mxu0 %v3478
      %v4997 = vpop.f32.mrb[0].mxu0
      %v4998 = vadd.f32 %v4805, %v4997
      %v4999 = vpop.f32.mrb[0].mxu0
      %v5000 = vadd.f32 %v4807, %v4999
      %v5001 = vpop.f32.mrb[0].mxu0
      %v5002 = vadd.f32 %v4809, %v5001
      %v5003 = vpop.f32.mrb[0].mxu0
      %v5004 = vadd.f32 %v4811, %v5003
      %5005 = vmatprep.mubr.bf16.mxu0 %v3483
      %5006 = vmatmul.mubr.bf16.gmra.mrb[0].mxu0 %v3482
      %v5007 = vpop.f32.mrb[0].mxu0
      %v5008 = vadd.f32 %v4815, %v5007
      %v5009 = vpop.f32.mrb[0].mxu0
      %v5010 = vadd.f32 %v4817, %v5009
      %v5011 = vpop.f32.mrb[0].mxu0
      %v5012 = vadd.f32 %v4819, %v5011
      %v5013 = vpop.f32.mrb[0].mxu0
      %v5014 = vadd.f32 %v4821, %v5013
      %5015 = vmatprep.mubr.bf16.mxu0 %v3487
      %5016 = vmatmul.mubr.bf16.gmra.mrb[0].mxu0 %v3486
      %v5017 = vpop.f32.mrb[0].mxu0
      %v5018 = vadd.f32 %v4825, %v5017
      %v5019 = vpop.f32.mrb[0].mxu0
      %v5020 = vadd.f32 %v4827, %v5019
      %v5021 = vpop.f32.mrb[0].mxu0
      %v5022 = vadd.f32 %v4829, %v5021
      %v5023 = vpop.f32.mrb[0].mxu0
      %v5024 = vadd.f32 %v4831, %v5023
      %5025 = vmatprep.mubr.bf16.mxu0 %v3491
      %5026 = vmatmul.mubr.bf16.gmra.mrb[0].mxu0 %v3490
      %v5027 = vpop.f32.mrb[0].mxu0
      %v5028 = vadd.f32 %v4835, %v5027
      %v5029 = vpop.f32.mrb[0].mxu0
      %v5030 = vadd.f32 %v4837, %v5029
      %v5031 = vpop.f32.mrb[0].mxu0
      %v5032 = vadd.f32 %v4839, %v5031
      %v5033 = vpop.f32.mrb[0].mxu0
      %v5034 = vadd.f32 %v4841, %v5033
      %5035 = vmatprep.mubr.bf16.mxu0 %v3495
      %5036 = vmatmul.mubr.bf16.gmra.mrb[0].mxu0 %v3494
      %v5037 = vpop.f32.mrb[0].mxu0
      %v5038 = vadd.f32 %v4845, %v5037
      %v5039 = vpop.f32.mrb[0].mxu0
      %v5040 = vadd.f32 %v4847, %v5039
      %v5041 = vpop.f32.mrb[0].mxu0
      %v5042 = vadd.f32 %v4849, %v5041
      %v5043 = vpop.f32.mrb[0].mxu0
      %v5044 = vadd.f32 %v4851, %v5043
      %5045 = vmatprep.mubr.bf16.mxu0 %v3499
      %5046 = vmatmul.mubr.bf16.gmra.mrb[0].mxu0 %v3498
      %v5047 = vpop.f32.mrb[0].mxu0
      %v5048 = vadd.f32 %v4855, %v5047
      %v5049 = vpop.f32.mrb[0].mxu0
      %v5050 = vadd.f32 %v4857, %v5049
      %v5051 = vpop.f32.mrb[0].mxu0
      %v5052 = vadd.f32 %v4859, %v5051
      %v5053 = vpop.f32.mrb[0].mxu0
      %v5054 = vadd.f32 %v4861, %v5053
      %5055 = vmatprep.mubr.bf16.mxu0 %v3503
      %5056 = vmatmul.mubr.bf16.gmra.mrb[0].mxu0 %v3502
      %v5057 = vpop.f32.mrb[0].mxu0
      %v5058 = vadd.f32 %v4865, %v5057
      %v5059 = vpop.f32.mrb[0].mxu0
      %v5060 = vadd.f32 %v4867, %v5059
      %v5061 = vpop.f32.mrb[0].mxu0
      %v5062 = vadd.f32 %v4869, %v5061
      %v5063 = vpop.f32.mrb[0].mxu0
      %v5064 = vadd.f32 %v4871, %v5063
      %5065 = vdwg.mxu0
      %v5066 = vmax.f32 %v4522, 0.0
      %v5067 = vmax.f32 %v4524, 0.0
      %v5068 = vmax.f32 %v4908, 0.0
      %v5069 = vmax.f32 %v4910, 0.0
      %v5070 = vmax.f32 %v4526, 0.0
      %v5071 = vmax.f32 %v4528, 0.0
      %v5072 = vmax.f32 %v4912, 0.0
      %v5073 = vmax.f32 %v4914, 0.0
      %v5074 = vmax.f32 %v4532, 0.0
      %v5075 = vmax.f32 %v4534, 0.0
      %v5076 = vmax.f32 %v4918, 0.0
      %v5077 = vmax.f32 %v4920, 0.0
      %v5078 = vmax.f32 %v4536, 0.0
      %v5079 = vmax.f32 %v4538, 0.0
      %v5080 = vmax.f32 %v4922, 0.0
      %v5081 = vmax.f32 %v4924, 0.0
      %v5082 = vmax.f32 %v4542, 0.0
      %v5083 = vmax.f32 %v4544, 0.0
      %v5084 = vmax.f32 %v4928, 0.0
      %v5085 = vmax.f32 %v4930, 0.0
      %v5086 = vmax.f32 %v4546, 0.0
      %v5087 = vmax.f32 %v4548, 0.0
      %v5088 = vmax.f32 %v4932, 0.0
      %v5089 = vmax.f32 %v4934, 0.0
      %v5090 = vmax.f32 %v4552, 0.0
      %v5091 = vmax.f32 %v4554, 0.0
      %v5092 = vmax.f32 %v4938, 0.0
      %v5093 = vmax.f32 %v4940, 0.0
      %v5094 = vmax.f32 %v4556, 0.0
      %v5095 = vmax.f32 %v4558, 0.0
      %v5096 = vmax.f32 %v4942, 0.0
      %v5097 = vmax.f32 %v4944, 0.0
      %v5098 = vmax.f32 %v4562, 0.0
      %v5099 = vmax.f32 %v4564, 0.0
      %v5100 = vmax.f32 %v4948, 0.0
      %v5101 = vmax.f32 %v4950, 0.0
      %v5102 = vmax.f32 %v4566, 0.0
      %v5103 = vmax.f32 %v4568, 0.0
      %v5104 = vmax.f32 %v4952, 0.0
      %v5105 = vmax.f32 %v4954, 0.0
      %v5106 = vmax.f32 %v4572, 0.0
      %v5107 = vmax.f32 %v4574, 0.0
      %v5108 = vmax.f32 %v4958, 0.0
      %v5109 = vmax.f32 %v4960, 0.0
      %v5110 = vmax.f32 %v4576, 0.0
      %v5111 = vmax.f32 %v4578, 0.0
      %v5112 = vmax.f32 %v4962, 0.0
      %v5113 = vmax.f32 %v4964, 0.0
      %v5114 = vmax.f32 %v4582, 0.0
      %v5115 = vmax.f32 %v4584, 0.0
      %v5116 = vmax.f32 %v4968, 0.0
      %v5117 = vmax.f32 %v4970, 0.0
      %v5118 = vmax.f32 %v4586, 0.0
      %v5119 = vmax.f32 %v4588, 0.0
      %v5120 = vmax.f32 %v4972, 0.0
      %v5121 = vmax.f32 %v4974, 0.0
      %v5122 = vmax.f32 %v4592, 0.0
      %v5123 = vmax.f32 %v4594, 0.0
      %v5124 = vmax.f32 %v4978, 0.0
      %v5125 = vmax.f32 %v4980, 0.0
      %v5126 = vmax.f32 %v4596, 0.0
      %v5127 = vmax.f32 %v4598, 0.0
      %v5128 = vmax.f32 %v4982, 0.0
      %v5129 = vmax.f32 %v4984, 0.0
      %v5130 = vmax.f32 %v4602, 0.0
      %v5131 = vmax.f32 %v4604, 0.0
      %v5132 = vmax.f32 %v4988, 0.0
      %v5133 = vmax.f32 %v4990, 0.0
      %v5134 = vmax.f32 %v4606, 0.0
      %v5135 = vmax.f32 %v4608, 0.0
      %v5136 = vmax.f32 %v4992, 0.0
      %v5137 = vmax.f32 %v4994, 0.0
      %v5138 = vmax.f32 %v4612, 0.0
      %v5139 = vmax.f32 %v4614, 0.0
      %v5140 = vmax.f32 %v4998, 0.0
      %v5141 = vmax.f32 %v5000, 0.0
      %v5142 = vmax.f32 %v4616, 0.0
      %v5143 = vmax.f32 %v4618, 0.0
      %v5144 = vmax.f32 %v5002, 0.0
      %v5145 = vmax.f32 %v5004, 0.0
      %v5146 = vmax.f32 %v4622, 0.0
      %v5147 = vmax.f32 %v4624, 0.0
      %v5148 = vmax.f32 %v5008, 0.0
      %v5149 = vmax.f32 %v5010, 0.0
      %v5150 = vmax.f32 %v4626, 0.0
      %v5151 = vmax.f32 %v4628, 0.0
      %v5152 = vmax.f32 %v5012, 0.0
      %v5153 = vmax.f32 %v5014, 0.0
      %v5154 = vmax.f32 %v4632, 0.0
      %v5155 = vmax.f32 %v4634, 0.0
      %v5156 = vmax.f32 %v5018, 0.0
      %v5157 = vmax.f32 %v5020, 0.0
      %v5158 = vmax.f32 %v4636, 0.0
      %v5159 = vmax.f32 %v4638, 0.0
      %v5160 = vmax.f32 %v5022, 0.0
      %v5161 = vmax.f32 %v5024, 0.0
      %v5162 = vmax.f32 %v4642, 0.0
      %v5163 = vmax.f32 %v4644, 0.0
      %v5164 = vmax.f32 %v5028, 0.0
      %v5165 = vmax.f32 %v5030, 0.0
      %v5166 = vmax.f32 %v4646, 0.0
      %v5167 = vmax.f32 %v4648, 0.0
      %v5168 = vmax.f32 %v5032, 0.0
      %v5169 = vmax.f32 %v5034, 0.0
      %v5170 = vmax.f32 %v4652, 0.0
      %v5171 = vmax.f32 %v4654, 0.0
      %v5172 = vmax.f32 %v5038, 0.0
      %v5173 = vmax.f32 %v5040, 0.0
      %v5174 = vmax.f32 %v4656, 0.0
      %v5175 = vmax.f32 %v4658, 0.0
      %v5176 = vmax.f32 %v5042, 0.0
      %v5177 = vmax.f32 %v5044, 0.0
      %v5178 = vmax.f32 %v4662, 0.0
      %v5179 = vmax.f32 %v4664, 0.0
      %v5180 = vmax.f32 %v5048, 0.0
      %v5181 = vmax.f32 %v5050, 0.0
      %v5182 = vmax.f32 %v4666, 0.0
      %v5183 = vmax.f32 %v4668, 0.0
      %v5184 = vmax.f32 %v5052, 0.0
      %v5185 = vmax.f32 %v5054, 0.0
      %v5186 = vmax.f32 %v4672, 0.0
      %v5187 = vmax.f32 %v4674, 0.0
      %v5188 = vmax.f32 %v5058, 0.0
      %v5189 = vmax.f32 %v5060, 0.0
      %v5190 = vmax.f32 %v4676, 0.0
      %v5191 = vmax.f32 %v4678, 0.0
      %v5192 = vmax.f32 %v5062, 0.0
      %v5193 = vmax.f32 %v5064, 0.0
      %v5194 = vpack.c.bf16 %v5070, %v5066
      %v5195 = vpack.c.bf16 %v5071, %v5067
      %v5196 = vpack.c.bf16 %v5072, %v5068
      %v5197 = vpack.c.bf16 %v5073, %v5069
      %v5198 = vpack.c.bf16 %v5078, %v5074
      %v5199 = vpack.c.bf16 %v5079, %v5075
      %v5200 = vpack.c.bf16 %v5080, %v5076
      %v5201 = vpack.c.bf16 %v5081, %v5077
      %v5202 = vpack.c.bf16 %v5086, %v5082
      %v5203 = vpack.c.bf16 %v5087, %v5083
      %v5204 = vpack.c.bf16 %v5088, %v5084
      %v5205 = vpack.c.bf16 %v5089, %v5085
      %v5206 = vpack.c.bf16 %v5094, %v5090
      %v5207 = vpack.c.bf16 %v5095, %v5091
      %v5208 = vpack.c.bf16 %v5096, %v5092
      %v5209 = vpack.c.bf16 %v5097, %v5093
      %v5210 = vpack.c.bf16 %v5102, %v5098
      %v5211 = vpack.c.bf16 %v5103, %v5099
      %v5212 = vpack.c.bf16 %v5104, %v5100
      %v5213 = vpack.c.bf16 %v5105, %v5101
      %v5214 = vpack.c.bf16 %v5110, %v5106
      %v5215 = vpack.c.bf16 %v5111, %v5107
      %v5216 = vpack.c.bf16 %v5112, %v5108
      %v5217 = vpack.c.bf16 %v5113, %v5109
      %v5218 = vpack.c.bf16 %v5118, %v5114
      %v5219 = vpack.c.bf16 %v5119, %v5115
      %v5220 = vpack.c.bf16 %v5120, %v5116
      %v5221 = vpack.c.bf16 %v5121, %v5117
      %v5222 = vpack.c.bf16 %v5126, %v5122
      %v5223 = vpack.c.bf16 %v5127, %v5123
      %v5224 = vpack.c.bf16 %v5128, %v5124
      %v5225 = vpack.c.bf16 %v5129, %v5125
      %v5226 = vpack.c.bf16 %v5134, %v5130
      %v5227 = vpack.c.bf16 %v5135, %v5131
      %v5228 = vpack.c.bf16 %v5136, %v5132
      %v5229 = vpack.c.bf16 %v5137, %v5133
      %v5230 = vpack.c.bf16 %v5142, %v5138
      %v5231 = vpack.c.bf16 %v5143, %v5139
      %v5232 = vpack.c.bf16 %v5144, %v5140
      %v5233 = vpack.c.bf16 %v5145, %v5141
      %v5234 = vpack.c.bf16 %v5150, %v5146
      %v5235 = vpack.c.bf16 %v5151, %v5147
      %v5236 = vpack.c.bf16 %v5152, %v5148
      %v5237 = vpack.c.bf16 %v5153, %v5149
      %v5238 = vpack.c.bf16 %v5158, %v5154
      %v5239 = vpack.c.bf16 %v5159, %v5155
      %v5240 = vpack.c.bf16 %v5160, %v5156
      %v5241 = vpack.c.bf16 %v5161, %v5157
      %v5242 = vpack.c.bf16 %v5166, %v5162
      %v5243 = vpack.c.bf16 %v5167, %v5163
      %v5244 = vpack.c.bf16 %v5168, %v5164
      %v5245 = vpack.c.bf16 %v5169, %v5165
      %v5246 = vpack.c.bf16 %v5174, %v5170
      %v5247 = vpack.c.bf16 %v5175, %v5171
      %v5248 = vpack.c.bf16 %v5176, %v5172
      %v5249 = vpack.c.bf16 %v5177, %v5173
      %v5250 = vpack.c.bf16 %v5182, %v5178
      %v5251 = vpack.c.bf16 %v5183, %v5179
      %v5252 = vpack.c.bf16 %v5184, %v5180
      %v5253 = vpack.c.bf16 %v5185, %v5181
      %v5254 = vpack.c.bf16 %v5190, %v5186
      %v5255 = vpack.c.bf16 %v5191, %v5187
      %v5256 = vpack.c.bf16 %v5192, %v5188
      %v5257 = vpack.c.bf16 %v5193, %v5189
      %v5258 = vld [vmem:[%s5] sm:$0xf]
      %v5259 = vld [vmem:[%s5 + $0x4] sm:$0xf]
      %v5260 = vld [vmem:[%s5 + $0x8] sm:$0xf]
      %v5261 = vld [vmem:[%s5 + $0xc] sm:$0xf]
      %v5262 = vld [vmem:[%s5 + $0x10] sm:$0xf]
      %v5263 = vld [vmem:[%s5 + $0x14] sm:$0xf]
      %v5264 = vld [vmem:[%s5 + $0x18] sm:$0xf]
      %v5265 = vld [vmem:[%s5 + $0x1c] sm:$0xf]
      %v5266 = vld [vmem:[%s5 + $0x20] sm:$0xf]
      %v5267 = vld [vmem:[%s5 + $0x24] sm:$0xf]
      %v5268 = vld [vmem:[%s5 + $0x28] sm:$0xf]
      %v5269 = vld [vmem:[%s5 + $0x2c] sm:$0xf]
      %v5270 = vld [vmem:[%s5 + $0x30] sm:$0xf]
      %v5271 = vld [vmem:[%s5 + $0x34] sm:$0xf]
      %v5272 = vld [vmem:[%s5 + $0x38] sm:$0xf]
      %v5273 = vld [vmem:[%s5 + $0x3c] sm:$0xf]
      %v5274 = vld [vmem:[%s5 + $0x40] sm:$0xf]
      %v5275 = vld [vmem:[%s5 + $0x44] sm:$0xf]
      %v5276 = vld [vmem:[%s5 + $0x48] sm:$0xf]
      %v5277 = vld [vmem:[%s5 + $0x4c] sm:$0xf]
      %v5278 = vld [vmem:[%s5 + $0x50] sm:$0xf]
      %v5279 = vld [vmem:[%s5 + $0x54] sm:$0xf]
      %v5280 = vld [vmem:[%s5 + $0x58] sm:$0xf]
      %v5281 = vld [vmem:[%s5 + $0x5c] sm:$0xf]
      %v5282 = vld [vmem:[%s5 + $0x60] sm:$0xf]
      %v5283 = vld [vmem:[%s5 + $0x64] sm:$0xf]
      %v5284 = vld [vmem:[%s5 + $0x68] sm:$0xf]
      %v5285 = vld [vmem:[%s5 + $0x6c] sm:$0xf]
      %v5286 = vld [vmem:[%s5 + $0x70] sm:$0xf]
      %v5287 = vld [vmem:[%s5 + $0x74] sm:$0xf]
      %v5288 = vld [vmem:[%s5 + $0x78] sm:$0xf]
      %v5289 = vld [vmem:[%s5 + $0x7c] sm:$0xf]
      %v5290 = vld [vmem:[%s5 + $0x80] sm:$0xf]
      %v5291 = vld [vmem:[%s5 + $0x84] sm:$0xf]
      %v5292 = vld [vmem:[%s5 + $0x88] sm:$0xf]
      %v5293 = vld [vmem:[%s5 + $0x8c] sm:$0xf]
      %v5294 = vld [vmem:[%s5 + $0x90] sm:$0xf]
      %v5295 = vld [vmem:[%s5 + $0x94] sm:$0xf]
      %v5296 = vld [vmem:[%s5 + $0x98] sm:$0xf]
      %v5297 = vld [vmem:[%s5 + $0x9c] sm:$0xf]
      %v5298 = vld [vmem:[%s5 + $0xa0] sm:$0xf]
      %v5299 = vld [vmem:[%s5 + $0xa4] sm:$0xf]
      %v5300 = vld [vmem:[%s5 + $0xa8] sm:$0xf]
      %v5301 = vld [vmem:[%s5 + $0xac] sm:$0xf]
      %v5302 = vld [vmem:[%s5 + $0xb0] sm:$0xf]
      %v5303 = vld [vmem:[%s5 + $0xb4] sm:$0xf]
      %v5304 = vld [vmem:[%s5 + $0xb8] sm:$0xf]
      %v5305 = vld [vmem:[%s5 + $0xbc] sm:$0xf]
      %v5306 = vld [vmem:[%s5 + $0xc0] sm:$0xf]
      %v5307 = vld [vmem:[%s5 + $0xc4] sm:$0xf]
      %v5308 = vld [vmem:[%s5 + $0xc8] sm:$0xf]
      %v5309 = vld [vmem:[%s5 + $0xcc] sm:$0xf]
      %v5310 = vld [vmem:[%s5 + $0xd0] sm:$0xf]
      %v5311 = vld [vmem:[%s5 + $0xd4] sm:$0xf]
      %v5312 = vld [vmem:[%s5 + $0xd8] sm:$0xf]
      %v5313 = vld [vmem:[%s5 + $0xdc] sm:$0xf]
      %v5314 = vld [vmem:[%s5 + $0xe0] sm:$0xf]
      %v5315 = vld [vmem:[%s5 + $0xe4] sm:$0xf]
      %v5316 = vld [vmem:[%s5 + $0xe8] sm:$0xf]
      %v5317 = vld [vmem:[%s5 + $0xec] sm:$0xf]
      %v5318 = vld [vmem:[%s5 + $0xf0] sm:$0xf]
      %v5319 = vld [vmem:[%s5 + $0xf4] sm:$0xf]
      %v5320 = vld [vmem:[%s5 + $0xf8] sm:$0xf]
      %v5321 = vld [vmem:[%s5 + $0xfc] sm:$0xf]
      %v5322 = vld [vmem:[%s8 + $0xe] sm:$0x1]
      %v5324 = vlaneseq
      %v5325 = vshrl.u32 %v5324, 7
      %v5326 = vsub.s32 0, %v5325
      %v5327 = vrot.slane %v5322, %v5326
      %v5393 = vunpack.c.l.b16 %v5258
      %v5394 = vunpack.c.l.b16 %v5259
      %v5395 = vunpack.c.l.b16 %v5260
      %v5396 = vunpack.c.l.b16 %v5261
      %v5397 = vunpack.c.l.b16 %v5262
      %v5398 = vunpack.c.l.b16 %v5263
      %v5399 = vunpack.c.l.b16 %v5264
      %v5400 = vunpack.c.l.b16 %v5265
      %v5401 = vunpack.c.l.b16 %v5266
      %v5402 = vunpack.c.l.b16 %v5267
      %v5403 = vunpack.c.l.b16 %v5268
      %v5404 = vunpack.c.l.b16 %v5269
      %v5405 = vunpack.c.l.b16 %v5270
      %v5406 = vunpack.c.l.b16 %v5271
      %v5407 = vunpack.c.l.b16 %v5272
      %v5408 = vunpack.c.l.b16 %v5273
      %v5409 = vunpack.c.l.b16 %v5274
      %v5410 = vunpack.c.l.b16 %v5275
      %v5411 = vunpack.c.l.b16 %v5276
      %v5412 = vunpack.c.l.b16 %v5277
      %v5413 = vunpack.c.l.b16 %v5278
      %v5414 = vunpack.c.l.b16 %v5279
      %v5415 = vunpack.c.l.b16 %v5280
      %v5416 = vunpack.c.l.b16 %v5281
      %v5417 = vunpack.c.l.b16 %v5282
      %v5418 = vunpack.c.l.b16 %v5283
      %v5419 = vunpack.c.l.b16 %v5284
      %v5420 = vunpack.c.l.b16 %v5285
      %v5421 = vunpack.c.l.b16 %v5286
      %v5422 = vunpack.c.l.b16 %v5287
      %v5423 = vunpack.c.l.b16 %v5288
      %v5424 = vunpack.c.l.b16 %v5289
      %v5425 = vunpack.c.l.b16 %v5290
      %v5426 = vunpack.c.l.b16 %v5291
      %v5427 = vunpack.c.l.b16 %v5292
      %v5428 = vunpack.c.l.b16 %v5293
      %v5429 = vunpack.c.l.b16 %v5294
      %v5430 = vunpack.c.l.b16 %v5295
      %v5431 = vunpack.c.l.b16 %v5296
      %v5432 = vunpack.c.l.b16 %v5297
      %v5433 = vunpack.c.l.b16 %v5298
      %v5434 = vunpack.c.l.b16 %v5299
      %v5435 = vunpack.c.l.b16 %v5300
      %v5436 = vunpack.c.l.b16 %v5301
      %v5437 = vunpack.c.l.b16 %v5302
      %v5438 = vunpack.c.l.b16 %v5303
      %v5439 = vunpack.c.l.b16 %v5304
      %v5440 = vunpack.c.l.b16 %v5305
      %v5441 = vunpack.c.l.b16 %v5306
      %v5442 = vunpack.c.l.b16 %v5307
      %v5443 = vunpack.c.l.b16 %v5308
      %v5444 = vunpack.c.l.b16 %v5309
      %v5445 = vunpack.c.l.b16 %v5310
      %v5446 = vunpack.c.l.b16 %v5311
      %v5447 = vunpack.c.l.b16 %v5312
      %v5448 = vunpack.c.l.b16 %v5313
      %v5449 = vunpack.c.l.b16 %v5314
      %v5450 = vunpack.c.l.b16 %v5315
      %v5451 = vunpack.c.l.b16 %v5316
      %v5452 = vunpack.c.l.b16 %v5317
      %v5453 = vunpack.c.l.b16 %v5318
      %v5454 = vunpack.c.l.b16 %v5319
      %v5455 = vunpack.c.l.b16 %v5320
      %v5456 = vunpack.c.l.b16 %v5321
      %v5457 = vpack.c.b16 %v5394, %v5393
      %v5458 = vpack.c.b16 %v5396, %v5395
      %v5459 = vpack.c.b16 %v5398, %v5397
      %v5460 = vpack.c.b16 %v5400, %v5399
      %v5461 = vpack.c.b16 %v5402, %v5401
      %v5462 = vpack.c.b16 %v5404, %v5403
      %v5463 = vpack.c.b16 %v5406, %v5405
      %v5464 = vpack.c.b16 %v5408, %v5407
      %v5465 = vpack.c.b16 %v5410, %v5409
      %v5466 = vpack.c.b16 %v5412, %v5411
      %v5467 = vpack.c.b16 %v5414, %v5413
      %v5468 = vpack.c.b16 %v5416, %v5415
      %v5469 = vpack.c.b16 %v5418, %v5417
      %v5470 = vpack.c.b16 %v5420, %v5419
      %v5471 = vpack.c.b16 %v5422, %v5421
      %v5472 = vpack.c.b16 %v5424, %v5423
      %v5473 = vpack.c.b16 %v5426, %v5425
      %v5474 = vpack.c.b16 %v5428, %v5427
      %v5475 = vpack.c.b16 %v5430, %v5429
      %v5476 = vpack.c.b16 %v5432, %v5431
      %v5477 = vpack.c.b16 %v5434, %v5433
      %v5478 = vpack.c.b16 %v5436, %v5435
      %v5479 = vpack.c.b16 %v5438, %v5437
      %v5480 = vpack.c.b16 %v5440, %v5439
      %v5481 = vpack.c.b16 %v5442, %v5441
      %v5482 = vpack.c.b16 %v5444, %v5443
      %v5483 = vpack.c.b16 %v5446, %v5445
      %v5484 = vpack.c.b16 %v5448, %v5447
      %v5485 = vpack.c.b16 %v5450, %v5449
      %v5486 = vpack.c.b16 %v5452, %v5451
      %v5487 = vpack.c.b16 %v5454, %v5453
      %v5488 = vpack.c.b16 %v5456, %v5455
      %5521 = vmatprep.subr.bf16.mxu0 0
      %5522 = vmatpush1.bf16.msra.mxu0 %v5457
      %5523 = vmatprep.subr.bf16.mxu0 0
      %5524 = vmatpush1.bf16.msra.mxu0 %v5458
      %5525 = vmatprep.subr.bf16.mxu0 0
      %5526 = vmatpush1.bf16.msra.mxu0 %v5459
      %5527 = vmatprep.subr.bf16.mxu0 0
      %5528 = vmatpush1.bf16.msra.mxu0 %v5460
      %5529 = vmatprep.subr.bf16.mxu0 0
      %5530 = vmatpush1.bf16.msra.mxu0 %v5461
      %5531 = vmatprep.subr.bf16.mxu0 0
      %5532 = vmatpush1.bf16.msra.mxu0 %v5462
      %5533 = vmatprep.subr.bf16.mxu0 0
      %5534 = vmatpush1.bf16.msra.mxu0 %v5463
      %5535 = vmatprep.subr.bf16.mxu0 0
      %5536 = vmatpush1.bf16.msra.mxu0 %v5464
      %5537 = vmatprep.subr.bf16.mxu0 0
      %5538 = vmatpush1.bf16.msra.mxu0 %v5465
      %5539 = vmatprep.subr.bf16.mxu0 0
      %5540 = vmatpush1.bf16.msra.mxu0 %v5466
      %5541 = vmatprep.subr.bf16.mxu0 0
      %5542 = vmatpush1.bf16.msra.mxu0 %v5467
      %5543 = vmatprep.subr.bf16.mxu0 0
      %5544 = vmatpush1.bf16.msra.mxu0 %v5468
      %5545 = vmatprep.subr.bf16.mxu0 0
      %5546 = vmatpush1.bf16.msra.mxu0 %v5469
      %5547 = vmatprep.subr.bf16.mxu0 0
      %5548 = vmatpush1.bf16.msra.mxu0 %v5470
      %5549 = vmatprep.subr.bf16.mxu0 0
      %5550 = vmatpush1.bf16.msra.mxu0 %v5471
      %5551 = vmatprep.subr.bf16.mxu0 0
      %5552 = vmatpush1.bf16.msra.mxu0 %v5472
      %5553 = vmatprep.mubr.bf16.mxu0 %v5195
      %5554 = vmatmul.mubr.bf16.gmra.mrb[0].mxu0 %v5194
      %v5555 = vpop.f32.mrb[0].mxu0
      %v5556 = vadd.f32 %v5327, %v5555
      %v5557 = vpop.f32.mrb[0].mxu0
      %v5558 = vpop.f32.mrb[0].mxu0
      %v5559 = vadd.f32 %v5327, %v5558
      %v5560 = vpop.f32.mrb[0].mxu0
      %5561 = vmatprep.mubr.bf16.mxu0 %v5199
      %5562 = vmatmul.mubr.bf16.gmra.mrb[0].mxu0 %v5198
      %v5563 = vpop.f32.mrb[0].mxu0
      %v5564 = vadd.f32 %v5327, %v5563
      %v5565 = vpop.f32.mrb[0].mxu0
      %v5566 = vpop.f32.mrb[0].mxu0
      %v5567 = vadd.f32 %v5327, %v5566
      %v5568 = vpop.f32.mrb[0].mxu0
      %5569 = vmatprep.mubr.bf16.mxu0 %v5203
      %5570 = vmatmul.mubr.bf16.gmra.mrb[0].mxu0 %v5202
      %v5571 = vpop.f32.mrb[0].mxu0
      %v5572 = vadd.f32 %v5327, %v5571
      %v5573 = vpop.f32.mrb[0].mxu0
      %v5574 = vpop.f32.mrb[0].mxu0
      %v5575 = vadd.f32 %v5327, %v5574
      %v5576 = vpop.f32.mrb[0].mxu0
      %5577 = vmatprep.mubr.bf16.mxu0 %v5207
      %5578 = vmatmul.mubr.bf16.gmra.mrb[0].mxu0 %v5206
      %v5579 = vpop.f32.mrb[0].mxu0
      %v5580 = vadd.f32 %v5327, %v5579
      %v5581 = vpop.f32.mrb[0].mxu0
      %v5582 = vpop.f32.mrb[0].mxu0
      %v5583 = vadd.f32 %v5327, %v5582
      %v5584 = vpop.f32.mrb[0].mxu0
      %5585 = vmatprep.mubr.bf16.mxu0 %v5211
      %5586 = vmatmul.mubr.bf16.gmra.mrb[0].mxu0 %v5210
      %v5587 = vpop.f32.mrb[0].mxu0
      %v5588 = vadd.f32 %v5327, %v5587
      %v5589 = vpop.f32.mrb[0].mxu0
      %v5590 = vpop.f32.mrb[0].mxu0
      %v5591 = vadd.f32 %v5327, %v5590
      %v5592 = vpop.f32.mrb[0].mxu0
      %5593 = vmatprep.mubr.bf16.mxu0 %v5215
      %5594 = vmatmul.mubr.bf16.gmra.mrb[0].mxu0 %v5214
      %v5595 = vpop.f32.mrb[0].mxu0
      %v5596 = vadd.f32 %v5327, %v5595
      %v5597 = vpop.f32.mrb[0].mxu0
      %v5598 = vpop.f32.mrb[0].mxu0
      %v5599 = vadd.f32 %v5327, %v5598
      %v5600 = vpop.f32.mrb[0].mxu0
      %5601 = vmatprep.mubr.bf16.mxu0 %v5219
      %5602 = vmatmul.mubr.bf16.gmra.mrb[0].mxu0 %v5218
      %v5603 = vpop.f32.mrb[0].mxu0
      %v5604 = vadd.f32 %v5327, %v5603
      %v5605 = vpop.f32.mrb[0].mxu0
      %v5606 = vpop.f32.mrb[0].mxu0
      %v5607 = vadd.f32 %v5327, %v5606
      %v5608 = vpop.f32.mrb[0].mxu0
      %5609 = vmatprep.mubr.bf16.mxu0 %v5223
      %5610 = vmatmul.mubr.bf16.gmra.mrb[0].mxu0 %v5222
      %v5611 = vpop.f32.mrb[0].mxu0
      %v5612 = vadd.f32 %v5327, %v5611
      %v5613 = vpop.f32.mrb[0].mxu0
      %v5614 = vpop.f32.mrb[0].mxu0
      %v5615 = vadd.f32 %v5327, %v5614
      %v5616 = vpop.f32.mrb[0].mxu0
      %5617 = vmatprep.mubr.bf16.mxu0 %v5227
      %5618 = vmatmul.mubr.bf16.gmra.mrb[0].mxu0 %v5226
      %v5619 = vpop.f32.mrb[0].mxu0
      %v5620 = vadd.f32 %v5327, %v5619
      %v5621 = vpop.f32.mrb[0].mxu0
      %v5622 = vpop.f32.mrb[0].mxu0
      %v5623 = vadd.f32 %v5327, %v5622
      %v5624 = vpop.f32.mrb[0].mxu0
      %5625 = vmatprep.mubr.bf16.mxu0 %v5231
      %5626 = vmatmul.mubr.bf16.gmra.mrb[0].mxu0 %v5230
      %v5627 = vpop.f32.mrb[0].mxu0
      %v5628 = vadd.f32 %v5327, %v5627
      %v5629 = vpop.f32.mrb[0].mxu0
      %v5630 = vpop.f32.mrb[0].mxu0
      %v5631 = vadd.f32 %v5327, %v5630
      %v5632 = vpop.f32.mrb[0].mxu0
      %5633 = vmatprep.mubr.bf16.mxu0 %v5235
      %5634 = vmatmul.mubr.bf16.gmra.mrb[0].mxu0 %v5234
      %v5635 = vpop.f32.mrb[0].mxu0
      %v5636 = vadd.f32 %v5327, %v5635
      %v5637 = vpop.f32.mrb[0].mxu0
      %v5638 = vpop.f32.mrb[0].mxu0
      %v5639 = vadd.f32 %v5327, %v5638
      %v5640 = vpop.f32.mrb[0].mxu0
      %5641 = vmatprep.mubr.bf16.mxu0 %v5239
      %5642 = vmatmul.mubr.bf16.gmra.mrb[0].mxu0 %v5238
      %v5643 = vpop.f32.mrb[0].mxu0
      %v5644 = vadd.f32 %v5327, %v5643
      %v5645 = vpop.f32.mrb[0].mxu0
      %v5646 = vpop.f32.mrb[0].mxu0
      %v5647 = vadd.f32 %v5327, %v5646
      %v5648 = vpop.f32.mrb[0].mxu0
      %5649 = vmatprep.mubr.bf16.mxu0 %v5243
      %5650 = vmatmul.mubr.bf16.gmra.mrb[0].mxu0 %v5242
      %v5651 = vpop.f32.mrb[0].mxu0
      %v5652 = vadd.f32 %v5327, %v5651
      %v5653 = vpop.f32.mrb[0].mxu0
      %v5654 = vpop.f32.mrb[0].mxu0
      %v5655 = vadd.f32 %v5327, %v5654
      %v5656 = vpop.f32.mrb[0].mxu0
      %5657 = vmatprep.mubr.bf16.mxu0 %v5247
      %5658 = vmatmul.mubr.bf16.gmra.mrb[0].mxu0 %v5246
      %v5659 = vpop.f32.mrb[0].mxu0
      %v5660 = vadd.f32 %v5327, %v5659
      %v5661 = vpop.f32.mrb[0].mxu0
      %v5662 = vpop.f32.mrb[0].mxu0
      %v5663 = vadd.f32 %v5327, %v5662
      %v5664 = vpop.f32.mrb[0].mxu0
      %5665 = vmatprep.mubr.bf16.mxu0 %v5251
      %5666 = vmatmul.mubr.bf16.gmra.mrb[0].mxu0 %v5250
      %v5667 = vpop.f32.mrb[0].mxu0
      %v5668 = vadd.f32 %v5327, %v5667
      %v5669 = vpop.f32.mrb[0].mxu0
      %v5670 = vpop.f32.mrb[0].mxu0
      %v5671 = vadd.f32 %v5327, %v5670
      %v5672 = vpop.f32.mrb[0].mxu0
      %5673 = vmatprep.mubr.bf16.mxu0 %v5255
      %5674 = vmatmul.mubr.bf16.gmra.mrb[0].mxu0 %v5254
      %v5675 = vpop.f32.mrb[0].mxu0
      %v5676 = vadd.f32 %v5327, %v5675
      %v5677 = vpop.f32.mrb[0].mxu0
      %v5678 = vpop.f32.mrb[0].mxu0
      %v5679 = vadd.f32 %v5327, %v5678
      %v5680 = vpop.f32.mrb[0].mxu0
      %5681 = vdwg.mxu0
      %5682 = vmatprep.subr.bf16.mxu0 0
      %5683 = vmatpush1.bf16.msra.mxu0 %v5473
      %5684 = vmatprep.subr.bf16.mxu0 0
      %5685 = vmatpush1.bf16.msra.mxu0 %v5474
      %5686 = vmatprep.subr.bf16.mxu0 0
      %5687 = vmatpush1.bf16.msra.mxu0 %v5475
      %5688 = vmatprep.subr.bf16.mxu0 0
      %5689 = vmatpush1.bf16.msra.mxu0 %v5476
      %5690 = vmatprep.subr.bf16.mxu0 0
      %5691 = vmatpush1.bf16.msra.mxu0 %v5477
      %5692 = vmatprep.subr.bf16.mxu0 0
      %5693 = vmatpush1.bf16.msra.mxu0 %v5478
      %5694 = vmatprep.subr.bf16.mxu0 0
      %5695 = vmatpush1.bf16.msra.mxu0 %v5479
      %5696 = vmatprep.subr.bf16.mxu0 0
      %5697 = vmatpush1.bf16.msra.mxu0 %v5480
      %5698 = vmatprep.subr.bf16.mxu0 0
      %5699 = vmatpush1.bf16.msra.mxu0 %v5481
      %5700 = vmatprep.subr.bf16.mxu0 0
      %5701 = vmatpush1.bf16.msra.mxu0 %v5482
      %5702 = vmatprep.subr.bf16.mxu0 0
      %5703 = vmatpush1.bf16.msra.mxu0 %v5483
      %5704 = vmatprep.subr.bf16.mxu0 0
      %5705 = vmatpush1.bf16.msra.mxu0 %v5484
      %5706 = vmatprep.subr.bf16.mxu0 0
      %5707 = vmatpush1.bf16.msra.mxu0 %v5485
      %5708 = vmatprep.subr.bf16.mxu0 0
      %5709 = vmatpush1.bf16.msra.mxu0 %v5486
      %5710 = vmatprep.subr.bf16.mxu0 0
      %5711 = vmatpush1.bf16.msra.mxu0 %v5487
      %5712 = vmatprep.subr.bf16.mxu0 0
      %5713 = vmatpush1.bf16.msra.mxu0 %v5488
      %5714 = vmatprep.mubr.bf16.mxu0 %v5197
      %5715 = vmatmul.mubr.bf16.gmra.mrb[0].mxu0 %v5196
      %v5716 = vpop.f32.mrb[0].mxu0
      %v5717 = vadd.f32 %v5556, %v5716
      %v5718 = vpop.f32.mrb[0].mxu0
      %v5719 = vpop.f32.mrb[0].mxu0
      %v5720 = vadd.f32 %v5559, %v5719
      %v5721 = vpop.f32.mrb[0].mxu0
      %5722 = vmatprep.mubr.bf16.mxu0 %v5201
      %5723 = vmatmul.mubr.bf16.gmra.mrb[0].mxu0 %v5200
      %v5724 = vpop.f32.mrb[0].mxu0
      %v5725 = vadd.f32 %v5564, %v5724
      %v5726 = vpop.f32.mrb[0].mxu0
      %v5727 = vpop.f32.mrb[0].mxu0
      %v5728 = vadd.f32 %v5567, %v5727
      %v5729 = vpop.f32.mrb[0].mxu0
      %5730 = vmatprep.mubr.bf16.mxu0 %v5205
      %5731 = vmatmul.mubr.bf16.gmra.mrb[0].mxu0 %v5204
      %v5732 = vpop.f32.mrb[0].mxu0
      %v5733 = vadd.f32 %v5572, %v5732
      %v5734 = vpop.f32.mrb[0].mxu0
      %v5735 = vpop.f32.mrb[0].mxu0
      %v5736 = vadd.f32 %v5575, %v5735
      %v5737 = vpop.f32.mrb[0].mxu0
      %5738 = vmatprep.mubr.bf16.mxu0 %v5209
      %5739 = vmatmul.mubr.bf16.gmra.mrb[0].mxu0 %v5208
      %v5740 = vpop.f32.mrb[0].mxu0
      %v5741 = vadd.f32 %v5580, %v5740
      %v5742 = vpop.f32.mrb[0].mxu0
      %v5743 = vpop.f32.mrb[0].mxu0
      %v5744 = vadd.f32 %v5583, %v5743
      %v5745 = vpop.f32.mrb[0].mxu0
      %5746 = vmatprep.mubr.bf16.mxu0 %v5213
      %5747 = vmatmul.mubr.bf16.gmra.mrb[0].mxu0 %v5212
      %v5748 = vpop.f32.mrb[0].mxu0
      %v5749 = vadd.f32 %v5588, %v5748
      %v5750 = vpop.f32.mrb[0].mxu0
      %v5751 = vpop.f32.mrb[0].mxu0
      %v5752 = vadd.f32 %v5591, %v5751
      %v5753 = vpop.f32.mrb[0].mxu0
      %5754 = vmatprep.mubr.bf16.mxu0 %v5217
      %5755 = vmatmul.mubr.bf16.gmra.mrb[0].mxu0 %v5216
      %v5756 = vpop.f32.mrb[0].mxu0
      %v5757 = vadd.f32 %v5596, %v5756
      %v5758 = vpop.f32.mrb[0].mxu0
      %v5759 = vpop.f32.mrb[0].mxu0
      %v5760 = vadd.f32 %v5599, %v5759
      %v5761 = vpop.f32.mrb[0].mxu0
      %5762 = vmatprep.mubr.bf16.mxu0 %v5221
      %5763 = vmatmul.mubr.bf16.gmra.mrb[0].mxu0 %v5220
      %v5764 = vpop.f32.mrb[0].mxu0
      %v5765 = vadd.f32 %v5604, %v5764
      %v5766 = vpop.f32.mrb[0].mxu0
      %v5767 = vpop.f32.mrb[0].mxu0
      %v5768 = vadd.f32 %v5607, %v5767
      %v5769 = vpop.f32.mrb[0].mxu0
      %5770 = vmatprep.mubr.bf16.mxu0 %v5225
      %5771 = vmatmul.mubr.bf16.gmra.mrb[0].mxu0 %v5224
      %v5772 = vpop.f32.mrb[0].mxu0
      %v5773 = vadd.f32 %v5612, %v5772
      %v5774 = vpop.f32.mrb[0].mxu0
      %v5775 = vpop.f32.mrb[0].mxu0
      %v5776 = vadd.f32 %v5615, %v5775
      %v5777 = vpop.f32.mrb[0].mxu0
      %5778 = vmatprep.mubr.bf16.mxu0 %v5229
      %5779 = vmatmul.mubr.bf16.gmra.mrb[0].mxu0 %v5228
      %v5780 = vpop.f32.mrb[0].mxu0
      %v5781 = vadd.f32 %v5620, %v5780
      %v5782 = vpop.f32.mrb[0].mxu0
      %v5783 = vpop.f32.mrb[0].mxu0
      %v5784 = vadd.f32 %v5623, %v5783
      %v5785 = vpop.f32.mrb[0].mxu0
      %5786 = vmatprep.mubr.bf16.mxu0 %v5233
      %5787 = vmatmul.mubr.bf16.gmra.mrb[0].mxu0 %v5232
      %v5788 = vpop.f32.mrb[0].mxu0
      %v5789 = vadd.f32 %v5628, %v5788
      %v5790 = vpop.f32.mrb[0].mxu0
      %v5791 = vpop.f32.mrb[0].mxu0
      %v5792 = vadd.f32 %v5631, %v5791
      %v5793 = vpop.f32.mrb[0].mxu0
      %5794 = vmatprep.mubr.bf16.mxu0 %v5237
      %5795 = vmatmul.mubr.bf16.gmra.mrb[0].mxu0 %v5236
      %v5796 = vpop.f32.mrb[0].mxu0
      %v5797 = vadd.f32 %v5636, %v5796
      %v5798 = vpop.f32.mrb[0].mxu0
      %v5799 = vpop.f32.mrb[0].mxu0
      %v5800 = vadd.f32 %v5639, %v5799
      %v5801 = vpop.f32.mrb[0].mxu0
      %5802 = vmatprep.mubr.bf16.mxu0 %v5241
      %5803 = vmatmul.mubr.bf16.gmra.mrb[0].mxu0 %v5240
      %v5804 = vpop.f32.mrb[0].mxu0
      %v5805 = vadd.f32 %v5644, %v5804
      %v5806 = vpop.f32.mrb[0].mxu0
      %v5807 = vpop.f32.mrb[0].mxu0
      %v5808 = vadd.f32 %v5647, %v5807
      %v5809 = vpop.f32.mrb[0].mxu0
      %5810 = vmatprep.mubr.bf16.mxu0 %v5245
      %5811 = vmatmul.mubr.bf16.gmra.mrb[0].mxu0 %v5244
      %v5812 = vpop.f32.mrb[0].mxu0
      %v5813 = vadd.f32 %v5652, %v5812
      %v5814 = vpop.f32.mrb[0].mxu0
      %v5815 = vpop.f32.mrb[0].mxu0
      %v5816 = vadd.f32 %v5655, %v5815
      %v5817 = vpop.f32.mrb[0].mxu0
      %5818 = vmatprep.mubr.bf16.mxu0 %v5249
      %5819 = vmatmul.mubr.bf16.gmra.mrb[0].mxu0 %v5248
      %v5820 = vpop.f32.mrb[0].mxu0
      %v5821 = vadd.f32 %v5660, %v5820
      %v5822 = vpop.f32.mrb[0].mxu0
      %v5823 = vpop.f32.mrb[0].mxu0
      %v5824 = vadd.f32 %v5663, %v5823
      %v5825 = vpop.f32.mrb[0].mxu0
      %5826 = vmatprep.mubr.bf16.mxu0 %v5253
      %5827 = vmatmul.mubr.bf16.gmra.mrb[0].mxu0 %v5252
      %v5828 = vpop.f32.mrb[0].mxu0
      %v5829 = vadd.f32 %v5668, %v5828
      %v5830 = vpop.f32.mrb[0].mxu0
      %v5831 = vpop.f32.mrb[0].mxu0
      %v5832 = vadd.f32 %v5671, %v5831
      %v5833 = vpop.f32.mrb[0].mxu0
      %5834 = vmatprep.mubr.bf16.mxu0 %v5257
      %5835 = vmatmul.mubr.bf16.gmra.mrb[0].mxu0 %v5256
      %v5836 = vpop.f32.mrb[0].mxu0
      %v5837 = vadd.f32 %v5676, %v5836
      %v5838 = vpop.f32.mrb[0].mxu0
      %v5839 = vpop.f32.mrb[0].mxu0
      %v5840 = vadd.f32 %v5679, %v5839
      %v5841 = vpop.f32.mrb[0].mxu0
      %5842 = vdwg.mxu0
      %v5843 = vmax.f32 %v5717, 0.0
      %v5844 = vmax.f32 %v5720, 0.0
      %v5845 = vmax.f32 %v5725, 0.0
      %v5846 = vmax.f32 %v5728, 0.0
      %v5847 = vmax.f32 %v5733, 0.0
      %v5848 = vmax.f32 %v5736, 0.0
      %v5849 = vmax.f32 %v5741, 0.0
      %v5850 = vmax.f32 %v5744, 0.0
      %v5851 = vmax.f32 %v5749, 0.0
      %v5852 = vmax.f32 %v5752, 0.0
      %v5853 = vmax.f32 %v5757, 0.0
      %v5854 = vmax.f32 %v5760, 0.0
      %v5855 = vmax.f32 %v5765, 0.0
      %v5856 = vmax.f32 %v5768, 0.0
      %v5857 = vmax.f32 %v5773, 0.0
      %v5858 = vmax.f32 %v5776, 0.0
      %v5859 = vmax.f32 %v5781, 0.0
      %v5860 = vmax.f32 %v5784, 0.0
      %v5861 = vmax.f32 %v5789, 0.0
      %v5862 = vmax.f32 %v5792, 0.0
      %v5863 = vmax.f32 %v5797, 0.0
      %v5864 = vmax.f32 %v5800, 0.0
      %v5865 = vmax.f32 %v5805, 0.0
      %v5866 = vmax.f32 %v5808, 0.0
      %v5867 = vmax.f32 %v5813, 0.0
      %v5868 = vmax.f32 %v5816, 0.0
      %v5869 = vmax.f32 %v5821, 0.0
      %v5870 = vmax.f32 %v5824, 0.0
      %v5871 = vmax.f32 %v5829, 0.0
      %v5872 = vmax.f32 %v5832, 0.0
      %v5873 = vmax.f32 %v5837, 0.0
      %v5874 = vmax.f32 %v5840, 0.0
      %v5875 = vpack.c.bf16 %v5844, %v5843
      %v5876 = vpack.c.bf16 %v5846, %v5845
      %v5877 = vpack.c.bf16 %v5848, %v5847
      %v5878 = vpack.c.bf16 %v5850, %v5849
      %v5879 = vpack.c.bf16 %v5852, %v5851
      %v5880 = vpack.c.bf16 %v5854, %v5853
      %v5881 = vpack.c.bf16 %v5856, %v5855
      %v5882 = vpack.c.bf16 %v5858, %v5857
      %v5883 = vpack.c.bf16 %v5860, %v5859
      %v5884 = vpack.c.bf16 %v5862, %v5861
      %v5885 = vpack.c.bf16 %v5864, %v5863
      %v5886 = vpack.c.bf16 %v5866, %v5865
      %v5887 = vpack.c.bf16 %v5868, %v5867
      %v5888 = vpack.c.bf16 %v5870, %v5869
      %v5889 = vpack.c.bf16 %v5872, %v5871
      %v5890 = vpack.c.bf16 %v5874, %v5873
      %v5891 = vld [vmem:[%s6] sm:$0xf]
      %v5892 = vld [vmem:[%s6 + $0x4] sm:$0xf]
      %v5893 = vld [vmem:[%s6 + $0x8] sm:$0xf]
      %v5894 = vld [vmem:[%s6 + $0xc] sm:$0xf]
      %v5895 = vld [vmem:[%s6 + $0x10] sm:$0xf]
      %v5896 = vld [vmem:[%s6 + $0x14] sm:$0xf]
      %v5897 = vld [vmem:[%s6 + $0x18] sm:$0xf]
      %v5898 = vld [vmem:[%s6 + $0x1c] sm:$0xf]
      %v5899 = vld [vmem:[%s6 + $0x20] sm:$0xf]
      %v5900 = vld [vmem:[%s6 + $0x24] sm:$0xf]
      %v5901 = vld [vmem:[%s6 + $0x28] sm:$0xf]
      %v5902 = vld [vmem:[%s6 + $0x2c] sm:$0xf]
      %v5903 = vld [vmem:[%s6 + $0x30] sm:$0xf]
      %v5904 = vld [vmem:[%s6 + $0x34] sm:$0xf]
      %v5905 = vld [vmem:[%s6 + $0x38] sm:$0xf]
      %v5906 = vld [vmem:[%s6 + $0x3c] sm:$0xf]
      %v5907 = vld [vmem:[%s8 + $0xf] sm:$0x1]
      %v5909 = vlaneseq
      %v5910 = vshrl.u32 %v5909, 7
      %v5911 = vsub.s32 0, %v5910
      %v5912 = vrot.slane %v5907, %v5911
      %v5930 = vunpack.c.l.b16 %v5891
      %v5931 = vunpack.c.l.b16 %v5892
      %v5932 = vunpack.c.l.b16 %v5893
      %v5933 = vunpack.c.l.b16 %v5894
      %v5934 = vunpack.c.l.b16 %v5895
      %v5935 = vunpack.c.l.b16 %v5896
      %v5936 = vunpack.c.l.b16 %v5897
      %v5937 = vunpack.c.l.b16 %v5898
      %v5938 = vunpack.c.l.b16 %v5899
      %v5939 = vunpack.c.l.b16 %v5900
      %v5940 = vunpack.c.l.b16 %v5901
      %v5941 = vunpack.c.l.b16 %v5902
      %v5942 = vunpack.c.l.b16 %v5903
      %v5943 = vunpack.c.l.b16 %v5904
      %v5944 = vunpack.c.l.b16 %v5905
      %v5945 = vunpack.c.l.b16 %v5906
      %v5946 = vpack.c.b16 %v5931, %v5930
      %v5947 = vpack.c.b16 %v5933, %v5932
      %v5948 = vpack.c.b16 %v5935, %v5934
      %v5949 = vpack.c.b16 %v5937, %v5936
      %v5950 = vpack.c.b16 %v5939, %v5938
      %v5951 = vpack.c.b16 %v5941, %v5940
      %v5952 = vpack.c.b16 %v5943, %v5942
      %v5953 = vpack.c.b16 %v5945, %v5944
      %5962 = vmatprep.subr.bf16.mxu0 0
      %5963 = vmatpush1.bf16.msra.mxu0 %v5946
      %5964 = vmatprep.subr.bf16.mxu0 0
      %5965 = vmatpush1.bf16.msra.mxu0 %v5947
      %5966 = vmatprep.subr.bf16.mxu0 0
      %5967 = vmatpush1.bf16.msra.mxu0 %v5948
      %5968 = vmatprep.subr.bf16.mxu0 0
      %5969 = vmatpush1.bf16.msra.mxu0 %v5949
      %5970 = vmatprep.subr.bf16.mxu0 0
      %5971 = vmatpush1.bf16.msra.mxu0 %v5950
      %5972 = vmatprep.subr.bf16.mxu0 0
      %5973 = vmatpush1.bf16.msra.mxu0 %v5951
      %5974 = vmatprep.subr.bf16.mxu0 0
      %5975 = vmatpush1.bf16.msra.mxu0 %v5952
      %5976 = vmatprep.subr.bf16.mxu0 0
      %5977 = vmatpush1.bf16.msra.mxu0 %v5953
      %5978 = vmatprep.subr.bf16.mxu0 0
      %5979 = vmatpush1.bf16.msra.mxu0 0
      %5980 = vmatprep.subr.bf16.mxu0 0
      %5981 = vmatpush1.bf16.msra.mxu0 0
      %5982 = vmatprep.subr.bf16.mxu0 0
      %5983 = vmatpush1.bf16.msra.mxu0 0
      %5984 = vmatprep.subr.bf16.mxu0 0
      %5985 = vmatpush1.bf16.msra.mxu0 0
      %5986 = vmatprep.subr.bf16.mxu0 0
      %5987 = vmatpush1.bf16.msra.mxu0 0
      %5988 = vmatprep.subr.bf16.mxu0 0
      %5989 = vmatpush1.bf16.msra.mxu0 0
      %5990 = vmatprep.subr.bf16.mxu0 0
      %5991 = vmatpush1.bf16.msra.mxu0 0
      %5992 = vmatprep.subr.bf16.mxu0 0
      %5993 = vmatpush1.bf16.msra.mxu0 0
      %5994 = vmatprep.mubr.bf16.mxu0 0
      %5995 = vmatmul.mubr.bf16.gmra.mrb[0].mxu0 %v5875
      %v5996 = vpop.f32.mrb[0].mxu0
      %v5997 = vadd.f32 %v5912, %v5996
      %v5998 = vpop.f32.mrb[0].mxu0
      %v5999 = vpop.f32.mrb[0].mxu0
      %v6000 = vadd.f32 %v5912, %v5999
      %v6001 = vpop.f32.mrb[0].mxu0
      %6002 = vmatprep.mubr.bf16.mxu0 0
      %6003 = vmatmul.mubr.bf16.gmra.mrb[0].mxu0 %v5876
      %v6004 = vpop.f32.mrb[0].mxu0
      %v6005 = vadd.f32 %v5912, %v6004
      %v6006 = vpop.f32.mrb[0].mxu0
      %v6007 = vpop.f32.mrb[0].mxu0
      %v6008 = vadd.f32 %v5912, %v6007
      %v6009 = vpop.f32.mrb[0].mxu0
      %6010 = vmatprep.mubr.bf16.mxu0 0
      %6011 = vmatmul.mubr.bf16.gmra.mrb[0].mxu0 %v5877
      %v6012 = vpop.f32.mrb[0].mxu0
      %v6013 = vadd.f32 %v5912, %v6012
      %v6014 = vpop.f32.mrb[0].mxu0
      %v6015 = vpop.f32.mrb[0].mxu0
      %v6016 = vadd.f32 %v5912, %v6015
      %v6017 = vpop.f32.mrb[0].mxu0
      %6018 = vmatprep.mubr.bf16.mxu0 0
      %6019 = vmatmul.mubr.bf16.gmra.mrb[0].mxu0 %v5878
      %v6020 = vpop.f32.mrb[0].mxu0
      %v6021 = vadd.f32 %v5912, %v6020
      %v6022 = vpop.f32.mrb[0].mxu0
      %v6023 = vpop.f32.mrb[0].mxu0
      %v6024 = vadd.f32 %v5912, %v6023
      %v6025 = vpop.f32.mrb[0].mxu0
      %6026 = vmatprep.mubr.bf16.mxu0 0
      %6027 = vmatmul.mubr.bf16.gmra.mrb[0].mxu0 %v5879
      %v6028 = vpop.f32.mrb[0].mxu0
      %v6029 = vadd.f32 %v5912, %v6028
      %v6030 = vpop.f32.mrb[0].mxu0
      %v6031 = vpop.f32.mrb[0].mxu0
      %v6032 = vadd.f32 %v5912, %v6031
      %v6033 = vpop.f32.mrb[0].mxu0
      %6034 = vmatprep.mubr.bf16.mxu0 0
      %6035 = vmatmul.mubr.bf16.gmra.mrb[0].mxu0 %v5880
      %v6036 = vpop.f32.mrb[0].mxu0
      %v6037 = vadd.f32 %v5912, %v6036
      %v6038 = vpop.f32.mrb[0].mxu0
      %v6039 = vpop.f32.mrb[0].mxu0
      %v6040 = vadd.f32 %v5912, %v6039
      %v6041 = vpop.f32.mrb[0].mxu0
      %6042 = vmatprep.mubr.bf16.mxu0 0
      %6043 = vmatmul.mubr.bf16.gmra.mrb[0].mxu0 %v5881
      %v6044 = vpop.f32.mrb[0].mxu0
      %v6045 = vadd.f32 %v5912, %v6044
      %v6046 = vpop.f32.mrb[0].mxu0
      %v6047 = vpop.f32.mrb[0].mxu0
      %v6048 = vadd.f32 %v5912, %v6047
      %v6049 = vpop.f32.mrb[0].mxu0
      %6050 = vmatprep.mubr.bf16.mxu0 0
      %6051 = vmatmul.mubr.bf16.gmra.mrb[0].mxu0 %v5882
      %v6052 = vpop.f32.mrb[0].mxu0
      %v6053 = vadd.f32 %v5912, %v6052
      %v6054 = vpop.f32.mrb[0].mxu0
      %v6055 = vpop.f32.mrb[0].mxu0
      %v6056 = vadd.f32 %v5912, %v6055
      %v6057 = vpop.f32.mrb[0].mxu0
      %6058 = vmatprep.mubr.bf16.mxu0 0
      %6059 = vmatmul.mubr.bf16.gmra.mrb[0].mxu0 %v5883
      %v6060 = vpop.f32.mrb[0].mxu0
      %v6061 = vadd.f32 %v5912, %v6060
      %v6062 = vpop.f32.mrb[0].mxu0
      %v6063 = vpop.f32.mrb[0].mxu0
      %v6064 = vadd.f32 %v5912, %v6063
      %v6065 = vpop.f32.mrb[0].mxu0
      %6066 = vmatprep.mubr.bf16.mxu0 0
      %6067 = vmatmul.mubr.bf16.gmra.mrb[0].mxu0 %v5884
      %v6068 = vpop.f32.mrb[0].mxu0
      %v6069 = vadd.f32 %v5912, %v6068
      %v6070 = vpop.f32.mrb[0].mxu0
      %v6071 = vpop.f32.mrb[0].mxu0
      %v6072 = vadd.f32 %v5912, %v6071
      %v6073 = vpop.f32.mrb[0].mxu0
      %6074 = vmatprep.mubr.bf16.mxu0 0
      %6075 = vmatmul.mubr.bf16.gmra.mrb[0].mxu0 %v5885
      %v6076 = vpop.f32.mrb[0].mxu0
      %v6077 = vadd.f32 %v5912, %v6076
      %v6078 = vpop.f32.mrb[0].mxu0
      %v6079 = vpop.f32.mrb[0].mxu0
      %v6080 = vadd.f32 %v5912, %v6079
      %v6081 = vpop.f32.mrb[0].mxu0
      %6082 = vmatprep.mubr.bf16.mxu0 0
      %6083 = vmatmul.mubr.bf16.gmra.mrb[0].mxu0 %v5886
      %v6084 = vpop.f32.mrb[0].mxu0
      %v6085 = vadd.f32 %v5912, %v6084
      %v6086 = vpop.f32.mrb[0].mxu0
      %v6087 = vpop.f32.mrb[0].mxu0
      %v6088 = vadd.f32 %v5912, %v6087
      %v6089 = vpop.f32.mrb[0].mxu0
      %6090 = vmatprep.mubr.bf16.mxu0 0
      %6091 = vmatmul.mubr.bf16.gmra.mrb[0].mxu0 %v5887
      %v6092 = vpop.f32.mrb[0].mxu0
      %v6093 = vadd.f32 %v5912, %v6092
      %v6094 = vpop.f32.mrb[0].mxu0
      %v6095 = vpop.f32.mrb[0].mxu0
      %v6096 = vadd.f32 %v5912, %v6095
      %v6097 = vpop.f32.mrb[0].mxu0
      %6098 = vmatprep.mubr.bf16.mxu0 0
      %6099 = vmatmul.mubr.bf16.gmra.mrb[0].mxu0 %v5888
      %v6100 = vpop.f32.mrb[0].mxu0
      %v6101 = vadd.f32 %v5912, %v6100
      %v6102 = vpop.f32.mrb[0].mxu0
      %v6103 = vpop.f32.mrb[0].mxu0
      %v6104 = vadd.f32 %v5912, %v6103
      %v6105 = vpop.f32.mrb[0].mxu0
      %6106 = vmatprep.mubr.bf16.mxu0 0
      %6107 = vmatmul.mubr.bf16.gmra.mrb[0].mxu0 %v5889
      %v6108 = vpop.f32.mrb[0].mxu0
      %v6109 = vadd.f32 %v5912, %v6108
      %v6110 = vpop.f32.mrb[0].mxu0
      %v6111 = vpop.f32.mrb[0].mxu0
      %v6112 = vadd.f32 %v5912, %v6111
      %v6113 = vpop.f32.mrb[0].mxu0
      %6114 = vmatprep.mubr.bf16.mxu0 0
      %6115 = vmatmul.mubr.bf16.gmra.mrb[0].mxu0 %v5890
      %v6116 = vpop.f32.mrb[0].mxu0
      %v6117 = vadd.f32 %v5912, %v6116
      %v6118 = vpop.f32.mrb[0].mxu0
      %v6119 = vpop.f32.mrb[0].mxu0
      %v6120 = vadd.f32 %v5912, %v6119
      %v6121 = vpop.f32.mrb[0].mxu0
      %6122 = vdwg.mxu0
      %v6123 = vmax.f32 %v5997, 0.0
      %v6124 = vmax.f32 %v6000, 0.0
      %v6125 = vmax.f32 %v6005, 0.0
      %v6126 = vmax.f32 %v6008, 0.0
      %v6127 = vmax.f32 %v6013, 0.0
      %v6128 = vmax.f32 %v6016, 0.0
      %v6129 = vmax.f32 %v6021, 0.0
      %v6130 = vmax.f32 %v6024, 0.0
      %v6131 = vmax.f32 %v6029, 0.0
      %v6132 = vmax.f32 %v6032, 0.0
      %v6133 = vmax.f32 %v6037, 0.0
      %v6134 = vmax.f32 %v6040, 0.0
      %v6135 = vmax.f32 %v6045, 0.0
      %v6136 = vmax.f32 %v6048, 0.0
      %v6137 = vmax.f32 %v6053, 0.0
      %v6138 = vmax.f32 %v6056, 0.0
      %v6139 = vmax.f32 %v6061, 0.0
      %v6140 = vmax.f32 %v6064, 0.0
      %v6141 = vmax.f32 %v6069, 0.0
      %v6142 = vmax.f32 %v6072, 0.0
      %v6143 = vmax.f32 %v6077, 0.0
      %v6144 = vmax.f32 %v6080, 0.0
      %v6145 = vmax.f32 %v6085, 0.0
      %v6146 = vmax.f32 %v6088, 0.0
      %v6147 = vmax.f32 %v6093, 0.0
      %v6148 = vmax.f32 %v6096, 0.0
      %v6149 = vmax.f32 %v6101, 0.0
      %v6150 = vmax.f32 %v6104, 0.0
      %v6151 = vmax.f32 %v6109, 0.0
      %v6152 = vmax.f32 %v6112, 0.0
      %v6153 = vmax.f32 %v6117, 0.0
      %v6154 = vmax.f32 %v6120, 0.0
      %v6155 = vpack.c.bf16 %v6124, %v6123
      %v6156 = vpack.c.bf16 %v6126, %v6125
      %v6157 = vpack.c.bf16 %v6128, %v6127
      %v6158 = vpack.c.bf16 %v6130, %v6129
      %v6159 = vpack.c.bf16 %v6132, %v6131
      %v6160 = vpack.c.bf16 %v6134, %v6133
      %v6161 = vpack.c.bf16 %v6136, %v6135
      %v6162 = vpack.c.bf16 %v6138, %v6137
      %v6163 = vpack.c.bf16 %v6140, %v6139
      %v6164 = vpack.c.bf16 %v6142, %v6141
      %v6165 = vpack.c.bf16 %v6144, %v6143
      %v6166 = vpack.c.bf16 %v6146, %v6145
      %v6167 = vpack.c.bf16 %v6148, %v6147
      %v6168 = vpack.c.bf16 %v6150, %v6149
      %v6169 = vpack.c.bf16 %v6152, %v6151
      %v6170 = vpack.c.bf16 %v6154, %v6153
      %v6171 = vld [vmem:[%s7] sm:$0xf]
      %v6172 = vld [vmem:[%s7 + $0x4] sm:$0xf]
      %v6173 = vld [vmem:[%s7 + $0x8] sm:$0xf]
      %v6174 = vld [vmem:[%s7 + $0xc] sm:$0xf]
      %v6175 = vld [vmem:[%s7 + $0x10] sm:$0xf]
      %v6176 = vld [vmem:[%s7 + $0x14] sm:$0xf]
      %v6177 = vld [vmem:[%s7 + $0x18] sm:$0xf]
      %v6178 = vld [vmem:[%s7 + $0x1c] sm:$0xf]
      %v6179 = vld [vmem:[%s7 + $0x20] sm:$0xf]
      %v6180 = vld [vmem:[%s7 + $0x24] sm:$0xf]
      %v6181 = vld [vmem:[%s7 + $0x28] sm:$0xf]
      %v6182 = vld [vmem:[%s7 + $0x2c] sm:$0xf]
      %v6183 = vld [vmem:[%s7 + $0x30] sm:$0xf]
      %v6184 = vld [vmem:[%s7 + $0x34] sm:$0xf]
      %v6185 = vld [vmem:[%s7 + $0x38] sm:$0xf]
      %v6186 = vld [vmem:[%s7 + $0x3c] sm:$0xf]
      %v6187 = vld [vmem:[%s8 + $0x10] sm:$0x1]
      %v6189 = vlaneseq
      %v6190 = vshrl.u32 %v6189, 7
      %v6191 = vsub.s32 0, %v6190
      %v6192 = vrot.slane %v6187, %v6191
      %v6210 = vunpack.c.l.b16 %v6171
      %v6211 = vunpack.c.l.b16 %v6172
      %v6212 = vunpack.c.l.b16 %v6173
      %v6213 = vunpack.c.l.b16 %v6174
      %v6214 = vunpack.c.l.b16 %v6175
      %v6215 = vunpack.c.l.b16 %v6176
      %v6216 = vunpack.c.l.b16 %v6177
      %v6217 = vunpack.c.l.b16 %v6178
      %v6218 = vunpack.c.l.b16 %v6179
      %v6219 = vunpack.c.l.b16 %v6180
      %v6220 = vunpack.c.l.b16 %v6181
      %v6221 = vunpack.c.l.b16 %v6182
      %v6222 = vunpack.c.l.b16 %v6183
      %v6223 = vunpack.c.l.b16 %v6184
      %v6224 = vunpack.c.l.b16 %v6185
      %v6225 = vunpack.c.l.b16 %v6186
      %v6226 = vpack.c.b16 %v6211, %v6210
      %v6227 = vpack.c.b16 %v6213, %v6212
      %v6228 = vpack.c.b16 %v6215, %v6214
      %v6229 = vpack.c.b16 %v6217, %v6216
      %v6230 = vpack.c.b16 %v6219, %v6218
      %v6231 = vpack.c.b16 %v6221, %v6220
      %v6232 = vpack.c.b16 %v6223, %v6222
      %v6233 = vpack.c.b16 %v6225, %v6224
      %6242 = vmatprep.subr.bf16.mxu0 0
      %6243 = vmatpush1.bf16.msra.mxu0 %v6226
      %6244 = vmatprep.subr.bf16.mxu0 0
      %6245 = vmatpush1.bf16.msra.mxu0 %v6227
      %6246 = vmatprep.subr.bf16.mxu0 0
      %6247 = vmatpush1.bf16.msra.mxu0 %v6228
      %6248 = vmatprep.subr.bf16.mxu0 0
      %6249 = vmatpush1.bf16.msra.mxu0 %v6229
      %6250 = vmatprep.subr.bf16.mxu0 0
      %6251 = vmatpush1.bf16.msra.mxu0 %v6230
      %6252 = vmatprep.subr.bf16.mxu0 0
      %6253 = vmatpush1.bf16.msra.mxu0 %v6231
      %6254 = vmatprep.subr.bf16.mxu0 0
      %6255 = vmatpush1.bf16.msra.mxu0 %v6232
      %6256 = vmatprep.subr.bf16.mxu0 0
      %6257 = vmatpush1.bf16.msra.mxu0 %v6233
      %6258 = vmatprep.subr.bf16.mxu0 0
      %6259 = vmatpush1.bf16.msra.mxu0 0
      %6260 = vmatprep.subr.bf16.mxu0 0
      %6261 = vmatpush1.bf16.msra.mxu0 0
      %6262 = vmatprep.subr.bf16.mxu0 0
      %6263 = vmatpush1.bf16.msra.mxu0 0
      %6264 = vmatprep.subr.bf16.mxu0 0
      %6265 = vmatpush1.bf16.msra.mxu0 0
      %6266 = vmatprep.subr.bf16.mxu0 0
      %6267 = vmatpush1.bf16.msra.mxu0 0
      %6268 = vmatprep.subr.bf16.mxu0 0
      %6269 = vmatpush1.bf16.msra.mxu0 0
      %6270 = vmatprep.subr.bf16.mxu0 0
      %6271 = vmatpush1.bf16.msra.mxu0 0
      %6272 = vmatprep.subr.bf16.mxu0 0
      %6273 = vmatpush1.bf16.msra.mxu0 0
      %6274 = vmatprep.mubr.bf16.mxu0 0
      %6275 = vmatmul.mubr.bf16.gmra.mrb[0].mxu0 %v6155
      %v6276 = vpop.f32.mrb[0].mxu0
      %v6277 = vadd.f32 %v6192, %v6276
      %v6278 = vpop.f32.mrb[0].mxu0
      %v6279 = vpop.f32.mrb[0].mxu0
      %v6280 = vadd.f32 %v6192, %v6279
      %v6281 = vpop.f32.mrb[0].mxu0
      %6282 = vmatprep.mubr.bf16.mxu0 0
      %6283 = vmatmul.mubr.bf16.gmra.mrb[0].mxu0 %v6156
      %v6284 = vpop.f32.mrb[0].mxu0
      %v6285 = vadd.f32 %v6192, %v6284
      %v6286 = vpop.f32.mrb[0].mxu0
      %v6287 = vpop.f32.mrb[0].mxu0
      %v6288 = vadd.f32 %v6192, %v6287
      %v6289 = vpop.f32.mrb[0].mxu0
      %6290 = vmatprep.mubr.bf16.mxu0 0
      %6291 = vmatmul.mubr.bf16.gmra.mrb[0].mxu0 %v6157
      %v6292 = vpop.f32.mrb[0].mxu0
      %v6293 = vadd.f32 %v6192, %v6292
      %v6294 = vpop.f32.mrb[0].mxu0
      %v6295 = vpop.f32.mrb[0].mxu0
      %v6296 = vadd.f32 %v6192, %v6295
      %v6297 = vpop.f32.mrb[0].mxu0
      %6298 = vmatprep.mubr.bf16.mxu0 0
      %6299 = vmatmul.mubr.bf16.gmra.mrb[0].mxu0 %v6158
      %v6300 = vpop.f32.mrb[0].mxu0
      %v6301 = vadd.f32 %v6192, %v6300
      %v6302 = vpop.f32.mrb[0].mxu0
      %v6303 = vpop.f32.mrb[0].mxu0
      %v6304 = vadd.f32 %v6192, %v6303
      %v6305 = vpop.f32.mrb[0].mxu0
      %6306 = vmatprep.mubr.bf16.mxu0 0
      %6307 = vmatmul.mubr.bf16.gmra.mrb[0].mxu0 %v6159
      %v6308 = vpop.f32.mrb[0].mxu0
      %v6309 = vadd.f32 %v6192, %v6308
      %v6310 = vpop.f32.mrb[0].mxu0
      %v6311 = vpop.f32.mrb[0].mxu0
      %v6312 = vadd.f32 %v6192, %v6311
      %v6313 = vpop.f32.mrb[0].mxu0
      %6314 = vmatprep.mubr.bf16.mxu0 0
      %6315 = vmatmul.mubr.bf16.gmra.mrb[0].mxu0 %v6160
      %v6316 = vpop.f32.mrb[0].mxu0
      %v6317 = vadd.f32 %v6192, %v6316
      %v6318 = vpop.f32.mrb[0].mxu0
      %v6319 = vpop.f32.mrb[0].mxu0
      %v6320 = vadd.f32 %v6192, %v6319
      %v6321 = vpop.f32.mrb[0].mxu0
      %6322 = vmatprep.mubr.bf16.mxu0 0
      %6323 = vmatmul.mubr.bf16.gmra.mrb[0].mxu0 %v6161
      %v6324 = vpop.f32.mrb[0].mxu0
      %v6325 = vadd.f32 %v6192, %v6324
      %v6326 = vpop.f32.mrb[0].mxu0
      %v6327 = vpop.f32.mrb[0].mxu0
      %v6328 = vadd.f32 %v6192, %v6327
      %v6329 = vpop.f32.mrb[0].mxu0
      %6330 = vmatprep.mubr.bf16.mxu0 0
      %6331 = vmatmul.mubr.bf16.gmra.mrb[0].mxu0 %v6162
      %v6332 = vpop.f32.mrb[0].mxu0
      %v6333 = vadd.f32 %v6192, %v6332
      %v6334 = vpop.f32.mrb[0].mxu0
      %v6335 = vpop.f32.mrb[0].mxu0
      %v6336 = vadd.f32 %v6192, %v6335
      %v6337 = vpop.f32.mrb[0].mxu0
      %6338 = vmatprep.mubr.bf16.mxu0 0
      %6339 = vmatmul.mubr.bf16.gmra.mrb[0].mxu0 %v6163
      %v6340 = vpop.f32.mrb[0].mxu0
      %v6341 = vadd.f32 %v6192, %v6340
      %v6342 = vpop.f32.mrb[0].mxu0
      %v6343 = vpop.f32.mrb[0].mxu0
      %v6344 = vadd.f32 %v6192, %v6343
      %v6345 = vpop.f32.mrb[0].mxu0
      %6346 = vmatprep.mubr.bf16.mxu0 0
      %6347 = vmatmul.mubr.bf16.gmra.mrb[0].mxu0 %v6164
      %v6348 = vpop.f32.mrb[0].mxu0
      %v6349 = vadd.f32 %v6192, %v6348
      %v6350 = vpop.f32.mrb[0].mxu0
      %v6351 = vpop.f32.mrb[0].mxu0
      %v6352 = vadd.f32 %v6192, %v6351
      %v6353 = vpop.f32.mrb[0].mxu0
      %6354 = vmatprep.mubr.bf16.mxu0 0
      %6355 = vmatmul.mubr.bf16.gmra.mrb[0].mxu0 %v6165
      %v6356 = vpop.f32.mrb[0].mxu0
      %v6357 = vadd.f32 %v6192, %v6356
      %v6358 = vpop.f32.mrb[0].mxu0
      %v6359 = vpop.f32.mrb[0].mxu0
      %v6360 = vadd.f32 %v6192, %v6359
      %v6361 = vpop.f32.mrb[0].mxu0
      %6362 = vmatprep.mubr.bf16.mxu0 0
      %6363 = vmatmul.mubr.bf16.gmra.mrb[0].mxu0 %v6166
      %v6364 = vpop.f32.mrb[0].mxu0
      %v6365 = vadd.f32 %v6192, %v6364
      %v6366 = vpop.f32.mrb[0].mxu0
      %v6367 = vpop.f32.mrb[0].mxu0
      %v6368 = vadd.f32 %v6192, %v6367
      %v6369 = vpop.f32.mrb[0].mxu0
      %6370 = vmatprep.mubr.bf16.mxu0 0
      %6371 = vmatmul.mubr.bf16.gmra.mrb[0].mxu0 %v6167
      %v6372 = vpop.f32.mrb[0].mxu0
      %v6373 = vadd.f32 %v6192, %v6372
      %v6374 = vpop.f32.mrb[0].mxu0
      %v6375 = vpop.f32.mrb[0].mxu0
      %v6376 = vadd.f32 %v6192, %v6375
      %v6377 = vpop.f32.mrb[0].mxu0
      %6378 = vmatprep.mubr.bf16.mxu0 0
      %6379 = vmatmul.mubr.bf16.gmra.mrb[0].mxu0 %v6168
      %v6380 = vpop.f32.mrb[0].mxu0
      %v6381 = vadd.f32 %v6192, %v6380
      %v6382 = vpop.f32.mrb[0].mxu0
      %v6383 = vpop.f32.mrb[0].mxu0
      %v6384 = vadd.f32 %v6192, %v6383
      %v6385 = vpop.f32.mrb[0].mxu0
      %6386 = vmatprep.mubr.bf16.mxu0 0
      %6387 = vmatmul.mubr.bf16.gmra.mrb[0].mxu0 %v6169
      %v6388 = vpop.f32.mrb[0].mxu0
      %v6389 = vadd.f32 %v6192, %v6388
      %v6390 = vpop.f32.mrb[0].mxu0
      %v6391 = vpop.f32.mrb[0].mxu0
      %v6392 = vadd.f32 %v6192, %v6391
      %v6393 = vpop.f32.mrb[0].mxu0
      %6394 = vmatprep.mubr.bf16.mxu0 0
      %6395 = vmatmul.mubr.bf16.gmra.mrb[0].mxu0 %v6170
      %v6396 = vpop.f32.mrb[0].mxu0
      %v6397 = vadd.f32 %v6192, %v6396
      %v6398 = vpop.f32.mrb[0].mxu0
      %v6399 = vpop.f32.mrb[0].mxu0
      %v6400 = vadd.f32 %v6192, %v6399
      %v6401 = vpop.f32.mrb[0].mxu0
      %6402 = vdwg.mxu0
      %6403 = vst [vmem:[%s334] sm:$0xff] %v6277
      %6404 = vst [vmem:[%s334 + $0x8] sm:$0xff] %v6280
      %6405 = vst [vmem:[%s334 + $0x10] sm:$0xff] %v6285
      %6406 = vst [vmem:[%s334 + $0x18] sm:$0xff] %v6288
      %6407 = vst [vmem:[%s334 + $0x20] sm:$0xff] %v6293
      %6408 = vst [vmem:[%s334 + $0x28] sm:$0xff] %v6296
      %6409 = vst [vmem:[%s334 + $0x30] sm:$0xff] %v6301
      %6410 = vst [vmem:[%s334 + $0x38] sm:$0xff] %v6304
      %6411 = vst [vmem:[%s334 + $0x40] sm:$0xff] %v6309
      %6412 = vst [vmem:[%s334 + $0x48] sm:$0xff] %v6312
      %6413 = vst [vmem:[%s334 + $0x50] sm:$0xff] %v6317
      %6414 = vst [vmem:[%s334 + $0x58] sm:$0xff] %v6320
      %6415 = vst [vmem:[%s334 + $0x60] sm:$0xff] %v6325
      %6416 = vst [vmem:[%s334 + $0x68] sm:$0xff] %v6328
      %6417 = vst [vmem:[%s334 + $0x70] sm:$0xff] %v6333
      %6418 = vst [vmem:[%s334 + $0x78] sm:$0xff] %v6336
      %6419 = vst [vmem:[%s334 + $0x80] sm:$0xff] %v6341
      %6420 = vst [vmem:[%s334 + $0x88] sm:$0xff] %v6344
      %6421 = vst [vmem:[%s334 + $0x90] sm:$0xff] %v6349
      %6422 = vst [vmem:[%s334 + $0x98] sm:$0xff] %v6352
      %6423 = vst [vmem:[%s334 + $0xa0] sm:$0xff] %v6357
      %6424 = vst [vmem:[%s334 + $0xa8] sm:$0xff] %v6360
      %6425 = vst [vmem:[%s334 + $0xb0] sm:$0xff] %v6365
      %6426 = vst [vmem:[%s334 + $0xb8] sm:$0xff] %v6368
      %6427 = vst [vmem:[%s334 + $0xc0] sm:$0xff] %v6373
      %6428 = vst [vmem:[%s334 + $0xc8] sm:$0xff] %v6376
      %6429 = vst [vmem:[%s334 + $0xd0] sm:$0xff] %v6381
      %6430 = vst [vmem:[%s334 + $0xd8] sm:$0xff] %v6384
      %6431 = vst [vmem:[%s334 + $0xe0] sm:$0xff] %v6389
      %6432 = vst [vmem:[%s334 + $0xe8] sm:$0xff] %v6392
      %6433 = vst [vmem:[%s334 + $0xf0] sm:$0xff] %v6397
      %6434 = vst [vmem:[%s334 + $0xf8] sm:$0xff] %v6400
      %s6435 = smul.u32 32, %s20
      %p6436 = scmp.lt.s32.totalorder %s6435, 63
      %s6437 = scalar_select %p6436, %s6435, 63
      %s6438 = smul.addr %s6437, 8
      %s6439 = scalar_lea.vmem %s9, %s6438
      // Predicated region
      $region57: #{mlp4_forward.1} parent=55 // pred_check
        %p6440 = pneg %p232
      $region58: #{mlp4_forward.1} parent=55 // pred_check_branch
        %6442 = sbr.rel (%p6440) target = $region60
      $region59: #{mlp4_forward.1} parent=55 // pred_region
        %s6443 = smul.u32 32, %s20
      $region60: #{mlp4_forward.1} parent=55 // pred_fallthru
        _
    $region56: #{mlp4_forward.1} parent=5 // pred_fallthru
      _
    %p6444 = scmp.le.s32.totalorder 2, %s15
    // Predicated region
    $region61: #{mlp4_forward.1} parent=5 // pred_check
      %p6445 = pneg %p6444
    $region62: #{mlp4_forward.1} parent=5 // pred_check_branch
      %6447 = sbr.rel (%p6445) target = $region64
    $region63: #{mlp4_forward.1} parent=5 // pred_region
      %s6448 = ssub.s32 %s15, 2
      // Predicated region
      $region65: #{mlp4_forward.1} parent=63 // pred_check
        %p6449 = pneg %p238
      $region66: #{mlp4_forward.1} parent=63 // pred_check_branch
        %6451 = sbr.rel (%p6449) target = $region68
      $region67: #{mlp4_forward.1} parent=63 // pred_region
        %s6452 = smul.u32 32, %s21
        %p6453 = scmp.lt.s32.totalorder %s6452, 63
        %s6454 = scalar_select %p6453, %s6452, 63
        %s6455 = smul.addr %s6454, 8
        %s6456 = scalar_lea.vmem %s9, %s6455
      $region68: #{mlp4_forward.1} parent=63 // pred_fallthru
        _
    $region64: #{mlp4_forward.1} parent=5 // pred_fallthru
      _
  $region6: #{mlp4_forward.1} parent=0 // loop_footer
    %s19 = sadd.s32 1, %s15
  $region7: #{mlp4_forward.1} parent=0 // loop_footer_branch
    %14 = sbr.rel target = $region3
  $region8: #{mlp4_forward.1} parent=0 // loop_exit
    _

</llo_original>
